<compile_context>
chip_gen: v7x
topology: tpu7x:2x2x1
jax: 0.10.0
libtpu: 0.0.40
codegen_flags: <defaults>
</compile_context>

<pallas_src>
import math

import jax
import jax.numpy as jnp
from jax.experimental import pallas as pl

# ----------------------------- configuration ------------------------------
B = 2
CH = 4
FEAT_H, FEAT_W = 16, 16
P1, P2 = 4, 4
GH, GW = FEAT_H // P1, FEAT_W // P2           # 4, 4
NUM_PATCHES = GH * GW                          # 16
PATCH_DIM = CH * P1 * P2                       # 64
NUM_KP_BASE = 5
NK = 2 * NUM_KP_BASE                           # jacobian_token=True -> 10
DIM = 32
DEPTH = 2
HEADS = 4
HEAD_DIM = DIM // HEADS                        # 8
MLP_DIM = 64
N_TOK = NK + NUM_PATCHES                       # 26
M_ROWS = B * N_TOK                             # 52
LN_EPS = 1e-5
SQRT2_INV = 0.7071067811865476
ATTN_SCALE = float(HEAD_DIM) ** -0.5           # scale_with_head=True
NEG_BIG = -1e30                                # cross-batch attention mask
OUT_LANES = 8                                  # 2 (kp) + 4 (jac) + 2 pad


# ------------------------- in-kernel math helpers --------------------------
def _ln_normalize(x):
    """LayerNorm without affine (gamma/beta are folded into the next linear)."""
    mu = jnp.mean(x, axis=-1, keepdims=True)
    var = jnp.mean((x - mu) ** 2, axis=-1, keepdims=True)
    return (x - mu) * jax.lax.rsqrt(var + LN_EPS)


def _gelu_exact(x):
    # torch nn.GELU() default (erf-based, exact)
    return 0.5 * x * (1.0 + jax.lax.erf(x * SQRT2_INV))


# ------------------------------ fused kernel -------------------------------
def _fused_kernel(xp_ref, xbase_ref, posf_ref, bias_ref, pw_ref,
                  wqkv_ref, bqkv_ref, wout_ref, bout_ref,
                  w1_ref, b1_ref, w2_ref, b2_ref,
                  hw_ref, hb_ref,
                  out_ref):
    # Patch embedding fused with token assembly: xp has zero rows at keypoint
    # slots; xbase holds keypoint_token on kp rows and (sine-pos + patch bias)
    # on patch rows, so a single matmul + add builds the full token matrix.
    x = xbase_ref[...] + jnp.dot(xp_ref[...], pw_ref[...],
                                 preferred_element_type=jnp.float32)   # (M, DIM)

    attn_bias = bias_ref[...]    # (M, M) block-diagonal batch-isolation bias
    pos_full = posf_ref[...]     # (M, DIM), zeros on keypoint rows

    for d in range(DEPTH):                     # static unroll (DEPTH=2)
        if d > 0:
            # all_attn (sine-full): x[:, num_keypoints:] += pos
            x = x + pos_full

        # ---------- Residual(PreNorm(Attention)); LN affine in wqkv --------
        xn = _ln_normalize(x)
        qkv = jnp.dot(xn, wqkv_ref[d],
                      preferred_element_type=jnp.float32) + bqkv_ref[d]  # (M, 3*DIM)
        head_outs = []
        for h in range(HEADS):                 # static unroll (HEADS=4)
            c0 = h * HEAD_DIM
            qh = qkv[:, c0:c0 + HEAD_DIM]                              # (M, hd)
            kh = qkv[:, DIM + c0:DIM + c0 + HEAD_DIM]
            vh = qkv[:, 2 * DIM + c0:2 * DIM + c0 + HEAD_DIM]
            s = jax.lax.dot_general(qh, kh, (((1,), (1,)), ((), ())),
                                    preferred_element_type=jnp.float32)  # (M, M)
            s = s * ATTN_SCALE + attn_bias
            s = s - jnp.max(s, axis=-1, keepdims=True)
            p = jnp.exp(s)
            inv = pl.reciprocal(jnp.sum(p, axis=-1, keepdims=True), approx=True)
            head_outs.append(jnp.dot(p * inv, vh,
                                     preferred_element_type=jnp.float32))  # (M, hd)
        att = jnp.concatenate(head_outs, axis=-1)                      # (M, DIM)
        x = x + jnp.dot(att, wout_ref[d],
                        preferred_element_type=jnp.float32) + bout_ref[d]

        # --------- Residual(PreNorm(FeedForward)); LN affine in w1 ---------
        xn2 = _ln_normalize(x)
        h1 = _gelu_exact(jnp.dot(xn2, w1_ref[d],
                                 preferred_element_type=jnp.float32) + b1_ref[d])
        x = x + jnp.dot(h1, w2_ref[d],
                        preferred_element_type=jnp.float32) + b2_ref[d]

    # ------- merged heads epilogue: one LN + one (DIM, 8) matmul -----------
    # Columns 0:2 = keypoint head, 2:6 = jacobian head, 6:8 = zero padding.
    # Both heads share the LN normalization (their affines are folded into
    # the respective weight columns outside the kernel).
    xh = _ln_normalize(x)
    y = jnp.dot(xh, hw_ref[...],
                preferred_element_type=jnp.float32) + hb_ref[...]      # (M, 8)
    lane = jax.lax.broadcasted_iota(jnp.int32, y.shape, 1)
    out_ref[...] = jnp.where(lane < 2, 2.0 * jax.nn.sigmoid(y) - 1.0, y
                             ).astype(out_ref.dtype)


def fused_tokenpose_pallas(xp_full, pk):
    m = xp_full.shape[0]
    return pl.pallas_call(
        _fused_kernel,
        out_shape=jax.ShapeDtypeStruct((m, OUT_LANES), jnp.float32),
    )(xp_full, pk["x_base"], pk["pos_full"], pk["attn_bias"], pk["patch_w"],
      pk["wqkv"], pk["bqkv"], pk["wout"], pk["bout"],
      pk["w1"], pk["b1"], pk["w2"], pk["b2"],
      pk["head_w"], pk["head_b"])


# --------------------------- parameter construction ------------------------
def make_sine_position_embedding(h, w, d_model, temperature=10000.0,
                                 scale=2 * math.pi):
    area = jnp.ones((1, h, w), jnp.float32)
    y_embed = jnp.cumsum(area, axis=1)
    x_embed = jnp.cumsum(area, axis=2)
    one_dir = d_model // 2
    eps = 1e-6
    y_embed = y_embed / (y_embed[:, -1:, :] + eps) * scale
    x_embed = x_embed / (x_embed[:, :, -1:] + eps) * scale
    dim_t = jnp.arange(one_dir, dtype=jnp.float32)
    dim_t = temperature ** (2.0 * jnp.floor(dim_t / 2.0) / one_dir)
    pos_x = x_embed[:, :, :, None] / dim_t
    pos_y = y_embed[:, :, :, None] / dim_t
    pos_x = jnp.stack(
        (jnp.sin(pos_x[:, :, :, 0::2]), jnp.cos(pos_x[:, :, :, 1::2])),
        axis=4).reshape(1, h, w, one_dir)
    pos_y = jnp.stack(
        (jnp.sin(pos_y[:, :, :, 0::2]), jnp.cos(pos_y[:, :, :, 1::2])),
        axis=4).reshape(1, h, w, one_dir)
    pos = jnp.concatenate((pos_y, pos_x), axis=3)   # (1, h, w, d_model)
    return pos.reshape(1, h * w, d_model)


def init_params(key):
    ks = jax.random.split(key, 32)
    std = 0.02

    def nrm(k, shape):
        return (std * jax.random.normal(k, shape)).astype(jnp.float32)

    params = {
        "keypoint_token": nrm(ks[0], (1, NK, DIM)),
        "pos_embedding": make_sine_position_embedding(GH, GW, DIM),
        "patch_w": nrm(ks[1], (PATCH_DIM, DIM)),
        "patch_b": jnp.zeros((1, DIM), jnp.float32),
        # mlp_head: LayerNorm(dim) + Linear(dim, 2)
        "head_ln_g": jnp.ones((1, DIM), jnp.float32),
        "head_ln_b": jnp.zeros((1, DIM), jnp.float32),
        "head_w": nrm(ks[2], (DIM, 2)),
        "head_b": jnp.zeros((1, 2), jnp.float32),
        # mlp_head_jacobian: LayerNorm(dim) + Linear(dim, 4)
        # (last layer weight zeroed, bias = [1,0,0,1] as in __init__)
        "jac_ln_g": jnp.ones((1, DIM), jnp.float32),
        "jac_ln_b": jnp.zeros((1, DIM), jnp.float32),
        "jac_w": jnp.zeros((DIM, 4), jnp.float32),
        "jac_b": jnp.array([[1.0, 0.0, 0.0, 1.0]], jnp.float32),
        "layers": [],
    }
    for d in range(DEPTH):
        kk = jax.random.split(ks[4 + d], 8)
        params["layers"].append({
            "ln1_g": jnp.ones((1, DIM), jnp.float32),
            "ln1_b": jnp.zeros((1, DIM), jnp.float32),
            "wqkv": nrm(kk[0], (DIM, 3 * DIM)),     # to_qkv (no bias)
            "wout": nrm(kk[1], (DIM, DIM)),
            "bout": jnp.zeros((1, DIM), jnp.float32),
            "ln2_g": jnp.ones((1, DIM), jnp.float32),
            "ln2_b": jnp.zeros((1, DIM), jnp.float32),
            "w1": nrm(kk[2], (DIM, MLP_DIM)),
            "b1": jnp.zeros((1, MLP_DIM), jnp.float32),
            "w2": nrm(kk[3], (MLP_DIM, DIM)),
            "b2": jnp.zeros((1, DIM), jnp.float32),
        })
    return params


def pack_params(params, batch):
    """Build kernel-ready tensors once, outside jit.

    All LayerNorm affines are folded into the following linear layer:
        Linear(LN(x)) = xhat @ (gamma[:,None] * W) + (beta @ W + bias)
    so the kernel only computes the affine-free normalization.
    """
    # Per-batch base block: keypoint_token rows then (sine-pos + patch bias).
    base_block = jnp.concatenate(
        [params["keypoint_token"][0],
         params["pos_embedding"][0] + params["patch_b"]], axis=0)      # (N_TOK, DIM)
    x_base = jnp.tile(base_block, (batch, 1))                          # (M, DIM)
    pos_block = jnp.concatenate(
        [jnp.zeros((NK, DIM), jnp.float32), params["pos_embedding"][0]], axis=0)
    pos_full = jnp.tile(pos_block, (batch, 1))                         # (M, DIM)
    grp = jnp.arange(batch * N_TOK) // N_TOK
    attn_bias = jnp.where(grp[:, None] == grp[None, :],
                          0.0, NEG_BIG).astype(jnp.float32)            # (M, M)

    wqkv_f, bqkv, wout, bout = [], [], [], []
    w1_f, b1_f, w2, b2 = [], [], [], []
    for lp in params["layers"]:
        g1 = lp["ln1_g"].reshape(DIM, 1)
        g2 = lp["ln2_g"].reshape(DIM, 1)
        wqkv_f.append(g1 * lp["wqkv"])                                 # (DIM, 3*DIM)
        bqkv.append(lp["ln1_b"] @ lp["wqkv"])                          # (1, 3*DIM)
        wout.append(lp["wout"])
        bout.append(lp["bout"])
        w1_f.append(g2 * lp["w1"])                                     # (DIM, MLP)
        b1_f.append(lp["ln2_b"] @ lp["w1"] + lp["b1"])                 # (1, MLP)
        w2.append(lp["w2"])
        b2.append(lp["b2"])

    # Merge keypoint + jacobian heads (LN affines folded into weight columns).
    hw_f = params["head_ln_g"].reshape(DIM, 1) * params["head_w"]      # (DIM, 2)
    hb_f = params["head_ln_b"] @ params["head_w"] + params["head_b"]   # (1, 2)
    jw_f = params["jac_ln_g"].reshape(DIM, 1) * params["jac_w"]        # (DIM, 4)
    jb_f = params["jac_ln_b"] @ params["jac_w"] + params["jac_b"]      # (1, 4)
    head_w = jnp.concatenate(
        [hw_f, jw_f, jnp.zeros((DIM, OUT_LANES - 6), jnp.float32)], axis=1)
    head_b = jnp.concatenate(
        [hb_f, jb_f, jnp.zeros((1, OUT_LANES - 6), jnp.float32)], axis=1)

    st = lambda xs: jnp.stack(xs, axis=0)
    return {
        "x_base": x_base, "pos_full": pos_full, "attn_bias": attn_bias,
        "patch_w": params["patch_w"],
        "wqkv": st(wqkv_f), "bqkv": st(bqkv),
        "wout": st(wout), "bout": st(bout),
        "w1": st(w1_f), "b1": st(b1_f),
        "w2": st(w2), "b2": st(b2),
        "head_w": head_w, "head_b": head_b,
    }


# --------------------------------- forward ---------------------------------
def tokenpose_forward(feature, packed):
    b, c, H, W = feature.shape
    gh, gw = H // P1, W // P2

    # rearrange 'b c (h p1) (w p2) -> b (h w) (p1 p2 c)'
    x = feature.reshape(b, c, gh, P1, gw, P2)
    x = jnp.transpose(x, (0, 2, 4, 3, 5, 1))                # b h w p1 p2 c
    x = x.reshape(b, gh * gw, P1 * P2 * c)

    # Folded token layout (zero rows at keypoint slots) so the kernel builds
    # the full token matrix with a single matmul + add.
    xp_full = jnp.concatenate(
        [jnp.zeros((b, NK, PATCH_DIM), x.dtype), x], axis=1
    ).reshape(b * N_TOK, PATCH_DIM)

    out = fused_tokenpose_pallas(xp_full, packed)           # (b*N_TOK, 8)
    out = out.reshape(b, N_TOK, OUT_LANES)

    half = NK // 2
    kp = out[:, :half, 0:2]                                 # (b, 5, 2)
    jac = out[:, half:NK, 2:6].reshape(b, half, 2, 2)       # (b, 5, 2, 2)

    # TODO(synk): spatial_kp_head / gaussian2kp, affine_jacobian, the optional
    # attention mask and fix_img2motion_attention are disabled in this
    # configuration (module defaults) and not implemented here.
    return {"kp": kp, "jacobian": jac}


# ----------------------------------- main -----------------------------------
if __name__ == "__main__":
    key = jax.random.PRNGKey(0)
    k_feat, k_param = jax.random.split(key)
    feature = jax.random.normal(k_feat, (B, CH, FEAT_H, FEAT_W), jnp.float32)
    params = init_params(k_param)
    packed = pack_params(params, B)

    fwd = jax.jit(tokenpose_forward)
    out = fwd(feature, packed)
    jax.block_until_ready(out["kp"])
    jax.block_until_ready(out["jacobian"])

    assert out["kp"].shape == (B, NK // 2, 2)
    assert out["jacobian"].shape == (B, NK // 2, 2, 2)
    assert bool(jnp.all(jnp.isfinite(out["kp"])))
    assert bool(jnp.all(jnp.isfinite(out["jacobian"])))
    print("KERNEL_OK")
</pallas_src>

<mosaic_0001>
module attributes {stable_mosaic.version = 11 : i64} {
  func.func @_fused_kernel(%arg0: memref<52x64xf32, #tpu.memory_space<vmem>>, %arg1: memref<52x32xf32, #tpu.memory_space<vmem>>, %arg2: memref<52x32xf32, #tpu.memory_space<vmem>>, %arg3: memref<52x52xf32, #tpu.memory_space<vmem>>, %arg4: memref<64x32xf32, #tpu.memory_space<vmem>>, %arg5: memref<2x32x96xf32, #tpu.memory_space<vmem>>, %arg6: memref<2x1x96xf32, #tpu.memory_space<vmem>>, %arg7: memref<2x32x32xf32, #tpu.memory_space<vmem>>, %arg8: memref<2x1x32xf32, #tpu.memory_space<vmem>>, %arg9: memref<2x32x64xf32, #tpu.memory_space<vmem>>, %arg10: memref<2x1x64xf32, #tpu.memory_space<vmem>>, %arg11: memref<2x64x32xf32, #tpu.memory_space<vmem>>, %arg12: memref<2x1x32xf32, #tpu.memory_space<vmem>>, %arg13: memref<32x8xf32, #tpu.memory_space<vmem>>, %arg14: memref<1x8xf32, #tpu.memory_space<vmem>>, %arg15: memref<52x8xf32, #tpu.memory_space<vmem>>) attributes {dimension_semantics = [], scalar_prefetch = 0 : i64, scratch_operands = 0 : i64, tpu.core_type = #tpu.core_type<tc>} {
    %c0 = arith.constant 0 : index
    %c0_0 = arith.constant 0 : index
    %0 = vector.load %arg1[%c0, %c0_0] : memref<52x32xf32, #tpu.memory_space<vmem>>, vector<52x32xf32>
    %c0_1 = arith.constant 0 : index
    %c0_2 = arith.constant 0 : index
    %1 = vector.load %arg0[%c0_1, %c0_2] : memref<52x64xf32, #tpu.memory_space<vmem>>, vector<52x64xf32>
    %c0_3 = arith.constant 0 : index
    %c0_4 = arith.constant 0 : index
    %2 = vector.load %arg4[%c0_3, %c0_4] : memref<64x32xf32, #tpu.memory_space<vmem>>, vector<64x32xf32>
    %cst = arith.constant dense<0.000000e+00> : vector<52x32xf32>
    %3 = tpu.matmul %1, %2, %cst {dimension_numbers = #tpu.dot_dimension_numbers<[1], [0], [0], [1], [0, 0, 1, 1], [], []>} : vector<52x64xf32>, vector<64x32xf32>, vector<52x32xf32> -> vector<52x32xf32>
    %4 = arith.addf %0, %3 : vector<52x32xf32>
    %c0_5 = arith.constant 0 : index
    %c0_6 = arith.constant 0 : index
    %5 = vector.load %arg3[%c0_5, %c0_6] : memref<52x52xf32, #tpu.memory_space<vmem>>, vector<52x52xf32>
    %c0_7 = arith.constant 0 : index
    %c0_8 = arith.constant 0 : index
    %6 = vector.load %arg2[%c0_7, %c0_8] : memref<52x32xf32, #tpu.memory_space<vmem>>, vector<52x32xf32>
    %cst_9 = arith.constant dense<0.000000e+00> : vector<52xf32>
    %7 = vector.multi_reduction <add>, %4, %cst_9 [1] : vector<52x32xf32> to vector<52xf32>
    %8 = vector.shape_cast %7 : vector<52xf32> to vector<52x1xf32>
    %cst_10 = arith.constant 3.200000e+01 : f32
    %9 = vector.broadcast %cst_10 : f32 to vector<52x1xf32>
    %10 = arith.divf %8, %9 : vector<52x1xf32>
    %11 = vector.broadcast %10 : vector<52x1xf32> to vector<52x32xf32>
    %12 = arith.subf %4, %11 : vector<52x32xf32>
    %13 = arith.mulf %12, %12 : vector<52x32xf32>
    %cst_11 = arith.constant dense<0.000000e+00> : vector<52xf32>
    %14 = vector.multi_reduction <add>, %13, %cst_11 [1] : vector<52x32xf32> to vector<52xf32>
    %15 = vector.shape_cast %14 : vector<52xf32> to vector<52x1xf32>
    %cst_12 = arith.constant 3.200000e+01 : f32
    %16 = vector.broadcast %cst_12 : f32 to vector<52x1xf32>
    %17 = arith.divf %15, %16 : vector<52x1xf32>
    %18 = vector.broadcast %10 : vector<52x1xf32> to vector<52x32xf32>
    %19 = arith.subf %4, %18 : vector<52x32xf32>
    %cst_13 = arith.constant 9.99999974E-6 : f32
    %20 = vector.broadcast %cst_13 : f32 to vector<52x1xf32>
    %21 = arith.addf %17, %20 : vector<52x1xf32>
    %22 = math.rsqrt %21 : vector<52x1xf32>
    %23 = vector.broadcast %22 : vector<52x1xf32> to vector<52x32xf32>
    %24 = arith.mulf %19, %23 : vector<52x32xf32>
    %c0_14 = arith.constant 0 : index
    %c0_15 = arith.constant 0 : index
    %c0_16 = arith.constant 0 : index
    %25 = vector.load %arg5[%c0_14, %c0_15, %c0_16] : memref<2x32x96xf32, #tpu.memory_space<vmem>>, vector<1x32x96xf32>
    %26 = vector.shape_cast %25 : vector<1x32x96xf32> to vector<32x96xf32>
    %cst_17 = arith.constant dense<0.000000e+00> : vector<52x96xf32>
    %27 = tpu.matmul %24, %26, %cst_17 {dimension_numbers = #tpu.dot_dimension_numbers<[1], [0], [0], [1], [0, 0, 1, 1], [], []>} : vector<52x32xf32>, vector<32x96xf32>, vector<52x96xf32> -> vector<52x96xf32>
    %c0_18 = arith.constant 0 : index
    %c0_19 = arith.constant 0 : index
    %c0_20 = arith.constant 0 : index
    %28 = vector.load %arg6[%c0_18, %c0_19, %c0_20] : memref<2x1x96xf32, #tpu.memory_space<vmem>>, vector<1x1x96xf32>
    %29 = vector.shape_cast %28 : vector<1x1x96xf32> to vector<1x96xf32>
    %30 = vector.broadcast %29 : vector<1x96xf32> to vector<52x96xf32>
    %31 = arith.addf %27, %30 : vector<52x96xf32>
    %32 = vector.extract_strided_slice %31 {offsets = [0, 0], sizes = [52, 8], strides = [1, 1]} : vector<52x96xf32> to vector<52x8xf32>
    %33 = vector.extract_strided_slice %31 {offsets = [0, 32], sizes = [52, 8], strides = [1, 1]} : vector<52x96xf32> to vector<52x8xf32>
    %34 = vector.extract_strided_slice %31 {offsets = [0, 64], sizes = [52, 8], strides = [1, 1]} : vector<52x96xf32> to vector<52x8xf32>
    %cst_21 = arith.constant dense<0.000000e+00> : vector<52x52xf32>
    %35 = tpu.matmul %32, %33, %cst_21 {dimension_numbers = #tpu.dot_dimension_numbers<[1], [1], [0], [0], [0, 0, 1, 0], [], []>} : vector<52x8xf32>, vector<52x8xf32>, vector<52x52xf32> -> vector<52x52xf32>
    %cst_22 = arith.constant 0.353553385 : f32
    %36 = vector.broadcast %cst_22 : f32 to vector<52x52xf32>
    %37 = arith.mulf %35, %36 : vector<52x52xf32>
    %38 = arith.addf %37, %5 : vector<52x52xf32>
    %cst_23 = arith.constant dense<0xFF800000> : vector<52xf32>
    %39 = vector.multi_reduction <maximumf>, %38, %cst_23 [1] : vector<52x52xf32> to vector<52xf32>
    %40 = vector.shape_cast %39 : vector<52xf32> to vector<52x1xf32>
    %41 = vector.broadcast %40 : vector<52x1xf32> to vector<52x52xf32>
    %42 = arith.subf %38, %41 : vector<52x52xf32>
    %43 = math.exp %42 : vector<52x52xf32>
    %cst_24 = arith.constant dense<0.000000e+00> : vector<52xf32>
    %44 = vector.multi_reduction <add>, %43, %cst_24 [1] : vector<52x52xf32> to vector<52xf32>
    %45 = vector.shape_cast %44 : vector<52xf32> to vector<52x1xf32>
    %46 = tpu.reciprocal %45 {approx = true} : vector<52x1xf32> -> vector<52x1xf32>
    %47 = vector.broadcast %46 : vector<52x1xf32> to vector<52x52xf32>
    %48 = arith.mulf %43, %47 : vector<52x52xf32>
    %cst_25 = arith.constant dense<0.000000e+00> : vector<52x8xf32>
    %49 = tpu.matmul %48, %34, %cst_25 {dimension_numbers = #tpu.dot_dimension_numbers<[1], [0], [0], [1], [0, 0, 1, 1], [], []>} : vector<52x52xf32>, vector<52x8xf32>, vector<52x8xf32> -> vector<52x8xf32>
    %50 = vector.extract_strided_slice %31 {offsets = [0, 8], sizes = [52, 8], strides = [1, 1]} : vector<52x96xf32> to vector<52x8xf32>
    %51 = vector.extract_strided_slice %31 {offsets = [0, 40], sizes = [52, 8], strides = [1, 1]} : vector<52x96xf32> to vector<52x8xf32>
    %52 = vector.extract_strided_slice %31 {offsets = [0, 72], sizes = [52, 8], strides = [1, 1]} : vector<52x96xf32> to vector<52x8xf32>
    %cst_26 = arith.constant dense<0.000000e+00> : vector<52x52xf32>
    %53 = tpu.matmul %50, %51, %cst_26 {dimension_numbers = #tpu.dot_dimension_numbers<[1], [1], [0], [0], [0, 0, 1, 0], [], []>} : vector<52x8xf32>, vector<52x8xf32>, vector<52x52xf32> -> vector<52x52xf32>
    %cst_27 = arith.constant 0.353553385 : f32
    %54 = vector.broadcast %cst_27 : f32 to vector<52x52xf32>
    %55 = arith.mulf %53, %54 : vector<52x52xf32>
    %56 = arith.addf %55, %5 : vector<52x52xf32>
    %cst_28 = arith.constant dense<0xFF800000> : vector<52xf32>
    %57 = vector.multi_reduction <maximumf>, %56, %cst_28 [1] : vector<52x52xf32> to vector<52xf32>
    %58 = vector.shape_cast %57 : vector<52xf32> to vector<52x1xf32>
    %59 = vector.broadcast %58 : vector<52x1xf32> to vector<52x52xf32>
    %60 = arith.subf %56, %59 : vector<52x52xf32>
    %61 = math.exp %60 : vector<52x52xf32>
    %cst_29 = arith.constant dense<0.000000e+00> : vector<52xf32>
    %62 = vector.multi_reduction <add>, %61, %cst_29 [1] : vector<52x52xf32> to vector<52xf32>
    %63 = vector.shape_cast %62 : vector<52xf32> to vector<52x1xf32>
    %64 = tpu.reciprocal %63 {approx = true} : vector<52x1xf32> -> vector<52x1xf32>
    %65 = vector.broadcast %64 : vector<52x1xf32> to vector<52x52xf32>
    %66 = arith.mulf %61, %65 : vector<52x52xf32>
    %cst_30 = arith.constant dense<0.000000e+00> : vector<52x8xf32>
    %67 = tpu.matmul %66, %52, %cst_30 {dimension_numbers = #tpu.dot_dimension_numbers<[1], [0], [0], [1], [0, 0, 1, 1], [], []>} : vector<52x52xf32>, vector<52x8xf32>, vector<52x8xf32> -> vector<52x8xf32>
    %68 = vector.extract_strided_slice %31 {offsets = [0, 16], sizes = [52, 8], strides = [1, 1]} : vector<52x96xf32> to vector<52x8xf32>
    %69 = vector.extract_strided_slice %31 {offsets = [0, 48], sizes = [52, 8], strides = [1, 1]} : vector<52x96xf32> to vector<52x8xf32>
    %70 = vector.extract_strided_slice %31 {offsets = [0, 80], sizes = [52, 8], strides = [1, 1]} : vector<52x96xf32> to vector<52x8xf32>
    %cst_31 = arith.constant dense<0.000000e+00> : vector<52x52xf32>
    %71 = tpu.matmul %68, %69, %cst_31 {dimension_numbers = #tpu.dot_dimension_numbers<[1], [1], [0], [0], [0, 0, 1, 0], [], []>} : vector<52x8xf32>, vector<52x8xf32>, vector<52x52xf32> -> vector<52x52xf32>
    %cst_32 = arith.constant 0.353553385 : f32
    %72 = vector.broadcast %cst_32 : f32 to vector<52x52xf32>
    %73 = arith.mulf %71, %72 : vector<52x52xf32>
    %74 = arith.addf %73, %5 : vector<52x52xf32>
    %cst_33 = arith.constant dense<0xFF800000> : vector<52xf32>
    %75 = vector.multi_reduction <maximumf>, %74, %cst_33 [1] : vector<52x52xf32> to vector<52xf32>
    %76 = vector.shape_cast %75 : vector<52xf32> to vector<52x1xf32>
    %77 = vector.broadcast %76 : vector<52x1xf32> to vector<52x52xf32>
    %78 = arith.subf %74, %77 : vector<52x52xf32>
    %79 = math.exp %78 : vector<52x52xf32>
    %cst_34 = arith.constant dense<0.000000e+00> : vector<52xf32>
    %80 = vector.multi_reduction <add>, %79, %cst_34 [1] : vector<52x52xf32> to vector<52xf32>
    %81 = vector.shape_cast %80 : vector<52xf32> to vector<52x1xf32>
    %82 = tpu.reciprocal %81 {approx = true} : vector<52x1xf32> -> vector<52x1xf32>
    %83 = vector.broadcast %82 : vector<52x1xf32> to vector<52x52xf32>
    %84 = arith.mulf %79, %83 : vector<52x52xf32>
    %cst_35 = arith.constant dense<0.000000e+00> : vector<52x8xf32>
    %85 = tpu.matmul %84, %70, %cst_35 {dimension_numbers = #tpu.dot_dimension_numbers<[1], [0], [0], [1], [0, 0, 1, 1], [], []>} : vector<52x52xf32>, vector<52x8xf32>, vector<52x8xf32> -> vector<52x8xf32>
    %86 = vector.extract_strided_slice %31 {offsets = [0, 24], sizes = [52, 8], strides = [1, 1]} : vector<52x96xf32> to vector<52x8xf32>
    %87 = vector.extract_strided_slice %31 {offsets = [0, 56], sizes = [52, 8], strides = [1, 1]} : vector<52x96xf32> to vector<52x8xf32>
    %88 = vector.extract_strided_slice %31 {offsets = [0, 88], sizes = [52, 8], strides = [1, 1]} : vector<52x96xf32> to vector<52x8xf32>
    %cst_36 = arith.constant dense<0.000000e+00> : vector<52x52xf32>
    %89 = tpu.matmul %86, %87, %cst_36 {dimension_numbers = #tpu.dot_dimension_numbers<[1], [1], [0], [0], [0, 0, 1, 0], [], []>} : vector<52x8xf32>, vector<52x8xf32>, vector<52x52xf32> -> vector<52x52xf32>
    %cst_37 = arith.constant 0.353553385 : f32
    %90 = vector.broadcast %cst_37 : f32 to vector<52x52xf32>
    %91 = arith.mulf %89, %90 : vector<52x52xf32>
    %92 = arith.addf %91, %5 : vector<52x52xf32>
    %cst_38 = arith.constant dense<0xFF800000> : vector<52xf32>
    %93 = vector.multi_reduction <maximumf>, %92, %cst_38 [1] : vector<52x52xf32> to vector<52xf32>
    %94 = vector.shape_cast %93 : vector<52xf32> to vector<52x1xf32>
    %95 = vector.broadcast %94 : vector<52x1xf32> to vector<52x52xf32>
    %96 = arith.subf %92, %95 : vector<52x52xf32>
    %97 = math.exp %96 : vector<52x52xf32>
    %cst_39 = arith.constant dense<0.000000e+00> : vector<52xf32>
    %98 = vector.multi_reduction <add>, %97, %cst_39 [1] : vector<52x52xf32> to vector<52xf32>
    %99 = vector.shape_cast %98 : vector<52xf32> to vector<52x1xf32>
    %100 = tpu.reciprocal %99 {approx = true} : vector<52x1xf32> -> vector<52x1xf32>
    %101 = vector.broadcast %100 : vector<52x1xf32> to vector<52x52xf32>
    %102 = arith.mulf %97, %101 : vector<52x52xf32>
    %cst_40 = arith.constant dense<0.000000e+00> : vector<52x8xf32>
    %103 = tpu.matmul %102, %88, %cst_40 {dimension_numbers = #tpu.dot_dimension_numbers<[1], [0], [0], [1], [0, 0, 1, 1], [], []>} : vector<52x52xf32>, vector<52x8xf32>, vector<52x8xf32> -> vector<52x8xf32>
    %104 = tpu.concatenate %49, %67, %85, %103 in 1 : vector<52x8xf32>, vector<52x8xf32>, vector<52x8xf32>, vector<52x8xf32> -> vector<52x32xf32>
    %c0_41 = arith.constant 0 : index
    %c0_42 = arith.constant 0 : index
    %c0_43 = arith.constant 0 : index
    %105 = vector.load %arg7[%c0_41, %c0_42, %c0_43] : memref<2x32x32xf32, #tpu.memory_space<vmem>>, vector<1x32x32xf32>
    %106 = vector.shape_cast %105 : vector<1x32x32xf32> to vector<32x32xf32>
    %cst_44 = arith.constant dense<0.000000e+00> : vector<52x32xf32>
    %107 = tpu.matmul %104, %106, %cst_44 {dimension_numbers = #tpu.dot_dimension_numbers<[1], [0], [0], [1], [0, 0, 1, 1], [], []>} : vector<52x32xf32>, vector<32x32xf32>, vector<52x32xf32> -> vector<52x32xf32>
    %108 = arith.addf %4, %107 : vector<52x32xf32>
    %c0_45 = arith.constant 0 : index
    %c0_46 = arith.constant 0 : index
    %c0_47 = arith.constant 0 : index
    %109 = vector.load %arg8[%c0_45, %c0_46, %c0_47] : memref<2x1x32xf32, #tpu.memory_space<vmem>>, vector<1x1x32xf32>
    %110 = vector.shape_cast %109 : vector<1x1x32xf32> to vector<1x32xf32>
    %111 = vector.broadcast %110 : vector<1x32xf32> to vector<52x32xf32>
    %112 = arith.addf %108, %111 : vector<52x32xf32>
    %cst_48 = arith.constant dense<0.000000e+00> : vector<52xf32>
    %113 = vector.multi_reduction <add>, %112, %cst_48 [1] : vector<52x32xf32> to vector<52xf32>
    %114 = vector.shape_cast %113 : vector<52xf32> to vector<52x1xf32>
    %cst_49 = arith.constant 3.200000e+01 : f32
    %115 = vector.broadcast %cst_49 : f32 to vector<52x1xf32>
    %116 = arith.divf %114, %115 : vector<52x1xf32>
    %117 = vector.broadcast %116 : vector<52x1xf32> to vector<52x32xf32>
    %118 = arith.subf %112, %117 : vector<52x32xf32>
    %119 = arith.mulf %118, %118 : vector<52x32xf32>
    %cst_50 = arith.constant dense<0.000000e+00> : vector<52xf32>
    %120 = vector.multi_reduction <add>, %119, %cst_50 [1] : vector<52x32xf32> to vector<52xf32>
    %121 = vector.shape_cast %120 : vector<52xf32> to vector<52x1xf32>
    %cst_51 = arith.constant 3.200000e+01 : f32
    %122 = vector.broadcast %cst_51 : f32 to vector<52x1xf32>
    %123 = arith.divf %121, %122 : vector<52x1xf32>
    %124 = vector.broadcast %116 : vector<52x1xf32> to vector<52x32xf32>
    %125 = arith.subf %112, %124 : vector<52x32xf32>
    %cst_52 = arith.constant 9.99999974E-6 : f32
    %126 = vector.broadcast %cst_52 : f32 to vector<52x1xf32>
    %127 = arith.addf %123, %126 : vector<52x1xf32>
    %128 = math.rsqrt %127 : vector<52x1xf32>
    %129 = vector.broadcast %128 : vector<52x1xf32> to vector<52x32xf32>
    %130 = arith.mulf %125, %129 : vector<52x32xf32>
    %c0_53 = arith.constant 0 : index
    %c0_54 = arith.constant 0 : index
    %c0_55 = arith.constant 0 : index
    %131 = vector.load %arg9[%c0_53, %c0_54, %c0_55] : memref<2x32x64xf32, #tpu.memory_space<vmem>>, vector<1x32x64xf32>
    %132 = vector.shape_cast %131 : vector<1x32x64xf32> to vector<32x64xf32>
    %cst_56 = arith.constant dense<0.000000e+00> : vector<52x64xf32>
    %133 = tpu.matmul %130, %132, %cst_56 {dimension_numbers = #tpu.dot_dimension_numbers<[1], [0], [0], [1], [0, 0, 1, 1], [], []>} : vector<52x32xf32>, vector<32x64xf32>, vector<52x64xf32> -> vector<52x64xf32>
    %c0_57 = arith.constant 0 : index
    %c0_58 = arith.constant 0 : index
    %c0_59 = arith.constant 0 : index
    %134 = vector.load %arg10[%c0_57, %c0_58, %c0_59] : memref<2x1x64xf32, #tpu.memory_space<vmem>>, vector<1x1x64xf32>
    %135 = vector.shape_cast %134 : vector<1x1x64xf32> to vector<1x64xf32>
    %136 = vector.broadcast %135 : vector<1x64xf32> to vector<52x64xf32>
    %137 = arith.addf %133, %136 : vector<52x64xf32>
    %cst_60 = arith.constant 5.000000e-01 : f32
    %138 = vector.broadcast %cst_60 : f32 to vector<52x64xf32>
    %139 = arith.mulf %138, %137 : vector<52x64xf32>
    %cst_61 = arith.constant 0.707106769 : f32
    %140 = vector.broadcast %cst_61 : f32 to vector<52x64xf32>
    %141 = arith.mulf %137, %140 : vector<52x64xf32>
    %142 = math.erf %141 : vector<52x64xf32>
    %cst_62 = arith.constant 1.000000e+00 : f32
    %143 = vector.broadcast %cst_62 : f32 to vector<52x64xf32>
    %144 = arith.addf %143, %142 : vector<52x64xf32>
    %145 = arith.mulf %139, %144 : vector<52x64xf32>
    %c0_63 = arith.constant 0 : index
    %c0_64 = arith.constant 0 : index
    %c0_65 = arith.constant 0 : index
    %146 = vector.load %arg11[%c0_63, %c0_64, %c0_65] : memref<2x64x32xf32, #tpu.memory_space<vmem>>, vector<1x64x32xf32>
    %147 = vector.shape_cast %146 : vector<1x64x32xf32> to vector<64x32xf32>
    %cst_66 = arith.constant dense<0.000000e+00> : vector<52x32xf32>
    %148 = tpu.matmul %145, %147, %cst_66 {dimension_numbers = #tpu.dot_dimension_numbers<[1], [0], [0], [1], [0, 0, 1, 1], [], []>} : vector<52x64xf32>, vector<64x32xf32>, vector<52x32xf32> -> vector<52x32xf32>
    %149 = arith.addf %112, %148 : vector<52x32xf32>
    %c0_67 = arith.constant 0 : index
    %c0_68 = arith.constant 0 : index
    %c0_69 = arith.constant 0 : index
    %150 = vector.load %arg12[%c0_67, %c0_68, %c0_69] : memref<2x1x32xf32, #tpu.memory_space<vmem>>, vector<1x1x32xf32>
    %151 = vector.shape_cast %150 : vector<1x1x32xf32> to vector<1x32xf32>
    %152 = vector.broadcast %151 : vector<1x32xf32> to vector<52x32xf32>
    %153 = arith.addf %149, %152 : vector<52x32xf32>
    %154 = arith.addf %153, %6 : vector<52x32xf32>
    %cst_70 = arith.constant dense<0.000000e+00> : vector<52xf32>
    %155 = vector.multi_reduction <add>, %154, %cst_70 [1] : vector<52x32xf32> to vector<52xf32>
    %156 = vector.shape_cast %155 : vector<52xf32> to vector<52x1xf32>
    %cst_71 = arith.constant 3.200000e+01 : f32
    %157 = vector.broadcast %cst_71 : f32 to vector<52x1xf32>
    %158 = arith.divf %156, %157 : vector<52x1xf32>
    %159 = vector.broadcast %158 : vector<52x1xf32> to vector<52x32xf32>
    %160 = arith.subf %154, %159 : vector<52x32xf32>
    %161 = arith.mulf %160, %160 : vector<52x32xf32>
    %cst_72 = arith.constant dense<0.000000e+00> : vector<52xf32>
    %162 = vector.multi_reduction <add>, %161, %cst_72 [1] : vector<52x32xf32> to vector<52xf32>
    %163 = vector.shape_cast %162 : vector<52xf32> to vector<52x1xf32>
    %cst_73 = arith.constant 3.200000e+01 : f32
    %164 = vector.broadcast %cst_73 : f32 to vector<52x1xf32>
    %165 = arith.divf %163, %164 : vector<52x1xf32>
    %166 = vector.broadcast %158 : vector<52x1xf32> to vector<52x32xf32>
    %167 = arith.subf %154, %166 : vector<52x32xf32>
    %cst_74 = arith.constant 9.99999974E-6 : f32
    %168 = vector.broadcast %cst_74 : f32 to vector<52x1xf32>
    %169 = arith.addf %165, %168 : vector<52x1xf32>
    %170 = math.rsqrt %169 : vector<52x1xf32>
    %171 = vector.broadcast %170 : vector<52x1xf32> to vector<52x32xf32>
    %172 = arith.mulf %167, %171 : vector<52x32xf32>
    %c1 = arith.constant 1 : index
    %c0_75 = arith.constant 0 : index
    %c0_76 = arith.constant 0 : index
    %173 = vector.load %arg5[%c1, %c0_75, %c0_76] : memref<2x32x96xf32, #tpu.memory_space<vmem>>, vector<1x32x96xf32>
    %174 = vector.shape_cast %173 : vector<1x32x96xf32> to vector<32x96xf32>
    %cst_77 = arith.constant dense<0.000000e+00> : vector<52x96xf32>
    %175 = tpu.matmul %172, %174, %cst_77 {dimension_numbers = #tpu.dot_dimension_numbers<[1], [0], [0], [1], [0, 0, 1, 1], [], []>} : vector<52x32xf32>, vector<32x96xf32>, vector<52x96xf32> -> vector<52x96xf32>
    %c1_78 = arith.constant 1 : index
    %c0_79 = arith.constant 0 : index
    %c0_80 = arith.constant 0 : index
    %176 = vector.load %arg6[%c1_78, %c0_79, %c0_80] : memref<2x1x96xf32, #tpu.memory_space<vmem>>, vector<1x1x96xf32>
    %177 = vector.shape_cast %176 : vector<1x1x96xf32> to vector<1x96xf32>
    %178 = vector.broadcast %177 : vector<1x96xf32> to vector<52x96xf32>
    %179 = arith.addf %175, %178 : vector<52x96xf32>
    %180 = vector.extract_strided_slice %179 {offsets = [0, 0], sizes = [52, 8], strides = [1, 1]} : vector<52x96xf32> to vector<52x8xf32>
    %181 = vector.extract_strided_slice %179 {offsets = [0, 32], sizes = [52, 8], strides = [1, 1]} : vector<52x96xf32> to vector<52x8xf32>
    %182 = vector.extract_strided_slice %179 {offsets = [0, 64], sizes = [52, 8], strides = [1, 1]} : vector<52x96xf32> to vector<52x8xf32>
    %cst_81 = arith.constant dense<0.000000e+00> : vector<52x52xf32>
    %183 = tpu.matmul %180, %181, %cst_81 {dimension_numbers = #tpu.dot_dimension_numbers<[1], [1], [0], [0], [0, 0, 1, 0], [], []>} : vector<52x8xf32>, vector<52x8xf32>, vector<52x52xf32> -> vector<52x52xf32>
    %cst_82 = arith.constant 0.353553385 : f32
    %184 = vector.broadcast %cst_82 : f32 to vector<52x52xf32>
    %185 = arith.mulf %183, %184 : vector<52x52xf32>
    %186 = arith.addf %185, %5 : vector<52x52xf32>
    %cst_83 = arith.constant dense<0xFF800000> : vector<52xf32>
    %187 = vector.multi_reduction <maximumf>, %186, %cst_83 [1] : vector<52x52xf32> to vector<52xf32>
    %188 = vector.shape_cast %187 : vector<52xf32> to vector<52x1xf32>
    %189 = vector.broadcast %188 : vector<52x1xf32> to vector<52x52xf32>
    %190 = arith.subf %186, %189 : vector<52x52xf32>
    %191 = math.exp %190 : vector<52x52xf32>
    %cst_84 = arith.constant dense<0.000000e+00> : vector<52xf32>
    %192 = vector.multi_reduction <add>, %191, %cst_84 [1] : vector<52x52xf32> to vector<52xf32>
    %193 = vector.shape_cast %192 : vector<52xf32> to vector<52x1xf32>
    %194 = tpu.reciprocal %193 {approx = true} : vector<52x1xf32> -> vector<52x1xf32>
    %195 = vector.broadcast %194 : vector<52x1xf32> to vector<52x52xf32>
    %196 = arith.mulf %191, %195 : vector<52x52xf32>
    %cst_85 = arith.constant dense<0.000000e+00> : vector<52x8xf32>
    %197 = tpu.matmul %196, %182, %cst_85 {dimension_numbers = #tpu.dot_dimension_numbers<[1], [0], [0], [1], [0, 0, 1, 1], [], []>} : vector<52x52xf32>, vector<52x8xf32>, vector<52x8xf32> -> vector<52x8xf32>
    %198 = vector.extract_strided_slice %179 {offsets = [0, 8], sizes = [52, 8], strides = [1, 1]} : vector<52x96xf32> to vector<52x8xf32>
    %199 = vector.extract_strided_slice %179 {offsets = [0, 40], sizes = [52, 8], strides = [1, 1]} : vector<52x96xf32> to vector<52x8xf32>
    %200 = vector.extract_strided_slice %179 {offsets = [0, 72], sizes = [52, 8], strides = [1, 1]} : vector<52x96xf32> to vector<52x8xf32>
    %cst_86 = arith.constant dense<0.000000e+00> : vector<52x52xf32>
    %201 = tpu.matmul %198, %199, %cst_86 {dimension_numbers = #tpu.dot_dimension_numbers<[1], [1], [0], [0], [0, 0, 1, 0], [], []>} : vector<52x8xf32>, vector<52x8xf32>, vector<52x52xf32> -> vector<52x52xf32>
    %cst_87 = arith.constant 0.353553385 : f32
    %202 = vector.broadcast %cst_87 : f32 to vector<52x52xf32>
    %203 = arith.mulf %201, %202 : vector<52x52xf32>
    %204 = arith.addf %203, %5 : vector<52x52xf32>
    %cst_88 = arith.constant dense<0xFF800000> : vector<52xf32>
    %205 = vector.multi_reduction <maximumf>, %204, %cst_88 [1] : vector<52x52xf32> to vector<52xf32>
    %206 = vector.shape_cast %205 : vector<52xf32> to vector<52x1xf32>
    %207 = vector.broadcast %206 : vector<52x1xf32> to vector<52x52xf32>
    %208 = arith.subf %204, %207 : vector<52x52xf32>
    %209 = math.exp %208 : vector<52x52xf32>
    %cst_89 = arith.constant dense<0.000000e+00> : vector<52xf32>
    %210 = vector.multi_reduction <add>, %209, %cst_89 [1] : vector<52x52xf32> to vector<52xf32>
    %211 = vector.shape_cast %210 : vector<52xf32> to vector<52x1xf32>
    %212 = tpu.reciprocal %211 {approx = true} : vector<52x1xf32> -> vector<52x1xf32>
    %213 = vector.broadcast %212 : vector<52x1xf32> to vector<52x52xf32>
    %214 = arith.mulf %209, %213 : vector<52x52xf32>
    %cst_90 = arith.constant dense<0.000000e+00> : vector<52x8xf32>
    %215 = tpu.matmul %214, %200, %cst_90 {dimension_numbers = #tpu.dot_dimension_numbers<[1], [0], [0], [1], [0, 0, 1, 1], [], []>} : vector<52x52xf32>, vector<52x8xf32>, vector<52x8xf32> -> vector<52x8xf32>
    %216 = vector.extract_strided_slice %179 {offsets = [0, 16], sizes = [52, 8], strides = [1, 1]} : vector<52x96xf32> to vector<52x8xf32>
    %217 = vector.extract_strided_slice %179 {offsets = [0, 48], sizes = [52, 8], strides = [1, 1]} : vector<52x96xf32> to vector<52x8xf32>
    %218 = vector.extract_strided_slice %179 {offsets = [0, 80], sizes = [52, 8], strides = [1, 1]} : vector<52x96xf32> to vector<52x8xf32>
    %cst_91 = arith.constant dense<0.000000e+00> : vector<52x52xf32>
    %219 = tpu.matmul %216, %217, %cst_91 {dimension_numbers = #tpu.dot_dimension_numbers<[1], [1], [0], [0], [0, 0, 1, 0], [], []>} : vector<52x8xf32>, vector<52x8xf32>, vector<52x52xf32> -> vector<52x52xf32>
    %cst_92 = arith.constant 0.353553385 : f32
    %220 = vector.broadcast %cst_92 : f32 to vector<52x52xf32>
    %221 = arith.mulf %219, %220 : vector<52x52xf32>
    %222 = arith.addf %221, %5 : vector<52x52xf32>
    %cst_93 = arith.constant dense<0xFF800000> : vector<52xf32>
    %223 = vector.multi_reduction <maximumf>, %222, %cst_93 [1] : vector<52x52xf32> to vector<52xf32>
    %224 = vector.shape_cast %223 : vector<52xf32> to vector<52x1xf32>
    %225 = vector.broadcast %224 : vector<52x1xf32> to vector<52x52xf32>
    %226 = arith.subf %222, %225 : vector<52x52xf32>
    %227 = math.exp %226 : vector<52x52xf32>
    %cst_94 = arith.constant dense<0.000000e+00> : vector<52xf32>
    %228 = vector.multi_reduction <add>, %227, %cst_94 [1] : vector<52x52xf32> to vector<52xf32>
    %229 = vector.shape_cast %228 : vector<52xf32> to vector<52x1xf32>
    %230 = tpu.reciprocal %229 {approx = true} : vector<52x1xf32> -> vector<52x1xf32>
    %231 = vector.broadcast %230 : vector<52x1xf32> to vector<52x52xf32>
    %232 = arith.mulf %227, %231 : vector<52x52xf32>
    %cst_95 = arith.constant dense<0.000000e+00> : vector<52x8xf32>
    %233 = tpu.matmul %232, %218, %cst_95 {dimension_numbers = #tpu.dot_dimension_numbers<[1], [0], [0], [1], [0, 0, 1, 1], [], []>} : vector<52x52xf32>, vector<52x8xf32>, vector<52x8xf32> -> vector<52x8xf32>
    %234 = vector.extract_strided_slice %179 {offsets = [0, 24], sizes = [52, 8], strides = [1, 1]} : vector<52x96xf32> to vector<52x8xf32>
    %235 = vector.extract_strided_slice %179 {offsets = [0, 56], sizes = [52, 8], strides = [1, 1]} : vector<52x96xf32> to vector<52x8xf32>
    %236 = vector.extract_strided_slice %179 {offsets = [0, 88], sizes = [52, 8], strides = [1, 1]} : vector<52x96xf32> to vector<52x8xf32>
    %cst_96 = arith.constant dense<0.000000e+00> : vector<52x52xf32>
    %237 = tpu.matmul %234, %235, %cst_96 {dimension_numbers = #tpu.dot_dimension_numbers<[1], [1], [0], [0], [0, 0, 1, 0], [], []>} : vector<52x8xf32>, vector<52x8xf32>, vector<52x52xf32> -> vector<52x52xf32>
    %cst_97 = arith.constant 0.353553385 : f32
    %238 = vector.broadcast %cst_97 : f32 to vector<52x52xf32>
    %239 = arith.mulf %237, %238 : vector<52x52xf32>
    %240 = arith.addf %239, %5 : vector<52x52xf32>
    %cst_98 = arith.constant dense<0xFF800000> : vector<52xf32>
    %241 = vector.multi_reduction <maximumf>, %240, %cst_98 [1] : vector<52x52xf32> to vector<52xf32>
    %242 = vector.shape_cast %241 : vector<52xf32> to vector<52x1xf32>
    %243 = vector.broadcast %242 : vector<52x1xf32> to vector<52x52xf32>
    %244 = arith.subf %240, %243 : vector<52x52xf32>
    %245 = math.exp %244 : vector<52x52xf32>
    %cst_99 = arith.constant dense<0.000000e+00> : vector<52xf32>
    %246 = vector.multi_reduction <add>, %245, %cst_99 [1] : vector<52x52xf32> to vector<52xf32>
    %247 = vector.shape_cast %246 : vector<52xf32> to vector<52x1xf32>
    %248 = tpu.reciprocal %247 {approx = true} : vector<52x1xf32> -> vector<52x1xf32>
    %249 = vector.broadcast %248 : vector<52x1xf32> to vector<52x52xf32>
    %250 = arith.mulf %245, %249 : vector<52x52xf32>
    %cst_100 = arith.constant dense<0.000000e+00> : vector<52x8xf32>
    %251 = tpu.matmul %250, %236, %cst_100 {dimension_numbers = #tpu.dot_dimension_numbers<[1], [0], [0], [1], [0, 0, 1, 1], [], []>} : vector<52x52xf32>, vector<52x8xf32>, vector<52x8xf32> -> vector<52x8xf32>
    %252 = tpu.concatenate %197, %215, %233, %251 in 1 : vector<52x8xf32>, vector<52x8xf32>, vector<52x8xf32>, vector<52x8xf32> -> vector<52x32xf32>
    %c1_101 = arith.constant 1 : index
    %c0_102 = arith.constant 0 : index
    %c0_103 = arith.constant 0 : index
    %253 = vector.load %arg7[%c1_101, %c0_102, %c0_103] : memref<2x32x32xf32, #tpu.memory_space<vmem>>, vector<1x32x32xf32>
    %254 = vector.shape_cast %253 : vector<1x32x32xf32> to vector<32x32xf32>
    %cst_104 = arith.constant dense<0.000000e+00> : vector<52x32xf32>
    %255 = tpu.matmul %252, %254, %cst_104 {dimension_numbers = #tpu.dot_dimension_numbers<[1], [0], [0], [1], [0, 0, 1, 1], [], []>} : vector<52x32xf32>, vector<32x32xf32>, vector<52x32xf32> -> vector<52x32xf32>
    %256 = arith.addf %154, %255 : vector<52x32xf32>
    %c1_105 = arith.constant 1 : index
    %c0_106 = arith.constant 0 : index
    %c0_107 = arith.constant 0 : index
    %257 = vector.load %arg8[%c1_105, %c0_106, %c0_107] : memref<2x1x32xf32, #tpu.memory_space<vmem>>, vector<1x1x32xf32>
    %258 = vector.shape_cast %257 : vector<1x1x32xf32> to vector<1x32xf32>
    %259 = vector.broadcast %258 : vector<1x32xf32> to vector<52x32xf32>
    %260 = arith.addf %256, %259 : vector<52x32xf32>
    %cst_108 = arith.constant dense<0.000000e+00> : vector<52xf32>
    %261 = vector.multi_reduction <add>, %260, %cst_108 [1] : vector<52x32xf32> to vector<52xf32>
    %262 = vector.shape_cast %261 : vector<52xf32> to vector<52x1xf32>
    %cst_109 = arith.constant 3.200000e+01 : f32
    %263 = vector.broadcast %cst_109 : f32 to vector<52x1xf32>
    %264 = arith.divf %262, %263 : vector<52x1xf32>
    %265 = vector.broadcast %264 : vector<52x1xf32> to vector<52x32xf32>
    %266 = arith.subf %260, %265 : vector<52x32xf32>
    %267 = arith.mulf %266, %266 : vector<52x32xf32>
    %cst_110 = arith.constant dense<0.000000e+00> : vector<52xf32>
    %268 = vector.multi_reduction <add>, %267, %cst_110 [1] : vector<52x32xf32> to vector<52xf32>
    %269 = vector.shape_cast %268 : vector<52xf32> to vector<52x1xf32>
    %cst_111 = arith.constant 3.200000e+01 : f32
    %270 = vector.broadcast %cst_111 : f32 to vector<52x1xf32>
    %271 = arith.divf %269, %270 : vector<52x1xf32>
    %272 = vector.broadcast %264 : vector<52x1xf32> to vector<52x32xf32>
    %273 = arith.subf %260, %272 : vector<52x32xf32>
    %cst_112 = arith.constant 9.99999974E-6 : f32
    %274 = vector.broadcast %cst_112 : f32 to vector<52x1xf32>
    %275 = arith.addf %271, %274 : vector<52x1xf32>
    %276 = math.rsqrt %275 : vector<52x1xf32>
    %277 = vector.broadcast %276 : vector<52x1xf32> to vector<52x32xf32>
    %278 = arith.mulf %273, %277 : vector<52x32xf32>
    %c1_113 = arith.constant 1 : index
    %c0_114 = arith.constant 0 : index
    %c0_115 = arith.constant 0 : index
    %279 = vector.load %arg9[%c1_113, %c0_114, %c0_115] : memref<2x32x64xf32, #tpu.memory_space<vmem>>, vector<1x32x64xf32>
    %280 = vector.shape_cast %279 : vector<1x32x64xf32> to vector<32x64xf32>
    %cst_116 = arith.constant dense<0.000000e+00> : vector<52x64xf32>
    %281 = tpu.matmul %278, %280, %cst_116 {dimension_numbers = #tpu.dot_dimension_numbers<[1], [0], [0], [1], [0, 0, 1, 1], [], []>} : vector<52x32xf32>, vector<32x64xf32>, vector<52x64xf32> -> vector<52x64xf32>
    %c1_117 = arith.constant 1 : index
    %c0_118 = arith.constant 0 : index
    %c0_119 = arith.constant 0 : index
    %282 = vector.load %arg10[%c1_117, %c0_118, %c0_119] : memref<2x1x64xf32, #tpu.memory_space<vmem>>, vector<1x1x64xf32>
    %283 = vector.shape_cast %282 : vector<1x1x64xf32> to vector<1x64xf32>
    %284 = vector.broadcast %283 : vector<1x64xf32> to vector<52x64xf32>
    %285 = arith.addf %281, %284 : vector<52x64xf32>
    %cst_120 = arith.constant 5.000000e-01 : f32
    %286 = vector.broadcast %cst_120 : f32 to vector<52x64xf32>
    %287 = arith.mulf %286, %285 : vector<52x64xf32>
    %cst_121 = arith.constant 0.707106769 : f32
    %288 = vector.broadcast %cst_121 : f32 to vector<52x64xf32>
    %289 = arith.mulf %285, %288 : vector<52x64xf32>
    %290 = math.erf %289 : vector<52x64xf32>
    %cst_122 = arith.constant 1.000000e+00 : f32
    %291 = vector.broadcast %cst_122 : f32 to vector<52x64xf32>
    %292 = arith.addf %291, %290 : vector<52x64xf32>
    %293 = arith.mulf %287, %292 : vector<52x64xf32>
    %c1_123 = arith.constant 1 : index
    %c0_124 = arith.constant 0 : index
    %c0_125 = arith.constant 0 : index
    %294 = vector.load %arg11[%c1_123, %c0_124, %c0_125] : memref<2x64x32xf32, #tpu.memory_space<vmem>>, vector<1x64x32xf32>
    %295 = vector.shape_cast %294 : vector<1x64x32xf32> to vector<64x32xf32>
    %cst_126 = arith.constant dense<0.000000e+00> : vector<52x32xf32>
    %296 = tpu.matmul %293, %295, %cst_126 {dimension_numbers = #tpu.dot_dimension_numbers<[1], [0], [0], [1], [0, 0, 1, 1], [], []>} : vector<52x64xf32>, vector<64x32xf32>, vector<52x32xf32> -> vector<52x32xf32>
    %297 = arith.addf %260, %296 : vector<52x32xf32>
    %c1_127 = arith.constant 1 : index
    %c0_128 = arith.constant 0 : index
    %c0_129 = arith.constant 0 : index
    %298 = vector.load %arg12[%c1_127, %c0_128, %c0_129] : memref<2x1x32xf32, #tpu.memory_space<vmem>>, vector<1x1x32xf32>
    %299 = vector.shape_cast %298 : vector<1x1x32xf32> to vector<1x32xf32>
    %300 = vector.broadcast %299 : vector<1x32xf32> to vector<52x32xf32>
    %301 = arith.addf %297, %300 : vector<52x32xf32>
    %cst_130 = arith.constant dense<0.000000e+00> : vector<52xf32>
    %302 = vector.multi_reduction <add>, %301, %cst_130 [1] : vector<52x32xf32> to vector<52xf32>
    %303 = vector.shape_cast %302 : vector<52xf32> to vector<52x1xf32>
    %cst_131 = arith.constant 3.200000e+01 : f32
    %304 = vector.broadcast %cst_131 : f32 to vector<52x1xf32>
    %305 = arith.divf %303, %304 : vector<52x1xf32>
    %306 = vector.broadcast %305 : vector<52x1xf32> to vector<52x32xf32>
    %307 = arith.subf %301, %306 : vector<52x32xf32>
    %308 = arith.mulf %307, %307 : vector<52x32xf32>
    %cst_132 = arith.constant dense<0.000000e+00> : vector<52xf32>
    %309 = vector.multi_reduction <add>, %308, %cst_132 [1] : vector<52x32xf32> to vector<52xf32>
    %310 = vector.shape_cast %309 : vector<52xf32> to vector<52x1xf32>
    %cst_133 = arith.constant 3.200000e+01 : f32
    %311 = vector.broadcast %cst_133 : f32 to vector<52x1xf32>
    %312 = arith.divf %310, %311 : vector<52x1xf32>
    %313 = vector.broadcast %305 : vector<52x1xf32> to vector<52x32xf32>
    %314 = arith.subf %301, %313 : vector<52x32xf32>
    %cst_134 = arith.constant 9.99999974E-6 : f32
    %315 = vector.broadcast %cst_134 : f32 to vector<52x1xf32>
    %316 = arith.addf %312, %315 : vector<52x1xf32>
    %317 = math.rsqrt %316 : vector<52x1xf32>
    %318 = vector.broadcast %317 : vector<52x1xf32> to vector<52x32xf32>
    %319 = arith.mulf %314, %318 : vector<52x32xf32>
    %c0_135 = arith.constant 0 : index
    %c0_136 = arith.constant 0 : index
    %320 = vector.load %arg13[%c0_135, %c0_136] : memref<32x8xf32, #tpu.memory_space<vmem>>, vector<32x8xf32>
    %cst_137 = arith.constant dense<0.000000e+00> : vector<52x8xf32>
    %321 = tpu.matmul %319, %320, %cst_137 {dimension_numbers = #tpu.dot_dimension_numbers<[1], [0], [0], [1], [0, 0, 1, 1], [], []>} : vector<52x32xf32>, vector<32x8xf32>, vector<52x8xf32> -> vector<52x8xf32>
    %c0_138 = arith.constant 0 : index
    %c0_139 = arith.constant 0 : index
    %322 = vector.load %arg14[%c0_138, %c0_139] : memref<1x8xf32, #tpu.memory_space<vmem>>, vector<1x8xf32>
    %323 = vector.broadcast %322 : vector<1x8xf32> to vector<52x8xf32>
    %324 = arith.addf %321, %323 : vector<52x8xf32>
    %325 = tpu.iota {dimensions = array<i32: 1>} : vector<52x8xi32>
    %c2_i32 = arith.constant 2 : i32
    %326 = vector.broadcast %c2_i32 : i32 to vector<52x8xi32>
    %327 = arith.cmpi slt, %325, %326 : vector<52x8xi32>
    %328 = arith.negf %324 : vector<52x8xf32>
    %329 = math.exp %328 : vector<52x8xf32>
    %cst_140 = arith.constant 1.000000e+00 : f32
    %330 = vector.broadcast %cst_140 : f32 to vector<52x8xf32>
    %331 = arith.addf %330, %329 : vector<52x8xf32>
    %332 = arith.divf %330, %331 : vector<52x8xf32>
    %cst_141 = arith.constant 2.000000e+00 : f32
    %333 = vector.broadcast %cst_141 : f32 to vector<52x8xf32>
    %334 = arith.mulf %333, %332 : vector<52x8xf32>
    %cst_142 = arith.constant 1.000000e+00 : f32
    %335 = vector.broadcast %cst_142 : f32 to vector<52x8xf32>
    %336 = arith.subf %334, %335 : vector<52x8xf32>
    %337 = arith.select %327, %336, %324 : vector<52x8xi1>, vector<52x8xf32>
    %c0_143 = arith.constant 0 : index
    %c0_144 = arith.constant 0 : index
    %338 = vector.load %arg15[%c0_143, %c0_144] : memref<52x8xf32, #tpu.memory_space<vmem>>, vector<52x8xf32>
    tpu.vector_store %arg15[%c0_143, %c0_144], %337 {strides = array<i32>} : memref<52x8xf32, #tpu.memory_space<vmem>>, vector<52x8xf32>,
    return
  }
}

</mosaic_0001>

<llo_original>
// kernel: tokenpose_forward.1
$region0: #{tokenpose_forward.1}
  #allocation0 [shape = 'u32[]', space=smem, size = 0x4, offset = 0x4, fixed_abs, tag = 'smem constant byte address 0x4 - core index']
  #allocation1 [shape = 'u32[144,128]{1,0:T(1,128)}', space=vmem, size = 0x12000, scoped, tag = 'internal scratch']
  %s0 = inlined_call_operand.vmem [shape: f32[52,64], index: 0, kind: input, shape index: {}]
  %s1 = inlined_call_operand.vmem [shape: f32[52,32], index: 1, kind: input, shape index: {}]
  %s2 = inlined_call_operand.vmem [shape: f32[52,32], index: 2, kind: input, shape index: {}]
  %s3 = inlined_call_operand.vmem [shape: f32[52,52], index: 3, kind: input, shape index: {}]
  %s4 = inlined_call_operand.vmem [shape: f32[64,32], index: 4, kind: input, shape index: {}]
  %s5 = inlined_call_operand.vmem [shape: f32[2,32,96], index: 5, kind: input, shape index: {}]
  %s6 = inlined_call_operand.vmem [shape: f32[2,1,96], index: 6, kind: input, shape index: {}]
  %s7 = inlined_call_operand.vmem [shape: f32[2,32,32], index: 7, kind: input, shape index: {}]
  %s8 = inlined_call_operand.vmem [shape: f32[2,1,32], index: 8, kind: input, shape index: {}]
  %s9 = inlined_call_operand.vmem [shape: f32[2,32,64], index: 9, kind: input, shape index: {}]
  %s10 = inlined_call_operand.vmem [shape: f32[2,1,64], index: 10, kind: input, shape index: {}]
  %s11 = inlined_call_operand.vmem [shape: f32[2,64,32], index: 11, kind: input, shape index: {}]
  %s12 = inlined_call_operand.vmem [shape: f32[2,1,32], index: 12, kind: input, shape index: {}]
  %s13 = inlined_call_operand.vmem [shape: f32[32,8], index: 13, kind: input, shape index: {}]
  %s14 = inlined_call_operand.vmem [shape: f32[1,8], index: 14, kind: input, shape index: {}]
  %s15 = inlined_call_operand.vmem [shape: f32[52,8], index: 15, kind: output, shape index: {}]
  %s16 = sld [smem:[#allocation0]]
  $region70: #{tokenpose_forward.1} parent=0
    _
  %s18 = ssub.s32 1, %s16
  %s19 = scalar_select 0, %s18, %s16
  // Predicated region
  $region2: #{tokenpose_forward.1} parent=0 // pred_check
    _
  $region3: #{tokenpose_forward.1} parent=0 // pred_check_branch
    %21 = sbr.rel (0) target = $region5
  $region4: #{tokenpose_forward.1} parent=0 // pred_region
    _
  $region5: #{tokenpose_forward.1} parent=0 // pred_fallthru
    _
  // Predicated region
  $region6: #{tokenpose_forward.1} parent=0 // pred_check
    _
  $region7: #{tokenpose_forward.1} parent=0 // pred_check_branch
    %23 = sbr.rel (0) target = $region9
  $region8: #{tokenpose_forward.1} parent=0 // pred_region
    _
  $region9: #{tokenpose_forward.1} parent=0 // pred_fallthru
    _
  // Predicated region
  $region10: #{tokenpose_forward.1} parent=0 // pred_check
    _
  $region11: #{tokenpose_forward.1} parent=0 // pred_check_branch
    %25 = sbr.rel (0) target = $region13
  $region12: #{tokenpose_forward.1} parent=0 // pred_region
    _
  $region13: #{tokenpose_forward.1} parent=0 // pred_fallthru
    _
  // Predicated region
  $region14: #{tokenpose_forward.1} parent=0 // pred_check
    _
  $region15: #{tokenpose_forward.1} parent=0 // pred_check_branch
    %27 = sbr.rel (0) target = $region17
  $region16: #{tokenpose_forward.1} parent=0 // pred_region
    _
  $region17: #{tokenpose_forward.1} parent=0 // pred_fallthru
    _
  // Predicated region
  $region18: #{tokenpose_forward.1} parent=0 // pred_check
    _
  $region19: #{tokenpose_forward.1} parent=0 // pred_check_branch
    %29 = sbr.rel (0) target = $region21
  $region20: #{tokenpose_forward.1} parent=0 // pred_region
    _
  $region21: #{tokenpose_forward.1} parent=0 // pred_fallthru
    _
  // Predicated region
  $region22: #{tokenpose_forward.1} parent=0 // pred_check
    _
  $region23: #{tokenpose_forward.1} parent=0 // pred_check_branch
    %31 = sbr.rel (0) target = $region25
  $region24: #{tokenpose_forward.1} parent=0 // pred_region
    _
  $region25: #{tokenpose_forward.1} parent=0 // pred_fallthru
    _
  // Predicated region
  $region26: #{tokenpose_forward.1} parent=0 // pred_check
    _
  $region27: #{tokenpose_forward.1} parent=0 // pred_check_branch
    %33 = sbr.rel (0) target = $region29
  $region28: #{tokenpose_forward.1} parent=0 // pred_region
    _
  $region29: #{tokenpose_forward.1} parent=0 // pred_fallthru
    _
  // Predicated region
  $region30: #{tokenpose_forward.1} parent=0 // pred_check
    _
  $region31: #{tokenpose_forward.1} parent=0 // pred_check_branch
    %35 = sbr.rel (0) target = $region33
  $region32: #{tokenpose_forward.1} parent=0 // pred_region
    _
  $region33: #{tokenpose_forward.1} parent=0 // pred_fallthru
    _
  // Predicated region
  $region34: #{tokenpose_forward.1} parent=0 // pred_check
    _
  $region35: #{tokenpose_forward.1} parent=0 // pred_check_branch
    %37 = sbr.rel (0) target = $region37
  $region36: #{tokenpose_forward.1} parent=0 // pred_region
    _
  $region37: #{tokenpose_forward.1} parent=0 // pred_fallthru
    _
  // Predicated region
  $region38: #{tokenpose_forward.1} parent=0 // pred_check
    _
  $region39: #{tokenpose_forward.1} parent=0 // pred_check_branch
    %39 = sbr.rel (0) target = $region41
  $region40: #{tokenpose_forward.1} parent=0 // pred_region
    _
  $region41: #{tokenpose_forward.1} parent=0 // pred_fallthru
    _
  // Predicated region
  $region42: #{tokenpose_forward.1} parent=0 // pred_check
    _
  $region43: #{tokenpose_forward.1} parent=0 // pred_check_branch
    %41 = sbr.rel (0) target = $region45
  $region44: #{tokenpose_forward.1} parent=0 // pred_region
    _
  $region45: #{tokenpose_forward.1} parent=0 // pred_fallthru
    _
  // Predicated region
  $region46: #{tokenpose_forward.1} parent=0 // pred_check
    _
  $region47: #{tokenpose_forward.1} parent=0 // pred_check_branch
    %43 = sbr.rel (0) target = $region49
  $region48: #{tokenpose_forward.1} parent=0 // pred_region
    _
  $region49: #{tokenpose_forward.1} parent=0 // pred_fallthru
    _
  // Predicated region
  $region50: #{tokenpose_forward.1} parent=0 // pred_check
    _
  $region51: #{tokenpose_forward.1} parent=0 // pred_check_branch
    %45 = sbr.rel (0) target = $region53
  $region52: #{tokenpose_forward.1} parent=0 // pred_region
    _
  $region53: #{tokenpose_forward.1} parent=0 // pred_fallthru
    _
  // Predicated region
  $region54: #{tokenpose_forward.1} parent=0 // pred_check
    _
  $region55: #{tokenpose_forward.1} parent=0 // pred_check_branch
    %47 = sbr.rel (0) target = $region57
  $region56: #{tokenpose_forward.1} parent=0 // pred_region
    _
  $region57: #{tokenpose_forward.1} parent=0 // pred_fallthru
    _
  // Predicated region
  $region58: #{tokenpose_forward.1} parent=0 // pred_check
    _
  $region59: #{tokenpose_forward.1} parent=0 // pred_check_branch
    %49 = sbr.rel (0) target = $region61
  $region60: #{tokenpose_forward.1} parent=0 // pred_region
    _
  $region61: #{tokenpose_forward.1} parent=0 // pred_fallthru
    _
  %v50 = vld [vmem:[%s1] sm:$0xff]
  %v51 = vld [vmem:[%s1 + $0x8] sm:$0xff]
  %v52 = vld [vmem:[%s1 + $0x10] sm:$0xff]
  %v53 = vld [vmem:[%s1 + $0x18] sm:$0xff]
  %v54 = vld [vmem:[%s1 + $0x20] sm:$0xff]
  %v55 = vld [vmem:[%s1 + $0x28] sm:$0xff]
  %v56 = vld [vmem:[%s1 + $0x30] sm:$0xf]
  %v57 = vld [vmem:[%s0] sm:$0xff]
  %v58 = vld [vmem:[%s0 + $0x8] sm:$0xff]
  %v59 = vld [vmem:[%s0 + $0x10] sm:$0xff]
  %v60 = vld [vmem:[%s0 + $0x18] sm:$0xff]
  %v61 = vld [vmem:[%s0 + $0x20] sm:$0xff]
  %v62 = vld [vmem:[%s0 + $0x28] sm:$0xff]
  %v63 = vld [vmem:[%s0 + $0x30] sm:$0xf]
  %v64 = vld [vmem:[%s4] sm:$0xff]
  %v65 = vld [vmem:[%s4 + $0x8] sm:$0xff]
  %v66 = vld [vmem:[%s4 + $0x10] sm:$0xff]
  %v67 = vld [vmem:[%s4 + $0x18] sm:$0xff]
  %v68 = vld [vmem:[%s4 + $0x20] sm:$0xff]
  %v69 = vld [vmem:[%s4 + $0x28] sm:$0xff]
  %v70 = vld [vmem:[%s4 + $0x30] sm:$0xff]
  %v71 = vld [vmem:[%s4 + $0x38] sm:$0xff]
  %vm72 = vcmask 523264
  %v74 = vsel %vm72, %v57, 0
  %v77 = vsel %vm72, %v58, 0
  %v80 = vsel %vm72, %v59, 0
  %v83 = vsel %vm72, %v60, 0
  %v86 = vsel %vm72, %v61, 0
  %v89 = vsel %vm72, %v62, 0
  %v92 = vsel %vm72, %v63, 0
  %94 = vmatprep.subr.mxu0 0.0
  %95 = vmatpush1.msra.mxu0 %v64
  %96 = vmatprep.subr.mxu0 0.0
  %97 = vmatpush1.msra.mxu0 %v65
  %98 = vmatprep.subr.mxu0 0.0
  %99 = vmatpush1.msra.mxu0 %v66
  %100 = vmatprep.subr.mxu0 0.0
  %101 = vmatpush1.msra.mxu0 %v67
  %102 = vmatprep.subr.mxu0 0.0
  %103 = vmatpush1.msra.mxu0 %v68
  %104 = vmatprep.subr.mxu0 0.0
  %105 = vmatpush1.msra.mxu0 %v69
  %106 = vmatprep.subr.mxu0 0.0
  %107 = vmatpush1.msra.mxu0 %v70
  %108 = vmatprep.subr.mxu0 0.0
  %109 = vmatpush1.msra.mxu0 %v71
  %110 = vmatprep.subr.mxu0 0.0
  %111 = vmatpush1.msra.mxu0 0.0
  %112 = vmatprep.subr.mxu0 0.0
  %113 = vmatpush1.msra.mxu0 0.0
  %114 = vmatprep.subr.mxu0 0.0
  %115 = vmatpush1.msra.mxu0 0.0
  %116 = vmatprep.subr.mxu0 0.0
  %117 = vmatpush1.msra.mxu0 0.0
  %118 = vmatprep.subr.mxu0 0.0
  %119 = vmatpush1.msra.mxu0 0.0
  %120 = vmatprep.subr.mxu0 0.0
  %121 = vmatpush1.msra.mxu0 0.0
  %122 = vmatprep.subr.mxu0 0.0
  %123 = vmatpush1.msra.mxu0 0.0
  %124 = vmatprep.subr.mxu0 0.0
  %125 = vmatpush1.msra.mxu0 0.0
  %126 = vmatprep.subr.mxu0 0.0
  %127 = vmatpush1.msra.mxu0 0.0
  %128 = vmatprep.subr.mxu0 0.0
  %129 = vmatpush1.msra.mxu0 0.0
  %130 = vmatprep.subr.mxu0 0.0
  %131 = vmatpush1.msra.mxu0 0.0
  %132 = vmatprep.subr.mxu0 0.0
  %133 = vmatpush1.msra.mxu0 0.0
  %134 = vmatprep.subr.mxu0 0.0
  %135 = vmatpush1.msra.mxu0 0.0
  %136 = vmatprep.subr.mxu0 0.0
  %137 = vmatpush1.msra.mxu0 0.0
  %138 = vmatprep.subr.mxu0 0.0
  %139 = vmatpush1.msra.mxu0 0.0
  %140 = vmatprep.subr.mxu0 0.0
  %141 = vmatpush1.msra.mxu0 0.0
  %142 = vmatprep.subr.mxu0 0.0
  %143 = vmatpush1.msra.mxu0 0.0
  %144 = vmatprep.subr.mxu0 0.0
  %145 = vmatpush1.msra.mxu0 0.0
  %146 = vmatprep.subr.mxu0 0.0
  %147 = vmatpush1.msra.mxu0 0.0
  %148 = vmatprep.subr.mxu0 0.0
  %149 = vmatpush1.msra.mxu0 0.0
  %150 = vmatprep.subr.mxu0 0.0
  %151 = vmatpush1.msra.mxu0 0.0
  %152 = vmatprep.subr.mxu0 0.0
  %153 = vmatpush1.msra.mxu0 0.0
  %154 = vmatprep.subr.mxu0 0.0
  %155 = vmatpush1.msra.mxu0 0.0
  %156 = vmatprep.subr.mxu0 0.0
  %157 = vmatpush1.msra.mxu0 0.0
  %158 = vmatprep.mubr.f32.mxu0 0.0
  %159 = vmatmul.mubr.f32.gmra.mrb[0].mxu0 %v74
  %v160 = vpop.f32.mrb[0].mxu0
  %v161 = vadd.f32 0.0, %v160
  %v162 = vpop.f32.mrb[0].mxu0
  %163 = vmatprep.mubr.f32.mxu0 0.0
  %164 = vmatmul.mubr.f32.gmra.mrb[0].mxu0 %v77
  %v165 = vpop.f32.mrb[0].mxu0
  %v166 = vadd.f32 0.0, %v165
  %v167 = vpop.f32.mrb[0].mxu0
  %168 = vmatprep.mubr.f32.mxu0 0.0
  %169 = vmatmul.mubr.f32.gmra.mrb[0].mxu0 %v80
  %v170 = vpop.f32.mrb[0].mxu0
  %v171 = vadd.f32 0.0, %v170
  %v172 = vpop.f32.mrb[0].mxu0
  %173 = vmatprep.mubr.f32.mxu0 0.0
  %174 = vmatmul.mubr.f32.gmra.mrb[0].mxu0 %v83
  %v175 = vpop.f32.mrb[0].mxu0
  %v176 = vadd.f32 0.0, %v175
  %v177 = vpop.f32.mrb[0].mxu0
  %178 = vmatprep.mubr.f32.mxu0 0.0
  %179 = vmatmul.mubr.f32.gmra.mrb[0].mxu0 %v86
  %v180 = vpop.f32.mrb[0].mxu0
  %v181 = vadd.f32 0.0, %v180
  %v182 = vpop.f32.mrb[0].mxu0
  %183 = vmatprep.mubr.f32.mxu0 0.0
  %184 = vmatmul.mubr.f32.gmra.mrb[0].mxu0 %v89
  %v185 = vpop.f32.mrb[0].mxu0
  %v186 = vadd.f32 0.0, %v185
  %v187 = vpop.f32.mrb[0].mxu0
  %188 = vmatprep.mubr.f32.mxu0 0.0
  %189 = vmatmul.mubr.f32.gmra.mrb[0].mxu0 %v92
  %v190 = vpop.f32.mrb[0].mxu0
  %v191 = vadd.f32 0.0, %v190
  %v192 = vpop.f32.mrb[0].mxu0
  %193 = vdwg.mxu0
  %v194 = vadd.f32 %v50, %v161
  %v195 = vadd.f32 %v51, %v166
  %v196 = vadd.f32 %v52, %v171
  %v197 = vadd.f32 %v53, %v176
  %v198 = vadd.f32 %v54, %v181
  %v199 = vadd.f32 %v55, %v186
  %v200 = vadd.f32 %v56, %v191
  %v201 = vld [vmem:[%s3] sm:$0xff]
  %v202 = vld [vmem:[%s3 + $0x8] sm:$0xff]
  %v203 = vld [vmem:[%s3 + $0x10] sm:$0xff]
  %v204 = vld [vmem:[%s3 + $0x18] sm:$0xff]
  %v205 = vld [vmem:[%s3 + $0x20] sm:$0xff]
  %v206 = vld [vmem:[%s3 + $0x28] sm:$0xff]
  %v207 = vld [vmem:[%s3 + $0x30] sm:$0xf]
  %v208 = vld [vmem:[%s2] sm:$0xff]
  %v209 = vld [vmem:[%s2 + $0x8] sm:$0xff]
  %v210 = vld [vmem:[%s2 + $0x10] sm:$0xff]
  %v211 = vld [vmem:[%s2 + $0x18] sm:$0xff]
  %v212 = vld [vmem:[%s2 + $0x20] sm:$0xff]
  %v213 = vld [vmem:[%s2 + $0x28] sm:$0xff]
  %v214 = vld [vmem:[%s2 + $0x30] sm:$0xf]
  %vm215 = vcmask 261120
  %v216 = vsel %vm215, %v194, 0.0
  %217 = vadd.xlane.f32.xlu0 %v216
  %v218 = vpop.xlane.xlu0 %217
  %v219 = vsel %vm215, %v195, 0.0
  %220 = vadd.xlane.f32.xlu0 %v219
  %v221 = vpop.xlane.xlu0 %220
  %v222 = vsel %vm215, %v196, 0.0
  %223 = vadd.xlane.f32.xlu0 %v222
  %v224 = vpop.xlane.xlu0 %223
  %v225 = vsel %vm215, %v197, 0.0
  %226 = vadd.xlane.f32.xlu0 %v225
  %v227 = vpop.xlane.xlu0 %226
  %v228 = vsel %vm215, %v198, 0.0
  %229 = vadd.xlane.f32.xlu0 %v228
  %v230 = vpop.xlane.xlu0 %229
  %v231 = vsel %vm215, %v199, 0.0
  %232 = vadd.xlane.f32.xlu0 %v231
  %v233 = vpop.xlane.xlu0 %232
  %vm234 = vcmask 257024
  %v235 = vsel %vm234, %v200, 0.0
  %236 = vadd.xlane.f32.xlu0 %v235
  %v237 = vpop.xlane.xlu0 %236
  %v238 = vrcp.pop 32.0
  %v239 = vmul.f32 %v218, %v238
  %v240 = vmul.f32 %v221, %v238
  %v241 = vmul.f32 %v224, %v238
  %v242 = vmul.f32 %v227, %v238
  %v243 = vmul.f32 %v230, %v238
  %v244 = vmul.f32 %v233, %v238
  %v245 = vmul.f32 %v237, %v238
  %v246 = vsub.f32 %v194, %v239
  %v247 = vsub.f32 %v195, %v240
  %v248 = vsub.f32 %v196, %v241
  %v249 = vsub.f32 %v197, %v242
  %v250 = vsub.f32 %v198, %v243
  %v251 = vsub.f32 %v199, %v244
  %v252 = vsub.f32 %v200, %v245
  %v253 = vmul.f32 %v246, %v246
  %v254 = vmul.f32 %v247, %v247
  %v255 = vmul.f32 %v248, %v248
  %v256 = vmul.f32 %v249, %v249
  %v257 = vmul.f32 %v250, %v250
  %v258 = vmul.f32 %v251, %v251
  %v259 = vmul.f32 %v252, %v252
  %v260 = vsel %vm215, %v253, 0.0
  %261 = vadd.xlane.f32.xlu0 %v260
  %v262 = vpop.xlane.xlu0 %261
  %v263 = vsel %vm215, %v254, 0.0
  %264 = vadd.xlane.f32.xlu0 %v263
  %v265 = vpop.xlane.xlu0 %264
  %v266 = vsel %vm215, %v255, 0.0
  %267 = vadd.xlane.f32.xlu0 %v266
  %v268 = vpop.xlane.xlu0 %267
  %v269 = vsel %vm215, %v256, 0.0
  %270 = vadd.xlane.f32.xlu0 %v269
  %v271 = vpop.xlane.xlu0 %270
  %v272 = vsel %vm215, %v257, 0.0
  %273 = vadd.xlane.f32.xlu0 %v272
  %v274 = vpop.xlane.xlu0 %273
  %v275 = vsel %vm215, %v258, 0.0
  %276 = vadd.xlane.f32.xlu0 %v275
  %v277 = vpop.xlane.xlu0 %276
  %v278 = vsel %vm234, %v259, 0.0
  %279 = vadd.xlane.f32.xlu0 %v278
  %v280 = vpop.xlane.xlu0 %279
  %v281 = vmul.f32 %v262, %v238
  %v282 = vmul.f32 %v265, %v238
  %v283 = vmul.f32 %v268, %v238
  %v284 = vmul.f32 %v271, %v238
  %v285 = vmul.f32 %v274, %v238
  %v286 = vmul.f32 %v277, %v238
  %v287 = vmul.f32 %v280, %v238
  %v288 = vadd.f32 %v281, 1e-05
  %v289 = vadd.f32 %v282, 1e-05
  %v290 = vadd.f32 %v283, 1e-05
  %v291 = vadd.f32 %v284, 1e-05
  %v292 = vadd.f32 %v285, 1e-05
  %v293 = vadd.f32 %v286, 1e-05
  %v294 = vadd.f32 %v287, 1e-05
  %v295 = vrsqrt.pop %v288
  %v296 = vrsqrt.pop %v289
  %v297 = vrsqrt.pop %v290
  %v298 = vrsqrt.pop %v291
  %v299 = vrsqrt.pop %v292
  %v300 = vrsqrt.pop %v293
  %v301 = vrsqrt.pop %v294
  %v302 = vmul.f32 %v246, %v295
  %v303 = vmul.f32 %v247, %v296
  %v304 = vmul.f32 %v248, %v297
  %v305 = vmul.f32 %v249, %v298
  %v306 = vmul.f32 %v250, %v299
  %v307 = vmul.f32 %v251, %v300
  %v308 = vmul.f32 %v252, %v301
  %v309 = vld [vmem:[%s5] sm:$0xff]
  %v310 = vld [vmem:[%s5 + $0x8] sm:$0xff]
  %v311 = vld [vmem:[%s5 + $0x10] sm:$0xff]
  %v312 = vld [vmem:[%s5 + $0x18] sm:$0xff]
  %v313 = vld [vmem:[%s6] sm:$0x1]
  %v315 = vlaneseq
  %v316 = vshrl.u32 %v315, 7
  %v317 = vsub.s32 0, %v316
  %v318 = vrot.slane %v313, %v317
  %v321 = vsel %vm215, %v302, 0
  %v324 = vsel %vm215, %v303, 0
  %v327 = vsel %vm215, %v304, 0
  %v330 = vsel %vm215, %v305, 0
  %v333 = vsel %vm215, %v306, 0
  %v336 = vsel %vm215, %v307, 0
  %v339 = vsel %vm215, %v308, 0
  %341 = vmatprep.subr.mxu0 0.0
  %342 = vmatpush1.msra.mxu0 %v309
  %343 = vmatprep.subr.mxu0 0.0
  %344 = vmatpush1.msra.mxu0 %v310
  %345 = vmatprep.subr.mxu0 0.0
  %346 = vmatpush1.msra.mxu0 %v311
  %347 = vmatprep.subr.mxu0 0.0
  %348 = vmatpush1.msra.mxu0 %v312
  %349 = vmatprep.subr.mxu0 0.0
  %350 = vmatpush1.msra.mxu0 0.0
  %351 = vmatprep.subr.mxu0 0.0
  %352 = vmatpush1.msra.mxu0 0.0
  %353 = vmatprep.subr.mxu0 0.0
  %354 = vmatpush1.msra.mxu0 0.0
  %355 = vmatprep.subr.mxu0 0.0
  %356 = vmatpush1.msra.mxu0 0.0
  %357 = vmatprep.subr.mxu0 0.0
  %358 = vmatpush1.msra.mxu0 0.0
  %359 = vmatprep.subr.mxu0 0.0
  %360 = vmatpush1.msra.mxu0 0.0
  %361 = vmatprep.subr.mxu0 0.0
  %362 = vmatpush1.msra.mxu0 0.0
  %363 = vmatprep.subr.mxu0 0.0
  %364 = vmatpush1.msra.mxu0 0.0
  %365 = vmatprep.subr.mxu0 0.0
  %366 = vmatpush1.msra.mxu0 0.0
  %367 = vmatprep.subr.mxu0 0.0
  %368 = vmatpush1.msra.mxu0 0.0
  %369 = vmatprep.subr.mxu0 0.0
  %370 = vmatpush1.msra.mxu0 0.0
  %371 = vmatprep.subr.mxu0 0.0
  %372 = vmatpush1.msra.mxu0 0.0
  %373 = vmatprep.subr.mxu0 0.0
  %374 = vmatpush1.msra.mxu0 0.0
  %375 = vmatprep.subr.mxu0 0.0
  %376 = vmatpush1.msra.mxu0 0.0
  %377 = vmatprep.subr.mxu0 0.0
  %378 = vmatpush1.msra.mxu0 0.0
  %379 = vmatprep.subr.mxu0 0.0
  %380 = vmatpush1.msra.mxu0 0.0
  %381 = vmatprep.subr.mxu0 0.0
  %382 = vmatpush1.msra.mxu0 0.0
  %383 = vmatprep.subr.mxu0 0.0
  %384 = vmatpush1.msra.mxu0 0.0
  %385 = vmatprep.subr.mxu0 0.0
  %386 = vmatpush1.msra.mxu0 0.0
  %387 = vmatprep.subr.mxu0 0.0
  %388 = vmatpush1.msra.mxu0 0.0
  %389 = vmatprep.subr.mxu0 0.0
  %390 = vmatpush1.msra.mxu0 0.0
  %391 = vmatprep.subr.mxu0 0.0
  %392 = vmatpush1.msra.mxu0 0.0
  %393 = vmatprep.subr.mxu0 0.0
  %394 = vmatpush1.msra.mxu0 0.0
  %395 = vmatprep.subr.mxu0 0.0
  %396 = vmatpush1.msra.mxu0 0.0
  %397 = vmatprep.subr.mxu0 0.0
  %398 = vmatpush1.msra.mxu0 0.0
  %399 = vmatprep.subr.mxu0 0.0
  %400 = vmatpush1.msra.mxu0 0.0
  %401 = vmatprep.subr.mxu0 0.0
  %402 = vmatpush1.msra.mxu0 0.0
  %403 = vmatprep.subr.mxu0 0.0
  %404 = vmatpush1.msra.mxu0 0.0
  %405 = vmatprep.mubr.f32.mxu0 0.0
  %406 = vmatmul.mubr.f32.gmra.mrb[0].mxu0 %v321
  %v407 = vpop.f32.mrb[0].mxu0
  %v408 = vadd.f32 %v318, %v407
  %v409 = vpop.f32.mrb[0].mxu0
  %410 = vmatprep.mubr.f32.mxu0 0.0
  %411 = vmatmul.mubr.f32.gmra.mrb[0].mxu0 %v324
  %v412 = vpop.f32.mrb[0].mxu0
  %v413 = vadd.f32 %v318, %v412
  %v414 = vpop.f32.mrb[0].mxu0
  %415 = vmatprep.mubr.f32.mxu0 0.0
  %416 = vmatmul.mubr.f32.gmra.mrb[0].mxu0 %v327
  %v417 = vpop.f32.mrb[0].mxu0
  %v418 = vadd.f32 %v318, %v417
  %v419 = vpop.f32.mrb[0].mxu0
  %420 = vmatprep.mubr.f32.mxu0 0.0
  %421 = vmatmul.mubr.f32.gmra.mrb[0].mxu0 %v330
  %v422 = vpop.f32.mrb[0].mxu0
  %v423 = vadd.f32 %v318, %v422
  %v424 = vpop.f32.mrb[0].mxu0
  %425 = vmatprep.mubr.f32.mxu0 0.0
  %426 = vmatmul.mubr.f32.gmra.mrb[0].mxu0 %v333
  %v427 = vpop.f32.mrb[0].mxu0
  %v428 = vadd.f32 %v318, %v427
  %v429 = vpop.f32.mrb[0].mxu0
  %430 = vmatprep.mubr.f32.mxu0 0.0
  %431 = vmatmul.mubr.f32.gmra.mrb[0].mxu0 %v336
  %v432 = vpop.f32.mrb[0].mxu0
  %v433 = vadd.f32 %v318, %v432
  %v434 = vpop.f32.mrb[0].mxu0
  %435 = vmatprep.mubr.f32.mxu0 0.0
  %436 = vmatmul.mubr.f32.gmra.mrb[0].mxu0 %v339
  %v437 = vpop.f32.mrb[0].mxu0
  %v438 = vadd.f32 %v318, %v437
  %v439 = vpop.f32.mrb[0].mxu0
  %440 = vdwg.mxu0
  %448 = vrot.lane.b32.xlu0 %v408, 96
  %v449 = vpop.permute.xlu0 %448
  %450 = vrot.lane.b32.xlu0 %v413, 96
  %v451 = vpop.permute.xlu0 %450
  %452 = vrot.lane.b32.xlu0 %v418, 96
  %v453 = vpop.permute.xlu0 %452
  %454 = vrot.lane.b32.xlu0 %v423, 96
  %v455 = vpop.permute.xlu0 %454
  %456 = vrot.lane.b32.xlu0 %v428, 96
  %v457 = vpop.permute.xlu0 %456
  %458 = vrot.lane.b32.xlu0 %v433, 96
  %v459 = vpop.permute.xlu0 %458
  %460 = vrot.lane.b32.xlu0 %v438, 96
  %v461 = vpop.permute.xlu0 %460
  %vm462 = vcmask 64512
  %v463 = vsel %vm462, %v408, 0
  %v465 = vsel %vm462, %v413, 0
  %v467 = vsel %vm462, %v418, 0
  %v469 = vsel %vm462, %v423, 0
  %v471 = vsel %vm462, %v428, 0
  %v473 = vsel %vm462, %v433, 0
  %v475 = vsel %vm462, %v438, 0
  %v477 = vsel %vm462, %v449, 0
  %v479 = vsel %vm462, %v451, 0
  %v481 = vsel %vm462, %v453, 0
  %v483 = vsel %vm462, %v455, 0
  %v485 = vsel %vm462, %v457, 0
  %v487 = vsel %vm462, %v459, 0
  %v489 = vsel %vm462, %v461, 0
  %491 = vmatprep.subr.mxu0 0.0
  %492 = vmatpush1.xpose.msra.mxu0 %v477
  %493 = vmatprep.subr.mxu0 0.0
  %494 = vmatpush1.xpose.msra.mxu0 %v479
  %495 = vmatprep.subr.mxu0 0.0
  %496 = vmatpush1.xpose.msra.mxu0 %v481
  %497 = vmatprep.subr.mxu0 0.0
  %498 = vmatpush1.xpose.msra.mxu0 %v483
  %499 = vmatprep.subr.mxu0 0.0
  %500 = vmatpush1.xpose.msra.mxu0 %v485
  %501 = vmatprep.subr.mxu0 0.0
  %502 = vmatpush1.xpose.msra.mxu0 %v487
  %503 = vmatprep.subr.mxu0 0.0
  %504 = vmatpush1.xpose.msra.mxu0 %v489
  %505 = vmatprep.subr.mxu0 0.0
  %506 = vmatpush1.xpose.msra.mxu0 0.0
  %507 = vmatprep.subr.mxu0 0.0
  %508 = vmatpush1.xpose.msra.mxu0 0.0
  %509 = vmatprep.subr.mxu0 0.0
  %510 = vmatpush1.xpose.msra.mxu0 0.0
  %511 = vmatprep.subr.mxu0 0.0
  %512 = vmatpush1.xpose.msra.mxu0 0.0
  %513 = vmatprep.subr.mxu0 0.0
  %514 = vmatpush1.xpose.msra.mxu0 0.0
  %515 = vmatprep.subr.mxu0 0.0
  %516 = vmatpush1.xpose.msra.mxu0 0.0
  %517 = vmatprep.subr.mxu0 0.0
  %518 = vmatpush1.xpose.msra.mxu0 0.0
  %519 = vmatprep.subr.mxu0 0.0
  %520 = vmatpush1.xpose.msra.mxu0 0.0
  %521 = vmatprep.subr.mxu0 0.0
  %522 = vmatpush1.xpose.msra.mxu0 0.0
  %523 = vmatprep.subr.mxu0 0.0
  %524 = vmatpush1.xpose.msra.mxu0 0.0
  %525 = vmatprep.subr.mxu0 0.0
  %526 = vmatpush1.xpose.msra.mxu0 0.0
  %527 = vmatprep.subr.mxu0 0.0
  %528 = vmatpush1.xpose.msra.mxu0 0.0
  %529 = vmatprep.subr.mxu0 0.0
  %530 = vmatpush1.xpose.msra.mxu0 0.0
  %531 = vmatprep.subr.mxu0 0.0
  %532 = vmatpush1.xpose.msra.mxu0 0.0
  %533 = vmatprep.subr.mxu0 0.0
  %534 = vmatpush1.xpose.msra.mxu0 0.0
  %535 = vmatprep.subr.mxu0 0.0
  %536 = vmatpush1.xpose.msra.mxu0 0.0
  %537 = vmatprep.subr.mxu0 0.0
  %538 = vmatpush1.xpose.msra.mxu0 0.0
  %539 = vmatprep.subr.mxu0 0.0
  %540 = vmatpush1.xpose.msra.mxu0 0.0
  %541 = vmatprep.subr.mxu0 0.0
  %542 = vmatpush1.xpose.msra.mxu0 0.0
  %543 = vmatprep.subr.mxu0 0.0
  %544 = vmatpush1.xpose.msra.mxu0 0.0
  %545 = vmatprep.subr.mxu0 0.0
  %546 = vmatpush1.xpose.msra.mxu0 0.0
  %547 = vmatprep.subr.mxu0 0.0
  %548 = vmatpush1.xpose.msra.mxu0 0.0
  %549 = vmatprep.subr.mxu0 0.0
  %550 = vmatpush1.xpose.msra.mxu0 0.0
  %551 = vmatprep.subr.mxu0 0.0
  %552 = vmatpush1.xpose.msra.mxu0 0.0
  %553 = vmatprep.subr.mxu0 0.0
  %554 = vmatpush1.xpose.msra.mxu0 0.0
  %555 = vmatprep.mubr.f32.mxu0 0.0
  %556 = vmatmul.mubr.f32.gmra.mrb[0].mxu0 %v463
  %v557 = vpop.f32.mrb[0].mxu0
  %v558 = vadd.f32 0.0, %v557
  %v559 = vpop.f32.mrb[0].mxu0
  %560 = vmatprep.mubr.f32.mxu0 0.0
  %561 = vmatmul.mubr.f32.gmra.mrb[0].mxu0 %v465
  %v562 = vpop.f32.mrb[0].mxu0
  %v563 = vadd.f32 0.0, %v562
  %v564 = vpop.f32.mrb[0].mxu0
  %565 = vmatprep.mubr.f32.mxu0 0.0
  %566 = vmatmul.mubr.f32.gmra.mrb[0].mxu0 %v467
  %v567 = vpop.f32.mrb[0].mxu0
  %v568 = vadd.f32 0.0, %v567
  %v569 = vpop.f32.mrb[0].mxu0
  %570 = vmatprep.mubr.f32.mxu0 0.0
  %571 = vmatmul.mubr.f32.gmra.mrb[0].mxu0 %v469
  %v572 = vpop.f32.mrb[0].mxu0
  %v573 = vadd.f32 0.0, %v572
  %v574 = vpop.f32.mrb[0].mxu0
  %575 = vmatprep.mubr.f32.mxu0 0.0
  %576 = vmatmul.mubr.f32.gmra.mrb[0].mxu0 %v471
  %v577 = vpop.f32.mrb[0].mxu0
  %v578 = vadd.f32 0.0, %v577
  %v579 = vpop.f32.mrb[0].mxu0
  %580 = vmatprep.mubr.f32.mxu0 0.0
  %581 = vmatmul.mubr.f32.gmra.mrb[0].mxu0 %v473
  %v582 = vpop.f32.mrb[0].mxu0
  %v583 = vadd.f32 0.0, %v582
  %v584 = vpop.f32.mrb[0].mxu0
  %585 = vmatprep.mubr.f32.mxu0 0.0
  %586 = vmatmul.mubr.f32.gmra.mrb[0].mxu0 %v475
  %v587 = vpop.f32.mrb[0].mxu0
  %v588 = vadd.f32 0.0, %v587
  %v589 = vpop.f32.mrb[0].mxu0
  %590 = vdwg.mxu0
  %v591 = vmul.f32 %v558, 0.35355338
  %v592 = vmul.f32 %v563, 0.35355338
  %v593 = vmul.f32 %v568, 0.35355338
  %v594 = vmul.f32 %v573, 0.35355338
  %v595 = vmul.f32 %v578, 0.35355338
  %v596 = vmul.f32 %v583, 0.35355338
  %v597 = vmul.f32 %v588, 0.35355338
  %v598 = vadd.f32 %v591, %v201
  %v599 = vadd.f32 %v592, %v202
  %v600 = vadd.f32 %v593, %v203
  %v601 = vadd.f32 %v594, %v204
  %v602 = vadd.f32 %v595, %v205
  %v603 = vadd.f32 %v596, %v206
  %v604 = vadd.f32 %v597, %v207
  %vm605 = vcmask 424960
  %v606 = vsel %vm605, %v598, -inf
  %607 = vmax.xlane.f32.xlu0 %v606
  %v608 = vpop.xlane.xlu0 %607
  %v609 = vsel %vm605, %v599, -inf
  %610 = vmax.xlane.f32.xlu0 %v609
  %v611 = vpop.xlane.xlu0 %610
  %v612 = vsel %vm605, %v600, -inf
  %613 = vmax.xlane.f32.xlu0 %v612
  %v614 = vpop.xlane.xlu0 %613
  %v615 = vsel %vm605, %v601, -inf
  %616 = vmax.xlane.f32.xlu0 %v615
  %v617 = vpop.xlane.xlu0 %616
  %v618 = vsel %vm605, %v602, -inf
  %619 = vmax.xlane.f32.xlu0 %v618
  %v620 = vpop.xlane.xlu0 %619
  %v621 = vsel %vm605, %v603, -inf
  %622 = vmax.xlane.f32.xlu0 %v621
  %v623 = vpop.xlane.xlu0 %622
  %vm624 = vcmask 420864
  %v625 = vsel %vm624, %v604, -inf
  %626 = vmax.xlane.f32.xlu0 %v625
  %v627 = vpop.xlane.xlu0 %626
  %v628 = vsub.f32 %v598, %v608
  %v629 = vsub.f32 %v599, %v611
  %v630 = vsub.f32 %v600, %v614
  %v631 = vsub.f32 %v601, %v617
  %v632 = vsub.f32 %v602, %v620
  %v633 = vsub.f32 %v603, %v623
  %v634 = vsub.f32 %v604, %v627
  %v635 = vmul.f32 %v628, 1.442695
  %v636 = vpow.pop %v635
  %v637 = vmul.f32 %v629, 1.442695
  %v638 = vpow.pop %v637
  %v639 = vmul.f32 %v630, 1.442695
  %v640 = vpow.pop %v639
  %v641 = vmul.f32 %v631, 1.442695
  %v642 = vpow.pop %v641
  %v643 = vmul.f32 %v632, 1.442695
  %v644 = vpow.pop %v643
  %v645 = vmul.f32 %v633, 1.442695
  %v646 = vpow.pop %v645
  %v647 = vmul.f32 %v634, 1.442695
  %v648 = vpow.pop %v647
  %v649 = vsel %vm605, %v636, 0.0
  %650 = vadd.xlane.f32.xlu0 %v649
  %v651 = vpop.xlane.xlu0 %650
  %v652 = vsel %vm605, %v638, 0.0
  %653 = vadd.xlane.f32.xlu0 %v652
  %v654 = vpop.xlane.xlu0 %653
  %v655 = vsel %vm605, %v640, 0.0
  %656 = vadd.xlane.f32.xlu0 %v655
  %v657 = vpop.xlane.xlu0 %656
  %v658 = vsel %vm605, %v642, 0.0
  %659 = vadd.xlane.f32.xlu0 %v658
  %v660 = vpop.xlane.xlu0 %659
  %v661 = vsel %vm605, %v644, 0.0
  %662 = vadd.xlane.f32.xlu0 %v661
  %v663 = vpop.xlane.xlu0 %662
  %v664 = vsel %vm605, %v646, 0.0
  %665 = vadd.xlane.f32.xlu0 %v664
  %v666 = vpop.xlane.xlu0 %665
  %v667 = vsel %vm624, %v648, 0.0
  %668 = vadd.xlane.f32.xlu0 %v667
  %v669 = vpop.xlane.xlu0 %668
  %v670 = vrcp.pop %v651
  %v671 = vrcp.pop %v654
  %v672 = vrcp.pop %v657
  %v673 = vrcp.pop %v660
  %v674 = vrcp.pop %v663
  %v675 = vrcp.pop %v666
  %v676 = vrcp.pop %v669
  %v677 = vmul.f32 %v636, %v670
  %v678 = vmul.f32 %v638, %v671
  %v679 = vmul.f32 %v640, %v672
  %v680 = vmul.f32 %v642, %v673
  %v681 = vmul.f32 %v644, %v674
  %v682 = vmul.f32 %v646, %v675
  %v683 = vmul.f32 %v648, %v676
  %684 = vrot.lane.b32.xlu0 %v408, 64
  %v685 = vpop.permute.xlu0 %684
  %686 = vrot.lane.b32.xlu0 %v413, 64
  %v687 = vpop.permute.xlu0 %686
  %688 = vrot.lane.b32.xlu0 %v418, 64
  %v689 = vpop.permute.xlu0 %688
  %690 = vrot.lane.b32.xlu0 %v423, 64
  %v691 = vpop.permute.xlu0 %690
  %692 = vrot.lane.b32.xlu0 %v428, 64
  %v693 = vpop.permute.xlu0 %692
  %694 = vrot.lane.b32.xlu0 %v433, 64
  %v695 = vpop.permute.xlu0 %694
  %696 = vrot.lane.b32.xlu0 %v438, 64
  %v697 = vpop.permute.xlu0 %696
  %v705 = vsel %vm605, %v677, 0
  %v708 = vsel %vm605, %v678, 0
  %v711 = vsel %vm605, %v679, 0
  %v714 = vsel %vm605, %v680, 0
  %v717 = vsel %vm605, %v681, 0
  %v720 = vsel %vm605, %v682, 0
  %v723 = vsel %vm605, %v683, 0
  %vm725 = vcmask 1043456
  %v726 = vsel %vm725, %v697, 0
  %728 = vmatprep.subr.mxu0 0.0
  %729 = vmatpush1.msra.mxu0 %v685
  %730 = vmatprep.subr.mxu0 0.0
  %731 = vmatpush1.msra.mxu0 %v687
  %732 = vmatprep.subr.mxu0 0.0
  %733 = vmatpush1.msra.mxu0 %v689
  %734 = vmatprep.subr.mxu0 0.0
  %735 = vmatpush1.msra.mxu0 %v691
  %736 = vmatprep.subr.mxu0 0.0
  %737 = vmatpush1.msra.mxu0 %v693
  %738 = vmatprep.subr.mxu0 0.0
  %739 = vmatpush1.msra.mxu0 %v695
  %740 = vmatprep.subr.mxu0 0.0
  %741 = vmatpush1.msra.mxu0 %v726
  %742 = vmatprep.subr.mxu0 0.0
  %743 = vmatpush1.msra.mxu0 0.0
  %744 = vmatprep.subr.mxu0 0.0
  %745 = vmatpush1.msra.mxu0 0.0
  %746 = vmatprep.subr.mxu0 0.0
  %747 = vmatpush1.msra.mxu0 0.0
  %748 = vmatprep.subr.mxu0 0.0
  %749 = vmatpush1.msra.mxu0 0.0
  %750 = vmatprep.subr.mxu0 0.0
  %751 = vmatpush1.msra.mxu0 0.0
  %752 = vmatprep.subr.mxu0 0.0
  %753 = vmatpush1.msra.mxu0 0.0
  %754 = vmatprep.subr.mxu0 0.0
  %755 = vmatpush1.msra.mxu0 0.0
  %756 = vmatprep.subr.mxu0 0.0
  %757 = vmatpush1.msra.mxu0 0.0
  %758 = vmatprep.subr.mxu0 0.0
  %759 = vmatpush1.msra.mxu0 0.0
  %760 = vmatprep.subr.mxu0 0.0
  %761 = vmatpush1.msra.mxu0 0.0
  %762 = vmatprep.subr.mxu0 0.0
  %763 = vmatpush1.msra.mxu0 0.0
  %764 = vmatprep.subr.mxu0 0.0
  %765 = vmatpush1.msra.mxu0 0.0
  %766 = vmatprep.subr.mxu0 0.0
  %767 = vmatpush1.msra.mxu0 0.0
  %768 = vmatprep.subr.mxu0 0.0
  %769 = vmatpush1.msra.mxu0 0.0
  %770 = vmatprep.subr.mxu0 0.0
  %771 = vmatpush1.msra.mxu0 0.0
  %772 = vmatprep.subr.mxu0 0.0
  %773 = vmatpush1.msra.mxu0 0.0
  %774 = vmatprep.subr.mxu0 0.0
  %775 = vmatpush1.msra.mxu0 0.0
  %776 = vmatprep.subr.mxu0 0.0
  %777 = vmatpush1.msra.mxu0 0.0
  %778 = vmatprep.subr.mxu0 0.0
  %779 = vmatpush1.msra.mxu0 0.0
  %780 = vmatprep.subr.mxu0 0.0
  %781 = vmatpush1.msra.mxu0 0.0
  %782 = vmatprep.subr.mxu0 0.0
  %783 = vmatpush1.msra.mxu0 0.0
  %784 = vmatprep.subr.mxu0 0.0
  %785 = vmatpush1.msra.mxu0 0.0
  %786 = vmatprep.subr.mxu0 0.0
  %787 = vmatpush1.msra.mxu0 0.0
  %788 = vmatprep.subr.mxu0 0.0
  %789 = vmatpush1.msra.mxu0 0.0
  %790 = vmatprep.subr.mxu0 0.0
  %791 = vmatpush1.msra.mxu0 0.0
  %792 = vmatprep.mubr.f32.mxu0 0.0
  %793 = vmatmul.mubr.f32.gmra.mrb[0].mxu0 %v705
  %v794 = vpop.f32.mrb[0].mxu0
  %v795 = vadd.f32 0.0, %v794
  %v796 = vpop.f32.mrb[0].mxu0
  %797 = vmatprep.mubr.f32.mxu0 0.0
  %798 = vmatmul.mubr.f32.gmra.mrb[0].mxu0 %v708
  %v799 = vpop.f32.mrb[0].mxu0
  %v800 = vadd.f32 0.0, %v799
  %v801 = vpop.f32.mrb[0].mxu0
  %802 = vmatprep.mubr.f32.mxu0 0.0
  %803 = vmatmul.mubr.f32.gmra.mrb[0].mxu0 %v711
  %v804 = vpop.f32.mrb[0].mxu0
  %v805 = vadd.f32 0.0, %v804
  %v806 = vpop.f32.mrb[0].mxu0
  %807 = vmatprep.mubr.f32.mxu0 0.0
  %808 = vmatmul.mubr.f32.gmra.mrb[0].mxu0 %v714
  %v809 = vpop.f32.mrb[0].mxu0
  %v810 = vadd.f32 0.0, %v809
  %v811 = vpop.f32.mrb[0].mxu0
  %812 = vmatprep.mubr.f32.mxu0 0.0
  %813 = vmatmul.mubr.f32.gmra.mrb[0].mxu0 %v717
  %v814 = vpop.f32.mrb[0].mxu0
  %v815 = vadd.f32 0.0, %v814
  %v816 = vpop.f32.mrb[0].mxu0
  %817 = vmatprep.mubr.f32.mxu0 0.0
  %818 = vmatmul.mubr.f32.gmra.mrb[0].mxu0 %v720
  %v819 = vpop.f32.mrb[0].mxu0
  %v820 = vadd.f32 0.0, %v819
  %v821 = vpop.f32.mrb[0].mxu0
  %822 = vmatprep.mubr.f32.mxu0 0.0
  %823 = vmatmul.mubr.f32.gmra.mrb[0].mxu0 %v723
  %v824 = vpop.f32.mrb[0].mxu0
  %v825 = vadd.f32 0.0, %v824
  %v826 = vpop.f32.mrb[0].mxu0
  %827 = vdwg.mxu0
  %828 = vrot.lane.b32.xlu0 %v408, 120
  %v829 = vpop.permute.xlu0 %828
  %830 = vrot.lane.b32.xlu0 %v413, 120
  %v831 = vpop.permute.xlu0 %830
  %832 = vrot.lane.b32.xlu0 %v418, 120
  %v833 = vpop.permute.xlu0 %832
  %834 = vrot.lane.b32.xlu0 %v423, 120
  %v835 = vpop.permute.xlu0 %834
  %836 = vrot.lane.b32.xlu0 %v428, 120
  %v837 = vpop.permute.xlu0 %836
  %838 = vrot.lane.b32.xlu0 %v433, 120
  %v839 = vpop.permute.xlu0 %838
  %840 = vrot.lane.b32.xlu0 %v438, 120
  %v841 = vpop.permute.xlu0 %840
  %842 = vrot.lane.b32.xlu0 %v408, 88
  %v843 = vpop.permute.xlu0 %842
  %844 = vrot.lane.b32.xlu0 %v413, 88
  %v845 = vpop.permute.xlu0 %844
  %846 = vrot.lane.b32.xlu0 %v418, 88
  %v847 = vpop.permute.xlu0 %846
  %848 = vrot.lane.b32.xlu0 %v423, 88
  %v849 = vpop.permute.xlu0 %848
  %850 = vrot.lane.b32.xlu0 %v428, 88
  %v851 = vpop.permute.xlu0 %850
  %852 = vrot.lane.b32.xlu0 %v433, 88
  %v853 = vpop.permute.xlu0 %852
  %854 = vrot.lane.b32.xlu0 %v438, 88
  %v855 = vpop.permute.xlu0 %854
  %v856 = vsel %vm462, %v829, 0
  %v858 = vsel %vm462, %v831, 0
  %v860 = vsel %vm462, %v833, 0
  %v862 = vsel %vm462, %v835, 0
  %v864 = vsel %vm462, %v837, 0
  %v866 = vsel %vm462, %v839, 0
  %v868 = vsel %vm462, %v841, 0
  %v870 = vsel %vm462, %v843, 0
  %v872 = vsel %vm462, %v845, 0
  %v874 = vsel %vm462, %v847, 0
  %v876 = vsel %vm462, %v849, 0
  %v878 = vsel %vm462, %v851, 0
  %v880 = vsel %vm462, %v853, 0
  %v882 = vsel %vm462, %v855, 0
  %884 = vmatprep.subr.mxu0 0.0
  %885 = vmatpush1.xpose.msra.mxu0 %v870
  %886 = vmatprep.subr.mxu0 0.0
  %887 = vmatpush1.xpose.msra.mxu0 %v872
  %888 = vmatprep.subr.mxu0 0.0
  %889 = vmatpush1.xpose.msra.mxu0 %v874
  %890 = vmatprep.subr.mxu0 0.0
  %891 = vmatpush1.xpose.msra.mxu0 %v876
  %892 = vmatprep.subr.mxu0 0.0
  %893 = vmatpush1.xpose.msra.mxu0 %v878
  %894 = vmatprep.subr.mxu0 0.0
  %895 = vmatpush1.xpose.msra.mxu0 %v880
  %896 = vmatprep.subr.mxu0 0.0
  %897 = vmatpush1.xpose.msra.mxu0 %v882
  %898 = vmatprep.subr.mxu0 0.0
  %899 = vmatpush1.xpose.msra.mxu0 0.0
  %900 = vmatprep.subr.mxu0 0.0
  %901 = vmatpush1.xpose.msra.mxu0 0.0
  %902 = vmatprep.subr.mxu0 0.0
  %903 = vmatpush1.xpose.msra.mxu0 0.0
  %904 = vmatprep.subr.mxu0 0.0
  %905 = vmatpush1.xpose.msra.mxu0 0.0
  %906 = vmatprep.subr.mxu0 0.0
  %907 = vmatpush1.xpose.msra.mxu0 0.0
  %908 = vmatprep.subr.mxu0 0.0
  %909 = vmatpush1.xpose.msra.mxu0 0.0
  %910 = vmatprep.subr.mxu0 0.0
  %911 = vmatpush1.xpose.msra.mxu0 0.0
  %912 = vmatprep.subr.mxu0 0.0
  %913 = vmatpush1.xpose.msra.mxu0 0.0
  %914 = vmatprep.subr.mxu0 0.0
  %915 = vmatpush1.xpose.msra.mxu0 0.0
  %916 = vmatprep.subr.mxu0 0.0
  %917 = vmatpush1.xpose.msra.mxu0 0.0
  %918 = vmatprep.subr.mxu0 0.0
  %919 = vmatpush1.xpose.msra.mxu0 0.0
  %920 = vmatprep.subr.mxu0 0.0
  %921 = vmatpush1.xpose.msra.mxu0 0.0
  %922 = vmatprep.subr.mxu0 0.0
  %923 = vmatpush1.xpose.msra.mxu0 0.0
  %924 = vmatprep.subr.mxu0 0.0
  %925 = vmatpush1.xpose.msra.mxu0 0.0
  %926 = vmatprep.subr.mxu0 0.0
  %927 = vmatpush1.xpose.msra.mxu0 0.0
  %928 = vmatprep.subr.mxu0 0.0
  %929 = vmatpush1.xpose.msra.mxu0 0.0
  %930 = vmatprep.subr.mxu0 0.0
  %931 = vmatpush1.xpose.msra.mxu0 0.0
  %932 = vmatprep.subr.mxu0 0.0
  %933 = vmatpush1.xpose.msra.mxu0 0.0
  %934 = vmatprep.subr.mxu0 0.0
  %935 = vmatpush1.xpose.msra.mxu0 0.0
  %936 = vmatprep.subr.mxu0 0.0
  %937 = vmatpush1.xpose.msra.mxu0 0.0
  %938 = vmatprep.subr.mxu0 0.0
  %939 = vmatpush1.xpose.msra.mxu0 0.0
  %940 = vmatprep.subr.mxu0 0.0
  %941 = vmatpush1.xpose.msra.mxu0 0.0
  %942 = vmatprep.subr.mxu0 0.0
  %943 = vmatpush1.xpose.msra.mxu0 0.0
  %944 = vmatprep.subr.mxu0 0.0
  %945 = vmatpush1.xpose.msra.mxu0 0.0
  %946 = vmatprep.subr.mxu0 0.0
  %947 = vmatpush1.xpose.msra.mxu0 0.0
  %948 = vmatprep.mubr.f32.mxu0 0.0
  %949 = vmatmul.mubr.f32.gmra.mrb[0].mxu0 %v856
  %v950 = vpop.f32.mrb[0].mxu0
  %v951 = vadd.f32 0.0, %v950
  %v952 = vpop.f32.mrb[0].mxu0
  %953 = vmatprep.mubr.f32.mxu0 0.0
  %954 = vmatmul.mubr.f32.gmra.mrb[0].mxu0 %v858
  %v955 = vpop.f32.mrb[0].mxu0
  %v956 = vadd.f32 0.0, %v955
  %v957 = vpop.f32.mrb[0].mxu0
  %958 = vmatprep.mubr.f32.mxu0 0.0
  %959 = vmatmul.mubr.f32.gmra.mrb[0].mxu0 %v860
  %v960 = vpop.f32.mrb[0].mxu0
  %v961 = vadd.f32 0.0, %v960
  %v962 = vpop.f32.mrb[0].mxu0
  %963 = vmatprep.mubr.f32.mxu0 0.0
  %964 = vmatmul.mubr.f32.gmra.mrb[0].mxu0 %v862
  %v965 = vpop.f32.mrb[0].mxu0
  %v966 = vadd.f32 0.0, %v965
  %v967 = vpop.f32.mrb[0].mxu0
  %968 = vmatprep.mubr.f32.mxu0 0.0
  %969 = vmatmul.mubr.f32.gmra.mrb[0].mxu0 %v864
  %v970 = vpop.f32.mrb[0].mxu0
  %v971 = vadd.f32 0.0, %v970
  %v972 = vpop.f32.mrb[0].mxu0
  %973 = vmatprep.mubr.f32.mxu0 0.0
  %974 = vmatmul.mubr.f32.gmra.mrb[0].mxu0 %v866
  %v975 = vpop.f32.mrb[0].mxu0
  %v976 = vadd.f32 0.0, %v975
  %v977 = vpop.f32.mrb[0].mxu0
  %978 = vmatprep.mubr.f32.mxu0 0.0
  %979 = vmatmul.mubr.f32.gmra.mrb[0].mxu0 %v868
  %v980 = vpop.f32.mrb[0].mxu0
  %v981 = vadd.f32 0.0, %v980
  %v982 = vpop.f32.mrb[0].mxu0
  %983 = vdwg.mxu0
  %v984 = vmul.f32 %v951, 0.35355338
  %v985 = vmul.f32 %v956, 0.35355338
  %v986 = vmul.f32 %v961, 0.35355338
  %v987 = vmul.f32 %v966, 0.35355338
  %v988 = vmul.f32 %v971, 0.35355338
  %v989 = vmul.f32 %v976, 0.35355338
  %v990 = vmul.f32 %v981, 0.35355338
  %v991 = vadd.f32 %v984, %v201
  %v992 = vadd.f32 %v985, %v202
  %v993 = vadd.f32 %v986, %v203
  %v994 = vadd.f32 %v987, %v204
  %v995 = vadd.f32 %v988, %v205
  %v996 = vadd.f32 %v989, %v206
  %v997 = vadd.f32 %v990, %v207
  %v998 = vsel %vm605, %v991, -inf
  %999 = vmax.xlane.f32.xlu0 %v998
  %v1000 = vpop.xlane.xlu0 %999
  %v1001 = vsel %vm605, %v992, -inf
  %1002 = vmax.xlane.f32.xlu0 %v1001
  %v1003 = vpop.xlane.xlu0 %1002
  %v1004 = vsel %vm605, %v993, -inf
  %1005 = vmax.xlane.f32.xlu0 %v1004
  %v1006 = vpop.xlane.xlu0 %1005
  %v1007 = vsel %vm605, %v994, -inf
  %1008 = vmax.xlane.f32.xlu0 %v1007
  %v1009 = vpop.xlane.xlu0 %1008
  %v1010 = vsel %vm605, %v995, -inf
  %1011 = vmax.xlane.f32.xlu0 %v1010
  %v1012 = vpop.xlane.xlu0 %1011
  %v1013 = vsel %vm605, %v996, -inf
  %1014 = vmax.xlane.f32.xlu0 %v1013
  %v1015 = vpop.xlane.xlu0 %1014
  %v1016 = vsel %vm624, %v997, -inf
  %1017 = vmax.xlane.f32.xlu0 %v1016
  %v1018 = vpop.xlane.xlu0 %1017
  %v1019 = vsub.f32 %v991, %v1000
  %v1020 = vsub.f32 %v992, %v1003
  %v1021 = vsub.f32 %v993, %v1006
  %v1022 = vsub.f32 %v994, %v1009
  %v1023 = vsub.f32 %v995, %v1012
  %v1024 = vsub.f32 %v996, %v1015
  %v1025 = vsub.f32 %v997, %v1018
  %v1026 = vmul.f32 %v1019, 1.442695
  %v1027 = vpow.pop %v1026
  %v1028 = vmul.f32 %v1020, 1.442695
  %v1029 = vpow.pop %v1028
  %v1030 = vmul.f32 %v1021, 1.442695
  %v1031 = vpow.pop %v1030
  %v1032 = vmul.f32 %v1022, 1.442695
  %v1033 = vpow.pop %v1032
  %v1034 = vmul.f32 %v1023, 1.442695
  %v1035 = vpow.pop %v1034
  %v1036 = vmul.f32 %v1024, 1.442695
  %v1037 = vpow.pop %v1036
  %v1038 = vmul.f32 %v1025, 1.442695
  %v1039 = vpow.pop %v1038
  %v1040 = vsel %vm605, %v1027, 0.0
  %1041 = vadd.xlane.f32.xlu0 %v1040
  %v1042 = vpop.xlane.xlu0 %1041
  %v1043 = vsel %vm605, %v1029, 0.0
  %1044 = vadd.xlane.f32.xlu0 %v1043
  %v1045 = vpop.xlane.xlu0 %1044
  %v1046 = vsel %vm605, %v1031, 0.0
  %1047 = vadd.xlane.f32.xlu0 %v1046
  %v1048 = vpop.xlane.xlu0 %1047
  %v1049 = vsel %vm605, %v1033, 0.0
  %1050 = vadd.xlane.f32.xlu0 %v1049
  %v1051 = vpop.xlane.xlu0 %1050
  %v1052 = vsel %vm605, %v1035, 0.0
  %1053 = vadd.xlane.f32.xlu0 %v1052
  %v1054 = vpop.xlane.xlu0 %1053
  %v1055 = vsel %vm605, %v1037, 0.0
  %1056 = vadd.xlane.f32.xlu0 %v1055
  %v1057 = vpop.xlane.xlu0 %1056
  %v1058 = vsel %vm624, %v1039, 0.0
  %1059 = vadd.xlane.f32.xlu0 %v1058
  %v1060 = vpop.xlane.xlu0 %1059
  %v1061 = vrcp.pop %v1042
  %v1062 = vrcp.pop %v1045
  %v1063 = vrcp.pop %v1048
  %v1064 = vrcp.pop %v1051
  %v1065 = vrcp.pop %v1054
  %v1066 = vrcp.pop %v1057
  %v1067 = vrcp.pop %v1060
  %v1068 = vmul.f32 %v1027, %v1061
  %v1069 = vmul.f32 %v1029, %v1062
  %v1070 = vmul.f32 %v1031, %v1063
  %v1071 = vmul.f32 %v1033, %v1064
  %v1072 = vmul.f32 %v1035, %v1065
  %v1073 = vmul.f32 %v1037, %v1066
  %v1074 = vmul.f32 %v1039, %v1067
  %1075 = vrot.lane.b32.xlu0 %v408, 56
  %v1076 = vpop.permute.xlu0 %1075
  %1077 = vrot.lane.b32.xlu0 %v413, 56
  %v1078 = vpop.permute.xlu0 %1077
  %1079 = vrot.lane.b32.xlu0 %v418, 56
  %v1080 = vpop.permute.xlu0 %1079
  %1081 = vrot.lane.b32.xlu0 %v423, 56
  %v1082 = vpop.permute.xlu0 %1081
  %1083 = vrot.lane.b32.xlu0 %v428, 56
  %v1084 = vpop.permute.xlu0 %1083
  %1085 = vrot.lane.b32.xlu0 %v433, 56
  %v1086 = vpop.permute.xlu0 %1085
  %1087 = vrot.lane.b32.xlu0 %v438, 56
  %v1088 = vpop.permute.xlu0 %1087
  %v1096 = vsel %vm605, %v1068, 0
  %v1099 = vsel %vm605, %v1069, 0
  %v1102 = vsel %vm605, %v1070, 0
  %v1105 = vsel %vm605, %v1071, 0
  %v1108 = vsel %vm605, %v1072, 0
  %v1111 = vsel %vm605, %v1073, 0
  %v1114 = vsel %vm605, %v1074, 0
  %v1116 = vsel %vm725, %v1088, 0
  %1118 = vmatprep.subr.mxu0 0.0
  %1119 = vmatpush1.msra.mxu0 %v1076
  %1120 = vmatprep.subr.mxu0 0.0
  %1121 = vmatpush1.msra.mxu0 %v1078
  %1122 = vmatprep.subr.mxu0 0.0
  %1123 = vmatpush1.msra.mxu0 %v1080
  %1124 = vmatprep.subr.mxu0 0.0
  %1125 = vmatpush1.msra.mxu0 %v1082
  %1126 = vmatprep.subr.mxu0 0.0
  %1127 = vmatpush1.msra.mxu0 %v1084
  %1128 = vmatprep.subr.mxu0 0.0
  %1129 = vmatpush1.msra.mxu0 %v1086
  %1130 = vmatprep.subr.mxu0 0.0
  %1131 = vmatpush1.msra.mxu0 %v1116
  %1132 = vmatprep.subr.mxu0 0.0
  %1133 = vmatpush1.msra.mxu0 0.0
  %1134 = vmatprep.subr.mxu0 0.0
  %1135 = vmatpush1.msra.mxu0 0.0
  %1136 = vmatprep.subr.mxu0 0.0
  %1137 = vmatpush1.msra.mxu0 0.0
  %1138 = vmatprep.subr.mxu0 0.0
  %1139 = vmatpush1.msra.mxu0 0.0
  %1140 = vmatprep.subr.mxu0 0.0
  %1141 = vmatpush1.msra.mxu0 0.0
  %1142 = vmatprep.subr.mxu0 0.0
  %1143 = vmatpush1.msra.mxu0 0.0
  %1144 = vmatprep.subr.mxu0 0.0
  %1145 = vmatpush1.msra.mxu0 0.0
  %1146 = vmatprep.subr.mxu0 0.0
  %1147 = vmatpush1.msra.mxu0 0.0
  %1148 = vmatprep.subr.mxu0 0.0
  %1149 = vmatpush1.msra.mxu0 0.0
  %1150 = vmatprep.subr.mxu0 0.0
  %1151 = vmatpush1.msra.mxu0 0.0
  %1152 = vmatprep.subr.mxu0 0.0
  %1153 = vmatpush1.msra.mxu0 0.0
  %1154 = vmatprep.subr.mxu0 0.0
  %1155 = vmatpush1.msra.mxu0 0.0
  %1156 = vmatprep.subr.mxu0 0.0
  %1157 = vmatpush1.msra.mxu0 0.0
  %1158 = vmatprep.subr.mxu0 0.0
  %1159 = vmatpush1.msra.mxu0 0.0
  %1160 = vmatprep.subr.mxu0 0.0
  %1161 = vmatpush1.msra.mxu0 0.0
  %1162 = vmatprep.subr.mxu0 0.0
  %1163 = vmatpush1.msra.mxu0 0.0
  %1164 = vmatprep.subr.mxu0 0.0
  %1165 = vmatpush1.msra.mxu0 0.0
  %1166 = vmatprep.subr.mxu0 0.0
  %1167 = vmatpush1.msra.mxu0 0.0
  %1168 = vmatprep.subr.mxu0 0.0
  %1169 = vmatpush1.msra.mxu0 0.0
  %1170 = vmatprep.subr.mxu0 0.0
  %1171 = vmatpush1.msra.mxu0 0.0
  %1172 = vmatprep.subr.mxu0 0.0
  %1173 = vmatpush1.msra.mxu0 0.0
  %1174 = vmatprep.subr.mxu0 0.0
  %1175 = vmatpush1.msra.mxu0 0.0
  %1176 = vmatprep.subr.mxu0 0.0
  %1177 = vmatpush1.msra.mxu0 0.0
  %1178 = vmatprep.subr.mxu0 0.0
  %1179 = vmatpush1.msra.mxu0 0.0
  %1180 = vmatprep.subr.mxu0 0.0
  %1181 = vmatpush1.msra.mxu0 0.0
  %1182 = vmatprep.mubr.f32.mxu0 0.0
  %1183 = vmatmul.mubr.f32.gmra.mrb[0].mxu0 %v1096
  %v1184 = vpop.f32.mrb[0].mxu0
  %v1185 = vadd.f32 0.0, %v1184
  %v1186 = vpop.f32.mrb[0].mxu0
  %1187 = vmatprep.mubr.f32.mxu0 0.0
  %1188 = vmatmul.mubr.f32.gmra.mrb[0].mxu0 %v1099
  %v1189 = vpop.f32.mrb[0].mxu0
  %v1190 = vadd.f32 0.0, %v1189
  %v1191 = vpop.f32.mrb[0].mxu0
  %1192 = vmatprep.mubr.f32.mxu0 0.0
  %1193 = vmatmul.mubr.f32.gmra.mrb[0].mxu0 %v1102
  %v1194 = vpop.f32.mrb[0].mxu0
  %v1195 = vadd.f32 0.0, %v1194
  %v1196 = vpop.f32.mrb[0].mxu0
  %1197 = vmatprep.mubr.f32.mxu0 0.0
  %1198 = vmatmul.mubr.f32.gmra.mrb[0].mxu0 %v1105
  %v1199 = vpop.f32.mrb[0].mxu0
  %v1200 = vadd.f32 0.0, %v1199
  %v1201 = vpop.f32.mrb[0].mxu0
  %1202 = vmatprep.mubr.f32.mxu0 0.0
  %1203 = vmatmul.mubr.f32.gmra.mrb[0].mxu0 %v1108
  %v1204 = vpop.f32.mrb[0].mxu0
  %v1205 = vadd.f32 0.0, %v1204
  %v1206 = vpop.f32.mrb[0].mxu0
  %1207 = vmatprep.mubr.f32.mxu0 0.0
  %1208 = vmatmul.mubr.f32.gmra.mrb[0].mxu0 %v1111
  %v1209 = vpop.f32.mrb[0].mxu0
  %v1210 = vadd.f32 0.0, %v1209
  %v1211 = vpop.f32.mrb[0].mxu0
  %1212 = vmatprep.mubr.f32.mxu0 0.0
  %1213 = vmatmul.mubr.f32.gmra.mrb[0].mxu0 %v1114
  %v1214 = vpop.f32.mrb[0].mxu0
  %v1215 = vadd.f32 0.0, %v1214
  %v1216 = vpop.f32.mrb[0].mxu0
  %1217 = vdwg.mxu0
  %1218 = vrot.lane.b32.xlu0 %v408, 112
  %v1219 = vpop.permute.xlu0 %1218
  %1220 = vrot.lane.b32.xlu0 %v413, 112
  %v1221 = vpop.permute.xlu0 %1220
  %1222 = vrot.lane.b32.xlu0 %v418, 112
  %v1223 = vpop.permute.xlu0 %1222
  %1224 = vrot.lane.b32.xlu0 %v423, 112
  %v1225 = vpop.permute.xlu0 %1224
  %1226 = vrot.lane.b32.xlu0 %v428, 112
  %v1227 = vpop.permute.xlu0 %1226
  %1228 = vrot.lane.b32.xlu0 %v433, 112
  %v1229 = vpop.permute.xlu0 %1228
  %1230 = vrot.lane.b32.xlu0 %v438, 112
  %v1231 = vpop.permute.xlu0 %1230
  %1232 = vrot.lane.b32.xlu0 %v408, 80
  %v1233 = vpop.permute.xlu0 %1232
  %1234 = vrot.lane.b32.xlu0 %v413, 80
  %v1235 = vpop.permute.xlu0 %1234
  %1236 = vrot.lane.b32.xlu0 %v418, 80
  %v1237 = vpop.permute.xlu0 %1236
  %1238 = vrot.lane.b32.xlu0 %v423, 80
  %v1239 = vpop.permute.xlu0 %1238
  %1240 = vrot.lane.b32.xlu0 %v428, 80
  %v1241 = vpop.permute.xlu0 %1240
  %1242 = vrot.lane.b32.xlu0 %v433, 80
  %v1243 = vpop.permute.xlu0 %1242
  %1244 = vrot.lane.b32.xlu0 %v438, 80
  %v1245 = vpop.permute.xlu0 %1244
  %v1246 = vsel %vm462, %v1219, 0
  %v1248 = vsel %vm462, %v1221, 0
  %v1250 = vsel %vm462, %v1223, 0
  %v1252 = vsel %vm462, %v1225, 0
  %v1254 = vsel %vm462, %v1227, 0
  %v1256 = vsel %vm462, %v1229, 0
  %v1258 = vsel %vm462, %v1231, 0
  %v1260 = vsel %vm462, %v1233, 0
  %v1262 = vsel %vm462, %v1235, 0
  %v1264 = vsel %vm462, %v1237, 0
  %v1266 = vsel %vm462, %v1239, 0
  %v1268 = vsel %vm462, %v1241, 0
  %v1270 = vsel %vm462, %v1243, 0
  %v1272 = vsel %vm462, %v1245, 0
  %1274 = vmatprep.subr.mxu0 0.0
  %1275 = vmatpush1.xpose.msra.mxu0 %v1260
  %1276 = vmatprep.subr.mxu0 0.0
  %1277 = vmatpush1.xpose.msra.mxu0 %v1262
  %1278 = vmatprep.subr.mxu0 0.0
  %1279 = vmatpush1.xpose.msra.mxu0 %v1264
  %1280 = vmatprep.subr.mxu0 0.0
  %1281 = vmatpush1.xpose.msra.mxu0 %v1266
  %1282 = vmatprep.subr.mxu0 0.0
  %1283 = vmatpush1.xpose.msra.mxu0 %v1268
  %1284 = vmatprep.subr.mxu0 0.0
  %1285 = vmatpush1.xpose.msra.mxu0 %v1270
  %1286 = vmatprep.subr.mxu0 0.0
  %1287 = vmatpush1.xpose.msra.mxu0 %v1272
  %1288 = vmatprep.subr.mxu0 0.0
  %1289 = vmatpush1.xpose.msra.mxu0 0.0
  %1290 = vmatprep.subr.mxu0 0.0
  %1291 = vmatpush1.xpose.msra.mxu0 0.0
  %1292 = vmatprep.subr.mxu0 0.0
  %1293 = vmatpush1.xpose.msra.mxu0 0.0
  %1294 = vmatprep.subr.mxu0 0.0
  %1295 = vmatpush1.xpose.msra.mxu0 0.0
  %1296 = vmatprep.subr.mxu0 0.0
  %1297 = vmatpush1.xpose.msra.mxu0 0.0
  %1298 = vmatprep.subr.mxu0 0.0
  %1299 = vmatpush1.xpose.msra.mxu0 0.0
  %1300 = vmatprep.subr.mxu0 0.0
  %1301 = vmatpush1.xpose.msra.mxu0 0.0
  %1302 = vmatprep.subr.mxu0 0.0
  %1303 = vmatpush1.xpose.msra.mxu0 0.0
  %1304 = vmatprep.subr.mxu0 0.0
  %1305 = vmatpush1.xpose.msra.mxu0 0.0
  %1306 = vmatprep.subr.mxu0 0.0
  %1307 = vmatpush1.xpose.msra.mxu0 0.0
  %1308 = vmatprep.subr.mxu0 0.0
  %1309 = vmatpush1.xpose.msra.mxu0 0.0
  %1310 = vmatprep.subr.mxu0 0.0
  %1311 = vmatpush1.xpose.msra.mxu0 0.0
  %1312 = vmatprep.subr.mxu0 0.0
  %1313 = vmatpush1.xpose.msra.mxu0 0.0
  %1314 = vmatprep.subr.mxu0 0.0
  %1315 = vmatpush1.xpose.msra.mxu0 0.0
  %1316 = vmatprep.subr.mxu0 0.0
  %1317 = vmatpush1.xpose.msra.mxu0 0.0
  %1318 = vmatprep.subr.mxu0 0.0
  %1319 = vmatpush1.xpose.msra.mxu0 0.0
  %1320 = vmatprep.subr.mxu0 0.0
  %1321 = vmatpush1.xpose.msra.mxu0 0.0
  %1322 = vmatprep.subr.mxu0 0.0
  %1323 = vmatpush1.xpose.msra.mxu0 0.0
  %1324 = vmatprep.subr.mxu0 0.0
  %1325 = vmatpush1.xpose.msra.mxu0 0.0
  %1326 = vmatprep.subr.mxu0 0.0
  %1327 = vmatpush1.xpose.msra.mxu0 0.0
  %1328 = vmatprep.subr.mxu0 0.0
  %1329 = vmatpush1.xpose.msra.mxu0 0.0
  %1330 = vmatprep.subr.mxu0 0.0
  %1331 = vmatpush1.xpose.msra.mxu0 0.0
  %1332 = vmatprep.subr.mxu0 0.0
  %1333 = vmatpush1.xpose.msra.mxu0 0.0
  %1334 = vmatprep.subr.mxu0 0.0
  %1335 = vmatpush1.xpose.msra.mxu0 0.0
  %1336 = vmatprep.subr.mxu0 0.0
  %1337 = vmatpush1.xpose.msra.mxu0 0.0
  %1338 = vmatprep.mubr.f32.mxu0 0.0
  %1339 = vmatmul.mubr.f32.gmra.mrb[0].mxu0 %v1246
  %v1340 = vpop.f32.mrb[0].mxu0
  %v1341 = vadd.f32 0.0, %v1340
  %v1342 = vpop.f32.mrb[0].mxu0
  %1343 = vmatprep.mubr.f32.mxu0 0.0
  %1344 = vmatmul.mubr.f32.gmra.mrb[0].mxu0 %v1248
  %v1345 = vpop.f32.mrb[0].mxu0
  %v1346 = vadd.f32 0.0, %v1345
  %v1347 = vpop.f32.mrb[0].mxu0
  %1348 = vmatprep.mubr.f32.mxu0 0.0
  %1349 = vmatmul.mubr.f32.gmra.mrb[0].mxu0 %v1250
  %v1350 = vpop.f32.mrb[0].mxu0
  %v1351 = vadd.f32 0.0, %v1350
  %v1352 = vpop.f32.mrb[0].mxu0
  %1353 = vmatprep.mubr.f32.mxu0 0.0
  %1354 = vmatmul.mubr.f32.gmra.mrb[0].mxu0 %v1252
  %v1355 = vpop.f32.mrb[0].mxu0
  %v1356 = vadd.f32 0.0, %v1355
  %v1357 = vpop.f32.mrb[0].mxu0
  %1358 = vmatprep.mubr.f32.mxu0 0.0
  %1359 = vmatmul.mubr.f32.gmra.mrb[0].mxu0 %v1254
  %v1360 = vpop.f32.mrb[0].mxu0
  %v1361 = vadd.f32 0.0, %v1360
  %v1362 = vpop.f32.mrb[0].mxu0
  %1363 = vmatprep.mubr.f32.mxu0 0.0
  %1364 = vmatmul.mubr.f32.gmra.mrb[0].mxu0 %v1256
  %v1365 = vpop.f32.mrb[0].mxu0
  %v1366 = vadd.f32 0.0, %v1365
  %v1367 = vpop.f32.mrb[0].mxu0
  %1368 = vmatprep.mubr.f32.mxu0 0.0
  %1369 = vmatmul.mubr.f32.gmra.mrb[0].mxu0 %v1258
  %v1370 = vpop.f32.mrb[0].mxu0
  %v1371 = vadd.f32 0.0, %v1370
  %v1372 = vpop.f32.mrb[0].mxu0
  %1373 = vdwg.mxu0
  %v1374 = vmul.f32 %v1341, 0.35355338
  %v1375 = vmul.f32 %v1346, 0.35355338
  %v1376 = vmul.f32 %v1351, 0.35355338
  %v1377 = vmul.f32 %v1356, 0.35355338
  %v1378 = vmul.f32 %v1361, 0.35355338
  %v1379 = vmul.f32 %v1366, 0.35355338
  %v1380 = vmul.f32 %v1371, 0.35355338
  %v1381 = vadd.f32 %v1374, %v201
  %v1382 = vadd.f32 %v1375, %v202
  %v1383 = vadd.f32 %v1376, %v203
  %v1384 = vadd.f32 %v1377, %v204
  %v1385 = vadd.f32 %v1378, %v205
  %v1386 = vadd.f32 %v1379, %v206
  %v1387 = vadd.f32 %v1380, %v207
  %v1388 = vsel %vm605, %v1381, -inf
  %1389 = vmax.xlane.f32.xlu0 %v1388
  %v1390 = vpop.xlane.xlu0 %1389
  %v1391 = vsel %vm605, %v1382, -inf
  %1392 = vmax.xlane.f32.xlu0 %v1391
  %v1393 = vpop.xlane.xlu0 %1392
  %v1394 = vsel %vm605, %v1383, -inf
  %1395 = vmax.xlane.f32.xlu0 %v1394
  %v1396 = vpop.xlane.xlu0 %1395
  %v1397 = vsel %vm605, %v1384, -inf
  %1398 = vmax.xlane.f32.xlu0 %v1397
  %v1399 = vpop.xlane.xlu0 %1398
  %v1400 = vsel %vm605, %v1385, -inf
  %1401 = vmax.xlane.f32.xlu0 %v1400
  %v1402 = vpop.xlane.xlu0 %1401
  %v1403 = vsel %vm605, %v1386, -inf
  %1404 = vmax.xlane.f32.xlu0 %v1403
  %v1405 = vpop.xlane.xlu0 %1404
  %v1406 = vsel %vm624, %v1387, -inf
  %1407 = vmax.xlane.f32.xlu0 %v1406
  %v1408 = vpop.xlane.xlu0 %1407
  %v1409 = vsub.f32 %v1381, %v1390
  %v1410 = vsub.f32 %v1382, %v1393
  %v1411 = vsub.f32 %v1383, %v1396
  %v1412 = vsub.f32 %v1384, %v1399
  %v1413 = vsub.f32 %v1385, %v1402
  %v1414 = vsub.f32 %v1386, %v1405
  %v1415 = vsub.f32 %v1387, %v1408
  %v1416 = vmul.f32 %v1409, 1.442695
  %v1417 = vpow.pop %v1416
  %v1418 = vmul.f32 %v1410, 1.442695
  %v1419 = vpow.pop %v1418
  %v1420 = vmul.f32 %v1411, 1.442695
  %v1421 = vpow.pop %v1420
  %v1422 = vmul.f32 %v1412, 1.442695
  %v1423 = vpow.pop %v1422
  %v1424 = vmul.f32 %v1413, 1.442695
  %v1425 = vpow.pop %v1424
  %v1426 = vmul.f32 %v1414, 1.442695
  %v1427 = vpow.pop %v1426
  %v1428 = vmul.f32 %v1415, 1.442695
  %v1429 = vpow.pop %v1428
  %v1430 = vsel %vm605, %v1417, 0.0
  %1431 = vadd.xlane.f32.xlu0 %v1430
  %v1432 = vpop.xlane.xlu0 %1431
  %v1433 = vsel %vm605, %v1419, 0.0
  %1434 = vadd.xlane.f32.xlu0 %v1433
  %v1435 = vpop.xlane.xlu0 %1434
  %v1436 = vsel %vm605, %v1421, 0.0
  %1437 = vadd.xlane.f32.xlu0 %v1436
  %v1438 = vpop.xlane.xlu0 %1437
  %v1439 = vsel %vm605, %v1423, 0.0
  %1440 = vadd.xlane.f32.xlu0 %v1439
  %v1441 = vpop.xlane.xlu0 %1440
  %v1442 = vsel %vm605, %v1425, 0.0
  %1443 = vadd.xlane.f32.xlu0 %v1442
  %v1444 = vpop.xlane.xlu0 %1443
  %v1445 = vsel %vm605, %v1427, 0.0
  %1446 = vadd.xlane.f32.xlu0 %v1445
  %v1447 = vpop.xlane.xlu0 %1446
  %v1448 = vsel %vm624, %v1429, 0.0
  %1449 = vadd.xlane.f32.xlu0 %v1448
  %v1450 = vpop.xlane.xlu0 %1449
  %v1451 = vrcp.pop %v1432
  %v1452 = vrcp.pop %v1435
  %v1453 = vrcp.pop %v1438
  %v1454 = vrcp.pop %v1441
  %v1455 = vrcp.pop %v1444
  %v1456 = vrcp.pop %v1447
  %v1457 = vrcp.pop %v1450
  %v1458 = vmul.f32 %v1417, %v1451
  %v1459 = vmul.f32 %v1419, %v1452
  %v1460 = vmul.f32 %v1421, %v1453
  %v1461 = vmul.f32 %v1423, %v1454
  %v1462 = vmul.f32 %v1425, %v1455
  %v1463 = vmul.f32 %v1427, %v1456
  %v1464 = vmul.f32 %v1429, %v1457
  %1465 = vrot.lane.b32.xlu0 %v408, 48
  %v1466 = vpop.permute.xlu0 %1465
  %1467 = vrot.lane.b32.xlu0 %v413, 48
  %v1468 = vpop.permute.xlu0 %1467
  %1469 = vrot.lane.b32.xlu0 %v418, 48
  %v1470 = vpop.permute.xlu0 %1469
  %1471 = vrot.lane.b32.xlu0 %v423, 48
  %v1472 = vpop.permute.xlu0 %1471
  %1473 = vrot.lane.b32.xlu0 %v428, 48
  %v1474 = vpop.permute.xlu0 %1473
  %1475 = vrot.lane.b32.xlu0 %v433, 48
  %v1476 = vpop.permute.xlu0 %1475
  %1477 = vrot.lane.b32.xlu0 %v438, 48
  %v1478 = vpop.permute.xlu0 %1477
  %v1486 = vsel %vm605, %v1458, 0
  %v1489 = vsel %vm605, %v1459, 0
  %v1492 = vsel %vm605, %v1460, 0
  %v1495 = vsel %vm605, %v1461, 0
  %v1498 = vsel %vm605, %v1462, 0
  %v1501 = vsel %vm605, %v1463, 0
  %v1504 = vsel %vm605, %v1464, 0
  %v1506 = vsel %vm725, %v1478, 0
  %1508 = vmatprep.subr.mxu0 0.0
  %1509 = vmatpush1.msra.mxu0 %v1466
  %1510 = vmatprep.subr.mxu0 0.0
  %1511 = vmatpush1.msra.mxu0 %v1468
  %1512 = vmatprep.subr.mxu0 0.0
  %1513 = vmatpush1.msra.mxu0 %v1470
  %1514 = vmatprep.subr.mxu0 0.0
  %1515 = vmatpush1.msra.mxu0 %v1472
  %1516 = vmatprep.subr.mxu0 0.0
  %1517 = vmatpush1.msra.mxu0 %v1474
  %1518 = vmatprep.subr.mxu0 0.0
  %1519 = vmatpush1.msra.mxu0 %v1476
  %1520 = vmatprep.subr.mxu0 0.0
  %1521 = vmatpush1.msra.mxu0 %v1506
  %1522 = vmatprep.subr.mxu0 0.0
  %1523 = vmatpush1.msra.mxu0 0.0
  %1524 = vmatprep.subr.mxu0 0.0
  %1525 = vmatpush1.msra.mxu0 0.0
  %1526 = vmatprep.subr.mxu0 0.0
  %1527 = vmatpush1.msra.mxu0 0.0
  %1528 = vmatprep.subr.mxu0 0.0
  %1529 = vmatpush1.msra.mxu0 0.0
  %1530 = vmatprep.subr.mxu0 0.0
  %1531 = vmatpush1.msra.mxu0 0.0
  %1532 = vmatprep.subr.mxu0 0.0
  %1533 = vmatpush1.msra.mxu0 0.0
  %1534 = vmatprep.subr.mxu0 0.0
  %1535 = vmatpush1.msra.mxu0 0.0
  %1536 = vmatprep.subr.mxu0 0.0
  %1537 = vmatpush1.msra.mxu0 0.0
  %1538 = vmatprep.subr.mxu0 0.0
  %1539 = vmatpush1.msra.mxu0 0.0
  %1540 = vmatprep.subr.mxu0 0.0
  %1541 = vmatpush1.msra.mxu0 0.0
  %1542 = vmatprep.subr.mxu0 0.0
  %1543 = vmatpush1.msra.mxu0 0.0
  %1544 = vmatprep.subr.mxu0 0.0
  %1545 = vmatpush1.msra.mxu0 0.0
  %1546 = vmatprep.subr.mxu0 0.0
  %1547 = vmatpush1.msra.mxu0 0.0
  %1548 = vmatprep.subr.mxu0 0.0
  %1549 = vmatpush1.msra.mxu0 0.0
  %1550 = vmatprep.subr.mxu0 0.0
  %1551 = vmatpush1.msra.mxu0 0.0
  %1552 = vmatprep.subr.mxu0 0.0
  %1553 = vmatpush1.msra.mxu0 0.0
  %1554 = vmatprep.subr.mxu0 0.0
  %1555 = vmatpush1.msra.mxu0 0.0
  %1556 = vmatprep.subr.mxu0 0.0
  %1557 = vmatpush1.msra.mxu0 0.0
  %1558 = vmatprep.subr.mxu0 0.0
  %1559 = vmatpush1.msra.mxu0 0.0
  %1560 = vmatprep.subr.mxu0 0.0
  %1561 = vmatpush1.msra.mxu0 0.0
  %1562 = vmatprep.subr.mxu0 0.0
  %1563 = vmatpush1.msra.mxu0 0.0
  %1564 = vmatprep.subr.mxu0 0.0
  %1565 = vmatpush1.msra.mxu0 0.0
  %1566 = vmatprep.subr.mxu0 0.0
  %1567 = vmatpush1.msra.mxu0 0.0
  %1568 = vmatprep.subr.mxu0 0.0
  %1569 = vmatpush1.msra.mxu0 0.0
  %1570 = vmatprep.subr.mxu0 0.0
  %1571 = vmatpush1.msra.mxu0 0.0
  %1572 = vmatprep.mubr.f32.mxu0 0.0
  %1573 = vmatmul.mubr.f32.gmra.mrb[0].mxu0 %v1486
  %v1574 = vpop.f32.mrb[0].mxu0
  %v1575 = vadd.f32 0.0, %v1574
  %v1576 = vpop.f32.mrb[0].mxu0
  %1577 = vmatprep.mubr.f32.mxu0 0.0
  %1578 = vmatmul.mubr.f32.gmra.mrb[0].mxu0 %v1489
  %v1579 = vpop.f32.mrb[0].mxu0
  %v1580 = vadd.f32 0.0, %v1579
  %v1581 = vpop.f32.mrb[0].mxu0
  %1582 = vmatprep.mubr.f32.mxu0 0.0
  %1583 = vmatmul.mubr.f32.gmra.mrb[0].mxu0 %v1492
  %v1584 = vpop.f32.mrb[0].mxu0
  %v1585 = vadd.f32 0.0, %v1584
  %v1586 = vpop.f32.mrb[0].mxu0
  %1587 = vmatprep.mubr.f32.mxu0 0.0
  %1588 = vmatmul.mubr.f32.gmra.mrb[0].mxu0 %v1495
  %v1589 = vpop.f32.mrb[0].mxu0
  %v1590 = vadd.f32 0.0, %v1589
  %v1591 = vpop.f32.mrb[0].mxu0
  %1592 = vmatprep.mubr.f32.mxu0 0.0
  %1593 = vmatmul.mubr.f32.gmra.mrb[0].mxu0 %v1498
  %v1594 = vpop.f32.mrb[0].mxu0
  %v1595 = vadd.f32 0.0, %v1594
  %v1596 = vpop.f32.mrb[0].mxu0
  %1597 = vmatprep.mubr.f32.mxu0 0.0
  %1598 = vmatmul.mubr.f32.gmra.mrb[0].mxu0 %v1501
  %v1599 = vpop.f32.mrb[0].mxu0
  %v1600 = vadd.f32 0.0, %v1599
  %v1601 = vpop.f32.mrb[0].mxu0
  %1602 = vmatprep.mubr.f32.mxu0 0.0
  %1603 = vmatmul.mubr.f32.gmra.mrb[0].mxu0 %v1504
  %v1604 = vpop.f32.mrb[0].mxu0
  %v1605 = vadd.f32 0.0, %v1604
  %v1606 = vpop.f32.mrb[0].mxu0
  %1607 = vdwg.mxu0
  %1608 = vrot.lane.b32.xlu0 %v408, 104
  %v1609 = vpop.permute.xlu0 %1608
  %1610 = vrot.lane.b32.xlu0 %v413, 104
  %v1611 = vpop.permute.xlu0 %1610
  %1612 = vrot.lane.b32.xlu0 %v418, 104
  %v1613 = vpop.permute.xlu0 %1612
  %1614 = vrot.lane.b32.xlu0 %v423, 104
  %v1615 = vpop.permute.xlu0 %1614
  %1616 = vrot.lane.b32.xlu0 %v428, 104
  %v1617 = vpop.permute.xlu0 %1616
  %1618 = vrot.lane.b32.xlu0 %v433, 104
  %v1619 = vpop.permute.xlu0 %1618
  %1620 = vrot.lane.b32.xlu0 %v438, 104
  %v1621 = vpop.permute.xlu0 %1620
  %1622 = vrot.lane.b32.xlu0 %v408, 72
  %v1623 = vpop.permute.xlu0 %1622
  %1624 = vrot.lane.b32.xlu0 %v413, 72
  %v1625 = vpop.permute.xlu0 %1624
  %1626 = vrot.lane.b32.xlu0 %v418, 72
  %v1627 = vpop.permute.xlu0 %1626
  %1628 = vrot.lane.b32.xlu0 %v423, 72
  %v1629 = vpop.permute.xlu0 %1628
  %1630 = vrot.lane.b32.xlu0 %v428, 72
  %v1631 = vpop.permute.xlu0 %1630
  %1632 = vrot.lane.b32.xlu0 %v433, 72
  %v1633 = vpop.permute.xlu0 %1632
  %1634 = vrot.lane.b32.xlu0 %v438, 72
  %v1635 = vpop.permute.xlu0 %1634
  %v1636 = vsel %vm462, %v1609, 0
  %v1638 = vsel %vm462, %v1611, 0
  %v1640 = vsel %vm462, %v1613, 0
  %v1642 = vsel %vm462, %v1615, 0
  %v1644 = vsel %vm462, %v1617, 0
  %v1646 = vsel %vm462, %v1619, 0
  %v1648 = vsel %vm462, %v1621, 0
  %v1650 = vsel %vm462, %v1623, 0
  %v1652 = vsel %vm462, %v1625, 0
  %v1654 = vsel %vm462, %v1627, 0
  %v1656 = vsel %vm462, %v1629, 0
  %v1658 = vsel %vm462, %v1631, 0
  %v1660 = vsel %vm462, %v1633, 0
  %v1662 = vsel %vm462, %v1635, 0
  %1664 = vmatprep.subr.mxu0 0.0
  %1665 = vmatpush1.xpose.msra.mxu0 %v1650
  %1666 = vmatprep.subr.mxu0 0.0
  %1667 = vmatpush1.xpose.msra.mxu0 %v1652
  %1668 = vmatprep.subr.mxu0 0.0
  %1669 = vmatpush1.xpose.msra.mxu0 %v1654
  %1670 = vmatprep.subr.mxu0 0.0
  %1671 = vmatpush1.xpose.msra.mxu0 %v1656
  %1672 = vmatprep.subr.mxu0 0.0
  %1673 = vmatpush1.xpose.msra.mxu0 %v1658
  %1674 = vmatprep.subr.mxu0 0.0
  %1675 = vmatpush1.xpose.msra.mxu0 %v1660
  %1676 = vmatprep.subr.mxu0 0.0
  %1677 = vmatpush1.xpose.msra.mxu0 %v1662
  %1678 = vmatprep.subr.mxu0 0.0
  %1679 = vmatpush1.xpose.msra.mxu0 0.0
  %1680 = vmatprep.subr.mxu0 0.0
  %1681 = vmatpush1.xpose.msra.mxu0 0.0
  %1682 = vmatprep.subr.mxu0 0.0
  %1683 = vmatpush1.xpose.msra.mxu0 0.0
  %1684 = vmatprep.subr.mxu0 0.0
  %1685 = vmatpush1.xpose.msra.mxu0 0.0
  %1686 = vmatprep.subr.mxu0 0.0
  %1687 = vmatpush1.xpose.msra.mxu0 0.0
  %1688 = vmatprep.subr.mxu0 0.0
  %1689 = vmatpush1.xpose.msra.mxu0 0.0
  %1690 = vmatprep.subr.mxu0 0.0
  %1691 = vmatpush1.xpose.msra.mxu0 0.0
  %1692 = vmatprep.subr.mxu0 0.0
  %1693 = vmatpush1.xpose.msra.mxu0 0.0
  %1694 = vmatprep.subr.mxu0 0.0
  %1695 = vmatpush1.xpose.msra.mxu0 0.0
  %1696 = vmatprep.subr.mxu0 0.0
  %1697 = vmatpush1.xpose.msra.mxu0 0.0
  %1698 = vmatprep.subr.mxu0 0.0
  %1699 = vmatpush1.xpose.msra.mxu0 0.0
  %1700 = vmatprep.subr.mxu0 0.0
  %1701 = vmatpush1.xpose.msra.mxu0 0.0
  %1702 = vmatprep.subr.mxu0 0.0
  %1703 = vmatpush1.xpose.msra.mxu0 0.0
  %1704 = vmatprep.subr.mxu0 0.0
  %1705 = vmatpush1.xpose.msra.mxu0 0.0
  %1706 = vmatprep.subr.mxu0 0.0
  %1707 = vmatpush1.xpose.msra.mxu0 0.0
  %1708 = vmatprep.subr.mxu0 0.0
  %1709 = vmatpush1.xpose.msra.mxu0 0.0
  %1710 = vmatprep.subr.mxu0 0.0
  %1711 = vmatpush1.xpose.msra.mxu0 0.0
  %1712 = vmatprep.subr.mxu0 0.0
  %1713 = vmatpush1.xpose.msra.mxu0 0.0
  %1714 = vmatprep.subr.mxu0 0.0
  %1715 = vmatpush1.xpose.msra.mxu0 0.0
  %1716 = vmatprep.subr.mxu0 0.0
  %1717 = vmatpush1.xpose.msra.mxu0 0.0
  %1718 = vmatprep.subr.mxu0 0.0
  %1719 = vmatpush1.xpose.msra.mxu0 0.0
  %1720 = vmatprep.subr.mxu0 0.0
  %1721 = vmatpush1.xpose.msra.mxu0 0.0
  %1722 = vmatprep.subr.mxu0 0.0
  %1723 = vmatpush1.xpose.msra.mxu0 0.0
  %1724 = vmatprep.subr.mxu0 0.0
  %1725 = vmatpush1.xpose.msra.mxu0 0.0
  %1726 = vmatprep.subr.mxu0 0.0
  %1727 = vmatpush1.xpose.msra.mxu0 0.0
  %1728 = vmatprep.mubr.f32.mxu0 0.0
  %1729 = vmatmul.mubr.f32.gmra.mrb[0].mxu0 %v1636
  %v1730 = vpop.f32.mrb[0].mxu0
  %v1731 = vadd.f32 0.0, %v1730
  %v1732 = vpop.f32.mrb[0].mxu0
  %1733 = vmatprep.mubr.f32.mxu0 0.0
  %1734 = vmatmul.mubr.f32.gmra.mrb[0].mxu0 %v1638
  %v1735 = vpop.f32.mrb[0].mxu0
  %v1736 = vadd.f32 0.0, %v1735
  %v1737 = vpop.f32.mrb[0].mxu0
  %1738 = vmatprep.mubr.f32.mxu0 0.0
  %1739 = vmatmul.mubr.f32.gmra.mrb[0].mxu0 %v1640
  %v1740 = vpop.f32.mrb[0].mxu0
  %v1741 = vadd.f32 0.0, %v1740
  %v1742 = vpop.f32.mrb[0].mxu0
  %1743 = vmatprep.mubr.f32.mxu0 0.0
  %1744 = vmatmul.mubr.f32.gmra.mrb[0].mxu0 %v1642
  %v1745 = vpop.f32.mrb[0].mxu0
  %v1746 = vadd.f32 0.0, %v1745
  %v1747 = vpop.f32.mrb[0].mxu0
  %1748 = vmatprep.mubr.f32.mxu0 0.0
  %1749 = vmatmul.mubr.f32.gmra.mrb[0].mxu0 %v1644
  %v1750 = vpop.f32.mrb[0].mxu0
  %v1751 = vadd.f32 0.0, %v1750
  %v1752 = vpop.f32.mrb[0].mxu0
  %1753 = vmatprep.mubr.f32.mxu0 0.0
  %1754 = vmatmul.mubr.f32.gmra.mrb[0].mxu0 %v1646
  %v1755 = vpop.f32.mrb[0].mxu0
  %v1756 = vadd.f32 0.0, %v1755
  %v1757 = vpop.f32.mrb[0].mxu0
  %1758 = vmatprep.mubr.f32.mxu0 0.0
  %1759 = vmatmul.mubr.f32.gmra.mrb[0].mxu0 %v1648
  %v1760 = vpop.f32.mrb[0].mxu0
  %v1761 = vadd.f32 0.0, %v1760
  %v1762 = vpop.f32.mrb[0].mxu0
  %1763 = vdwg.mxu0
  %v1764 = vmul.f32 %v1731, 0.35355338
  %v1765 = vmul.f32 %v1736, 0.35355338
  %v1766 = vmul.f32 %v1741, 0.35355338
  %v1767 = vmul.f32 %v1746, 0.35355338
  %v1768 = vmul.f32 %v1751, 0.35355338
  %v1769 = vmul.f32 %v1756, 0.35355338
  %v1770 = vmul.f32 %v1761, 0.35355338
  %v1771 = vadd.f32 %v1764, %v201
  %v1772 = vadd.f32 %v1765, %v202
  %v1773 = vadd.f32 %v1766, %v203
  %v1774 = vadd.f32 %v1767, %v204
  %v1775 = vadd.f32 %v1768, %v205
  %v1776 = vadd.f32 %v1769, %v206
  %v1777 = vadd.f32 %v1770, %v207
  %v1778 = vsel %vm605, %v1771, -inf
  %1779 = vmax.xlane.f32.xlu0 %v1778
  %v1780 = vpop.xlane.xlu0 %1779
  %v1781 = vsel %vm605, %v1772, -inf
  %1782 = vmax.xlane.f32.xlu0 %v1781
  %v1783 = vpop.xlane.xlu0 %1782
  %v1784 = vsel %vm605, %v1773, -inf
  %1785 = vmax.xlane.f32.xlu0 %v1784
  %v1786 = vpop.xlane.xlu0 %1785
  %v1787 = vsel %vm605, %v1774, -inf
  %1788 = vmax.xlane.f32.xlu0 %v1787
  %v1789 = vpop.xlane.xlu0 %1788
  %v1790 = vsel %vm605, %v1775, -inf
  %1791 = vmax.xlane.f32.xlu0 %v1790
  %v1792 = vpop.xlane.xlu0 %1791
  %v1793 = vsel %vm605, %v1776, -inf
  %1794 = vmax.xlane.f32.xlu0 %v1793
  %v1795 = vpop.xlane.xlu0 %1794
  %v1796 = vsel %vm624, %v1777, -inf
  %1797 = vmax.xlane.f32.xlu0 %v1796
  %v1798 = vpop.xlane.xlu0 %1797
  %v1799 = vsub.f32 %v1771, %v1780
  %v1800 = vsub.f32 %v1772, %v1783
  %v1801 = vsub.f32 %v1773, %v1786
  %v1802 = vsub.f32 %v1774, %v1789
  %v1803 = vsub.f32 %v1775, %v1792
  %v1804 = vsub.f32 %v1776, %v1795
  %v1805 = vsub.f32 %v1777, %v1798
  %v1806 = vmul.f32 %v1799, 1.442695
  %v1807 = vpow.pop %v1806
  %v1808 = vmul.f32 %v1800, 1.442695
  %v1809 = vpow.pop %v1808
  %v1810 = vmul.f32 %v1801, 1.442695
  %v1811 = vpow.pop %v1810
  %v1812 = vmul.f32 %v1802, 1.442695
  %v1813 = vpow.pop %v1812
  %v1814 = vmul.f32 %v1803, 1.442695
  %v1815 = vpow.pop %v1814
  %v1816 = vmul.f32 %v1804, 1.442695
  %v1817 = vpow.pop %v1816
  %v1818 = vmul.f32 %v1805, 1.442695
  %v1819 = vpow.pop %v1818
  %v1820 = vsel %vm605, %v1807, 0.0
  %1821 = vadd.xlane.f32.xlu0 %v1820
  %v1822 = vpop.xlane.xlu0 %1821
  %v1823 = vsel %vm605, %v1809, 0.0
  %1824 = vadd.xlane.f32.xlu0 %v1823
  %v1825 = vpop.xlane.xlu0 %1824
  %v1826 = vsel %vm605, %v1811, 0.0
  %1827 = vadd.xlane.f32.xlu0 %v1826
  %v1828 = vpop.xlane.xlu0 %1827
  %v1829 = vsel %vm605, %v1813, 0.0
  %1830 = vadd.xlane.f32.xlu0 %v1829
  %v1831 = vpop.xlane.xlu0 %1830
  %v1832 = vsel %vm605, %v1815, 0.0
  %1833 = vadd.xlane.f32.xlu0 %v1832
  %v1834 = vpop.xlane.xlu0 %1833
  %v1835 = vsel %vm605, %v1817, 0.0
  %1836 = vadd.xlane.f32.xlu0 %v1835
  %v1837 = vpop.xlane.xlu0 %1836
  %v1838 = vsel %vm624, %v1819, 0.0
  %1839 = vadd.xlane.f32.xlu0 %v1838
  %v1840 = vpop.xlane.xlu0 %1839
  %v1841 = vrcp.pop %v1822
  %v1842 = vrcp.pop %v1825
  %v1843 = vrcp.pop %v1828
  %v1844 = vrcp.pop %v1831
  %v1845 = vrcp.pop %v1834
  %v1846 = vrcp.pop %v1837
  %v1847 = vrcp.pop %v1840
  %v1848 = vmul.f32 %v1807, %v1841
  %v1849 = vmul.f32 %v1809, %v1842
  %v1850 = vmul.f32 %v1811, %v1843
  %v1851 = vmul.f32 %v1813, %v1844
  %v1852 = vmul.f32 %v1815, %v1845
  %v1853 = vmul.f32 %v1817, %v1846
  %v1854 = vmul.f32 %v1819, %v1847
  %1855 = vrot.lane.b32.xlu0 %v408, 40
  %v1856 = vpop.permute.xlu0 %1855
  %1857 = vrot.lane.b32.xlu0 %v413, 40
  %v1858 = vpop.permute.xlu0 %1857
  %1859 = vrot.lane.b32.xlu0 %v418, 40
  %v1860 = vpop.permute.xlu0 %1859
  %1861 = vrot.lane.b32.xlu0 %v423, 40
  %v1862 = vpop.permute.xlu0 %1861
  %1863 = vrot.lane.b32.xlu0 %v428, 40
  %v1864 = vpop.permute.xlu0 %1863
  %1865 = vrot.lane.b32.xlu0 %v433, 40
  %v1866 = vpop.permute.xlu0 %1865
  %1867 = vrot.lane.b32.xlu0 %v438, 40
  %v1868 = vpop.permute.xlu0 %1867
  %v1876 = vsel %vm605, %v1848, 0
  %v1879 = vsel %vm605, %v1849, 0
  %v1882 = vsel %vm605, %v1850, 0
  %v1885 = vsel %vm605, %v1851, 0
  %v1888 = vsel %vm605, %v1852, 0
  %v1891 = vsel %vm605, %v1853, 0
  %v1894 = vsel %vm605, %v1854, 0
  %v1896 = vsel %vm725, %v1868, 0
  %1898 = vmatprep.subr.mxu0 0.0
  %1899 = vmatpush1.msra.mxu0 %v1856
  %1900 = vmatprep.subr.mxu0 0.0
  %1901 = vmatpush1.msra.mxu0 %v1858
  %1902 = vmatprep.subr.mxu0 0.0
  %1903 = vmatpush1.msra.mxu0 %v1860
  %1904 = vmatprep.subr.mxu0 0.0
  %1905 = vmatpush1.msra.mxu0 %v1862
  %1906 = vmatprep.subr.mxu0 0.0
  %1907 = vmatpush1.msra.mxu0 %v1864
  %1908 = vmatprep.subr.mxu0 0.0
  %1909 = vmatpush1.msra.mxu0 %v1866
  %1910 = vmatprep.subr.mxu0 0.0
  %1911 = vmatpush1.msra.mxu0 %v1896
  %1912 = vmatprep.subr.mxu0 0.0
  %1913 = vmatpush1.msra.mxu0 0.0
  %1914 = vmatprep.subr.mxu0 0.0
  %1915 = vmatpush1.msra.mxu0 0.0
  %1916 = vmatprep.subr.mxu0 0.0
  %1917 = vmatpush1.msra.mxu0 0.0
  %1918 = vmatprep.subr.mxu0 0.0
  %1919 = vmatpush1.msra.mxu0 0.0
  %1920 = vmatprep.subr.mxu0 0.0
  %1921 = vmatpush1.msra.mxu0 0.0
  %1922 = vmatprep.subr.mxu0 0.0
  %1923 = vmatpush1.msra.mxu0 0.0
  %1924 = vmatprep.subr.mxu0 0.0
  %1925 = vmatpush1.msra.mxu0 0.0
  %1926 = vmatprep.subr.mxu0 0.0
  %1927 = vmatpush1.msra.mxu0 0.0
  %1928 = vmatprep.subr.mxu0 0.0
  %1929 = vmatpush1.msra.mxu0 0.0
  %1930 = vmatprep.subr.mxu0 0.0
  %1931 = vmatpush1.msra.mxu0 0.0
  %1932 = vmatprep.subr.mxu0 0.0
  %1933 = vmatpush1.msra.mxu0 0.0
  %1934 = vmatprep.subr.mxu0 0.0
  %1935 = vmatpush1.msra.mxu0 0.0
  %1936 = vmatprep.subr.mxu0 0.0
  %1937 = vmatpush1.msra.mxu0 0.0
  %1938 = vmatprep.subr.mxu0 0.0
  %1939 = vmatpush1.msra.mxu0 0.0
  %1940 = vmatprep.subr.mxu0 0.0
  %1941 = vmatpush1.msra.mxu0 0.0
  %1942 = vmatprep.subr.mxu0 0.0
  %1943 = vmatpush1.msra.mxu0 0.0
  %1944 = vmatprep.subr.mxu0 0.0
  %1945 = vmatpush1.msra.mxu0 0.0
  %1946 = vmatprep.subr.mxu0 0.0
  %1947 = vmatpush1.msra.mxu0 0.0
  %1948 = vmatprep.subr.mxu0 0.0
  %1949 = vmatpush1.msra.mxu0 0.0
  %1950 = vmatprep.subr.mxu0 0.0
  %1951 = vmatpush1.msra.mxu0 0.0
  %1952 = vmatprep.subr.mxu0 0.0
  %1953 = vmatpush1.msra.mxu0 0.0
  %1954 = vmatprep.subr.mxu0 0.0
  %1955 = vmatpush1.msra.mxu0 0.0
  %1956 = vmatprep.subr.mxu0 0.0
  %1957 = vmatpush1.msra.mxu0 0.0
  %1958 = vmatprep.subr.mxu0 0.0
  %1959 = vmatpush1.msra.mxu0 0.0
  %1960 = vmatprep.subr.mxu0 0.0
  %1961 = vmatpush1.msra.mxu0 0.0
  %1962 = vmatprep.mubr.f32.mxu0 0.0
  %1963 = vmatmul.mubr.f32.gmra.mrb[0].mxu0 %v1876
  %v1964 = vpop.f32.mrb[0].mxu0
  %v1965 = vadd.f32 0.0, %v1964
  %v1966 = vpop.f32.mrb[0].mxu0
  %1967 = vmatprep.mubr.f32.mxu0 0.0
  %1968 = vmatmul.mubr.f32.gmra.mrb[0].mxu0 %v1879
  %v1969 = vpop.f32.mrb[0].mxu0
  %v1970 = vadd.f32 0.0, %v1969
  %v1971 = vpop.f32.mrb[0].mxu0
  %1972 = vmatprep.mubr.f32.mxu0 0.0
  %1973 = vmatmul.mubr.f32.gmra.mrb[0].mxu0 %v1882
  %v1974 = vpop.f32.mrb[0].mxu0
  %v1975 = vadd.f32 0.0, %v1974
  %v1976 = vpop.f32.mrb[0].mxu0
  %1977 = vmatprep.mubr.f32.mxu0 0.0
  %1978 = vmatmul.mubr.f32.gmra.mrb[0].mxu0 %v1885
  %v1979 = vpop.f32.mrb[0].mxu0
  %v1980 = vadd.f32 0.0, %v1979
  %v1981 = vpop.f32.mrb[0].mxu0
  %1982 = vmatprep.mubr.f32.mxu0 0.0
  %1983 = vmatmul.mubr.f32.gmra.mrb[0].mxu0 %v1888
  %v1984 = vpop.f32.mrb[0].mxu0
  %v1985 = vadd.f32 0.0, %v1984
  %v1986 = vpop.f32.mrb[0].mxu0
  %1987 = vmatprep.mubr.f32.mxu0 0.0
  %1988 = vmatmul.mubr.f32.gmra.mrb[0].mxu0 %v1891
  %v1989 = vpop.f32.mrb[0].mxu0
  %v1990 = vadd.f32 0.0, %v1989
  %v1991 = vpop.f32.mrb[0].mxu0
  %1992 = vmatprep.mubr.f32.mxu0 0.0
  %1993 = vmatmul.mubr.f32.gmra.mrb[0].mxu0 %v1894
  %v1994 = vpop.f32.mrb[0].mxu0
  %v1995 = vadd.f32 0.0, %v1994
  %v1996 = vpop.f32.mrb[0].mxu0
  %1997 = vdwg.mxu0
  %2005 = vrot.lane.b32.xlu0 %v1185, 8
  %v2006 = vpop.permute.xlu0 %2005
  %2007 = vrot.lane.b32.xlu0 %v1190, 8
  %v2008 = vpop.permute.xlu0 %2007
  %2009 = vrot.lane.b32.xlu0 %v1195, 8
  %v2010 = vpop.permute.xlu0 %2009
  %2011 = vrot.lane.b32.xlu0 %v1200, 8
  %v2012 = vpop.permute.xlu0 %2011
  %2013 = vrot.lane.b32.xlu0 %v1205, 8
  %v2014 = vpop.permute.xlu0 %2013
  %2015 = vrot.lane.b32.xlu0 %v1210, 8
  %v2016 = vpop.permute.xlu0 %2015
  %2017 = vrot.lane.b32.xlu0 %v1215, 8
  %v2018 = vpop.permute.xlu0 %2017
  %2033 = vrot.lane.b32.xlu0 %v1575, 16
  %v2034 = vpop.permute.xlu0 %2033
  %2035 = vrot.lane.b32.xlu0 %v1580, 16
  %v2036 = vpop.permute.xlu0 %2035
  %2037 = vrot.lane.b32.xlu0 %v1585, 16
  %v2038 = vpop.permute.xlu0 %2037
  %2039 = vrot.lane.b32.xlu0 %v1590, 16
  %v2040 = vpop.permute.xlu0 %2039
  %2041 = vrot.lane.b32.xlu0 %v1595, 16
  %v2042 = vpop.permute.xlu0 %2041
  %2043 = vrot.lane.b32.xlu0 %v1600, 16
  %v2044 = vpop.permute.xlu0 %2043
  %2045 = vrot.lane.b32.xlu0 %v1605, 16
  %v2046 = vpop.permute.xlu0 %2045
  %2061 = vrot.lane.b32.xlu0 %v1965, 24
  %v2062 = vpop.permute.xlu0 %2061
  %2063 = vrot.lane.b32.xlu0 %v1970, 24
  %v2064 = vpop.permute.xlu0 %2063
  %2065 = vrot.lane.b32.xlu0 %v1975, 24
  %v2066 = vpop.permute.xlu0 %2065
  %2067 = vrot.lane.b32.xlu0 %v1980, 24
  %v2068 = vpop.permute.xlu0 %2067
  %2069 = vrot.lane.b32.xlu0 %v1985, 24
  %v2070 = vpop.permute.xlu0 %2069
  %2071 = vrot.lane.b32.xlu0 %v1990, 24
  %v2072 = vpop.permute.xlu0 %2071
  %2073 = vrot.lane.b32.xlu0 %v1995, 24
  %v2074 = vpop.permute.xlu0 %2073
  %v2082 = vsel %vm462, %v795, %v2006
  %v2083 = vsel %vm462, %v800, %v2008
  %v2084 = vsel %vm462, %v805, %v2010
  %v2085 = vsel %vm462, %v810, %v2012
  %v2086 = vsel %vm462, %v815, %v2014
  %v2087 = vsel %vm462, %v820, %v2016
  %v2088 = vsel %vm462, %v825, %v2018
  %vm2089 = vcmask 130048
  %v2090 = vsel %vm2089, %v2082, %v2034
  %v2091 = vsel %vm2089, %v2083, %v2036
  %v2092 = vsel %vm2089, %v2084, %v2038
  %v2093 = vsel %vm2089, %v2085, %v2040
  %v2094 = vsel %vm2089, %v2086, %v2042
  %v2095 = vsel %vm2089, %v2087, %v2044
  %v2096 = vsel %vm2089, %v2088, %v2046
  %vm2097 = vcmask 195584
  %v2098 = vsel %vm2097, %v2090, %v2062
  %v2099 = vsel %vm2097, %v2091, %v2064
  %v2100 = vsel %vm2097, %v2092, %v2066
  %v2101 = vsel %vm2097, %v2093, %v2068
  %v2102 = vsel %vm2097, %v2094, %v2070
  %v2103 = vsel %vm2097, %v2095, %v2072
  %v2104 = vsel %vm2097, %v2096, %v2074
  %v2105 = vld [vmem:[%s7] sm:$0xff]
  %v2106 = vld [vmem:[%s7 + $0x8] sm:$0xff]
  %v2107 = vld [vmem:[%s7 + $0x10] sm:$0xff]
  %v2108 = vld [vmem:[%s7 + $0x18] sm:$0xff]
  %v2110 = vsel %vm215, %v2098, 0
  %v2113 = vsel %vm215, %v2099, 0
  %v2116 = vsel %vm215, %v2100, 0
  %v2119 = vsel %vm215, %v2101, 0
  %v2122 = vsel %vm215, %v2102, 0
  %v2125 = vsel %vm215, %v2103, 0
  %v2128 = vsel %vm215, %v2104, 0
  %2130 = vmatprep.subr.mxu0 0.0
  %2131 = vmatpush1.msra.mxu0 %v2105
  %2132 = vmatprep.subr.mxu0 0.0
  %2133 = vmatpush1.msra.mxu0 %v2106
  %2134 = vmatprep.subr.mxu0 0.0
  %2135 = vmatpush1.msra.mxu0 %v2107
  %2136 = vmatprep.subr.mxu0 0.0
  %2137 = vmatpush1.msra.mxu0 %v2108
  %2138 = vmatprep.subr.mxu0 0.0
  %2139 = vmatpush1.msra.mxu0 0.0
  %2140 = vmatprep.subr.mxu0 0.0
  %2141 = vmatpush1.msra.mxu0 0.0
  %2142 = vmatprep.subr.mxu0 0.0
  %2143 = vmatpush1.msra.mxu0 0.0
  %2144 = vmatprep.subr.mxu0 0.0
  %2145 = vmatpush1.msra.mxu0 0.0
  %2146 = vmatprep.subr.mxu0 0.0
  %2147 = vmatpush1.msra.mxu0 0.0
  %2148 = vmatprep.subr.mxu0 0.0
  %2149 = vmatpush1.msra.mxu0 0.0
  %2150 = vmatprep.subr.mxu0 0.0
  %2151 = vmatpush1.msra.mxu0 0.0
  %2152 = vmatprep.subr.mxu0 0.0
  %2153 = vmatpush1.msra.mxu0 0.0
  %2154 = vmatprep.subr.mxu0 0.0
  %2155 = vmatpush1.msra.mxu0 0.0
  %2156 = vmatprep.subr.mxu0 0.0
  %2157 = vmatpush1.msra.mxu0 0.0
  %2158 = vmatprep.subr.mxu0 0.0
  %2159 = vmatpush1.msra.mxu0 0.0
  %2160 = vmatprep.subr.mxu0 0.0
  %2161 = vmatpush1.msra.mxu0 0.0
  %2162 = vmatprep.subr.mxu0 0.0
  %2163 = vmatpush1.msra.mxu0 0.0
  %2164 = vmatprep.subr.mxu0 0.0
  %2165 = vmatpush1.msra.mxu0 0.0
  %2166 = vmatprep.subr.mxu0 0.0
  %2167 = vmatpush1.msra.mxu0 0.0
  %2168 = vmatprep.subr.mxu0 0.0
  %2169 = vmatpush1.msra.mxu0 0.0
  %2170 = vmatprep.subr.mxu0 0.0
  %2171 = vmatpush1.msra.mxu0 0.0
  %2172 = vmatprep.subr.mxu0 0.0
  %2173 = vmatpush1.msra.mxu0 0.0
  %2174 = vmatprep.subr.mxu0 0.0
  %2175 = vmatpush1.msra.mxu0 0.0
  %2176 = vmatprep.subr.mxu0 0.0
  %2177 = vmatpush1.msra.mxu0 0.0
  %2178 = vmatprep.subr.mxu0 0.0
  %2179 = vmatpush1.msra.mxu0 0.0
  %2180 = vmatprep.subr.mxu0 0.0
  %2181 = vmatpush1.msra.mxu0 0.0
  %2182 = vmatprep.subr.mxu0 0.0
  %2183 = vmatpush1.msra.mxu0 0.0
  %2184 = vmatprep.subr.mxu0 0.0
  %2185 = vmatpush1.msra.mxu0 0.0
  %2186 = vmatprep.subr.mxu0 0.0
  %2187 = vmatpush1.msra.mxu0 0.0
  %2188 = vmatprep.subr.mxu0 0.0
  %2189 = vmatpush1.msra.mxu0 0.0
  %2190 = vmatprep.subr.mxu0 0.0
  %2191 = vmatpush1.msra.mxu0 0.0
  %2192 = vmatprep.subr.mxu0 0.0
  %2193 = vmatpush1.msra.mxu0 0.0
  %2194 = vmatprep.mubr.f32.mxu0 0.0
  %2195 = vmatmul.mubr.f32.gmra.mrb[0].mxu0 %v2110
  %v2196 = vpop.f32.mrb[0].mxu0
  %v2197 = vadd.f32 0.0, %v2196
  %v2198 = vpop.f32.mrb[0].mxu0
  %2199 = vmatprep.mubr.f32.mxu0 0.0
  %2200 = vmatmul.mubr.f32.gmra.mrb[0].mxu0 %v2113
  %v2201 = vpop.f32.mrb[0].mxu0
  %v2202 = vadd.f32 0.0, %v2201
  %v2203 = vpop.f32.mrb[0].mxu0
  %2204 = vmatprep.mubr.f32.mxu0 0.0
  %2205 = vmatmul.mubr.f32.gmra.mrb[0].mxu0 %v2116
  %v2206 = vpop.f32.mrb[0].mxu0
  %v2207 = vadd.f32 0.0, %v2206
  %v2208 = vpop.f32.mrb[0].mxu0
  %2209 = vmatprep.mubr.f32.mxu0 0.0
  %2210 = vmatmul.mubr.f32.gmra.mrb[0].mxu0 %v2119
  %v2211 = vpop.f32.mrb[0].mxu0
  %v2212 = vadd.f32 0.0, %v2211
  %v2213 = vpop.f32.mrb[0].mxu0
  %2214 = vmatprep.mubr.f32.mxu0 0.0
  %2215 = vmatmul.mubr.f32.gmra.mrb[0].mxu0 %v2122
  %v2216 = vpop.f32.mrb[0].mxu0
  %v2217 = vadd.f32 0.0, %v2216
  %v2218 = vpop.f32.mrb[0].mxu0
  %2219 = vmatprep.mubr.f32.mxu0 0.0
  %2220 = vmatmul.mubr.f32.gmra.mrb[0].mxu0 %v2125
  %v2221 = vpop.f32.mrb[0].mxu0
  %v2222 = vadd.f32 0.0, %v2221
  %v2223 = vpop.f32.mrb[0].mxu0
  %2224 = vmatprep.mubr.f32.mxu0 0.0
  %2225 = vmatmul.mubr.f32.gmra.mrb[0].mxu0 %v2128
  %v2226 = vpop.f32.mrb[0].mxu0
  %v2227 = vadd.f32 0.0, %v2226
  %v2228 = vpop.f32.mrb[0].mxu0
  %2229 = vdwg.mxu0
  %v2230 = vadd.f32 %v194, %v2197
  %v2231 = vadd.f32 %v195, %v2202
  %v2232 = vadd.f32 %v196, %v2207
  %v2233 = vadd.f32 %v197, %v2212
  %v2234 = vadd.f32 %v198, %v2217
  %v2235 = vadd.f32 %v199, %v2222
  %v2236 = vadd.f32 %v200, %v2227
  %v2237 = vld [vmem:[%s8] sm:$0x1]
  %v2239 = vlaneseq
  %v2240 = vshrl.u32 %v2239, 7
  %v2241 = vsub.s32 0, %v2240
  %v2242 = vrot.slane %v2237, %v2241
  %v2244 = vadd.f32 %v2230, %v2242
  %v2245 = vadd.f32 %v2231, %v2242
  %v2246 = vadd.f32 %v2232, %v2242
  %v2247 = vadd.f32 %v2233, %v2242
  %v2248 = vadd.f32 %v2234, %v2242
  %v2249 = vadd.f32 %v2235, %v2242
  %v2250 = vadd.f32 %v2236, %v2242
  %v2251 = vsel %vm215, %v2244, 0.0
  %2252 = vadd.xlane.f32.xlu0 %v2251
  %v2253 = vpop.xlane.xlu0 %2252
  %v2254 = vsel %vm215, %v2245, 0.0
  %2255 = vadd.xlane.f32.xlu0 %v2254
  %v2256 = vpop.xlane.xlu0 %2255
  %v2257 = vsel %vm215, %v2246, 0.0
  %2258 = vadd.xlane.f32.xlu0 %v2257
  %v2259 = vpop.xlane.xlu0 %2258
  %v2260 = vsel %vm215, %v2247, 0.0
  %2261 = vadd.xlane.f32.xlu0 %v2260
  %v2262 = vpop.xlane.xlu0 %2261
  %v2263 = vsel %vm215, %v2248, 0.0
  %2264 = vadd.xlane.f32.xlu0 %v2263
  %v2265 = vpop.xlane.xlu0 %2264
  %v2266 = vsel %vm215, %v2249, 0.0
  %2267 = vadd.xlane.f32.xlu0 %v2266
  %v2268 = vpop.xlane.xlu0 %2267
  %v2269 = vsel %vm234, %v2250, 0.0
  %2270 = vadd.xlane.f32.xlu0 %v2269
  %v2271 = vpop.xlane.xlu0 %2270
  %v2272 = vmul.f32 %v2253, %v238
  %v2273 = vmul.f32 %v2256, %v238
  %v2274 = vmul.f32 %v2259, %v238
  %v2275 = vmul.f32 %v2262, %v238
  %v2276 = vmul.f32 %v2265, %v238
  %v2277 = vmul.f32 %v2268, %v238
  %v2278 = vmul.f32 %v2271, %v238
  %v2279 = vsub.f32 %v2244, %v2272
  %v2280 = vsub.f32 %v2245, %v2273
  %v2281 = vsub.f32 %v2246, %v2274
  %v2282 = vsub.f32 %v2247, %v2275
  %v2283 = vsub.f32 %v2248, %v2276
  %v2284 = vsub.f32 %v2249, %v2277
  %v2285 = vsub.f32 %v2250, %v2278
  %v2286 = vmul.f32 %v2279, %v2279
  %v2287 = vmul.f32 %v2280, %v2280
  %v2288 = vmul.f32 %v2281, %v2281
  %v2289 = vmul.f32 %v2282, %v2282
  %v2290 = vmul.f32 %v2283, %v2283
  %v2291 = vmul.f32 %v2284, %v2284
  %v2292 = vmul.f32 %v2285, %v2285
  %v2293 = vsel %vm215, %v2286, 0.0
  %2294 = vadd.xlane.f32.xlu0 %v2293
  %v2295 = vpop.xlane.xlu0 %2294
  %v2296 = vsel %vm215, %v2287, 0.0
  %2297 = vadd.xlane.f32.xlu0 %v2296
  %v2298 = vpop.xlane.xlu0 %2297
  %v2299 = vsel %vm215, %v2288, 0.0
  %2300 = vadd.xlane.f32.xlu0 %v2299
  %v2301 = vpop.xlane.xlu0 %2300
  %v2302 = vsel %vm215, %v2289, 0.0
  %2303 = vadd.xlane.f32.xlu0 %v2302
  %v2304 = vpop.xlane.xlu0 %2303
  %v2305 = vsel %vm215, %v2290, 0.0
  %2306 = vadd.xlane.f32.xlu0 %v2305
  %v2307 = vpop.xlane.xlu0 %2306
  %v2308 = vsel %vm215, %v2291, 0.0
  %2309 = vadd.xlane.f32.xlu0 %v2308
  %v2310 = vpop.xlane.xlu0 %2309
  %v2311 = vsel %vm234, %v2292, 0.0
  %2312 = vadd.xlane.f32.xlu0 %v2311
  %v2313 = vpop.xlane.xlu0 %2312
  %v2314 = vmul.f32 %v2295, %v238
  %v2315 = vmul.f32 %v2298, %v238
  %v2316 = vmul.f32 %v2301, %v238
  %v2317 = vmul.f32 %v2304, %v238
  %v2318 = vmul.f32 %v2307, %v238
  %v2319 = vmul.f32 %v2310, %v238
  %v2320 = vmul.f32 %v2313, %v238
  %v2321 = vadd.f32 %v2314, 1e-05
  %v2322 = vadd.f32 %v2315, 1e-05
  %v2323 = vadd.f32 %v2316, 1e-05
  %v2324 = vadd.f32 %v2317, 1e-05
  %v2325 = vadd.f32 %v2318, 1e-05
  %v2326 = vadd.f32 %v2319, 1e-05
  %v2327 = vadd.f32 %v2320, 1e-05
  %v2328 = vrsqrt.pop %v2321
  %v2329 = vrsqrt.pop %v2322
  %v2330 = vrsqrt.pop %v2323
  %v2331 = vrsqrt.pop %v2324
  %v2332 = vrsqrt.pop %v2325
  %v2333 = vrsqrt.pop %v2326
  %v2334 = vrsqrt.pop %v2327
  %v2335 = vmul.f32 %v2279, %v2328
  %v2336 = vmul.f32 %v2280, %v2329
  %v2337 = vmul.f32 %v2281, %v2330
  %v2338 = vmul.f32 %v2282, %v2331
  %v2339 = vmul.f32 %v2283, %v2332
  %v2340 = vmul.f32 %v2284, %v2333
  %v2341 = vmul.f32 %v2285, %v2334
  %v2342 = vld [vmem:[%s9] sm:$0xff]
  %v2343 = vld [vmem:[%s9 + $0x8] sm:$0xff]
  %v2344 = vld [vmem:[%s9 + $0x10] sm:$0xff]
  %v2345 = vld [vmem:[%s9 + $0x18] sm:$0xff]
  %v2346 = vld [vmem:[%s10] sm:$0x1]
  %v2348 = vlaneseq
  %v2349 = vshrl.u32 %v2348, 7
  %v2350 = vsub.s32 0, %v2349
  %v2351 = vrot.slane %v2346, %v2350
  %v2354 = vsel %vm215, %v2335, 0
  %v2357 = vsel %vm215, %v2336, 0
  %v2360 = vsel %vm215, %v2337, 0
  %v2363 = vsel %vm215, %v2338, 0
  %v2366 = vsel %vm215, %v2339, 0
  %v2369 = vsel %vm215, %v2340, 0
  %v2372 = vsel %vm215, %v2341, 0
  %2374 = vmatprep.subr.mxu0 0.0
  %2375 = vmatpush1.msra.mxu0 %v2342
  %2376 = vmatprep.subr.mxu0 0.0
  %2377 = vmatpush1.msra.mxu0 %v2343
  %2378 = vmatprep.subr.mxu0 0.0
  %2379 = vmatpush1.msra.mxu0 %v2344
  %2380 = vmatprep.subr.mxu0 0.0
  %2381 = vmatpush1.msra.mxu0 %v2345
  %2382 = vmatprep.subr.mxu0 0.0
  %2383 = vmatpush1.msra.mxu0 0.0
  %2384 = vmatprep.subr.mxu0 0.0
  %2385 = vmatpush1.msra.mxu0 0.0
  %2386 = vmatprep.subr.mxu0 0.0
  %2387 = vmatpush1.msra.mxu0 0.0
  %2388 = vmatprep.subr.mxu0 0.0
  %2389 = vmatpush1.msra.mxu0 0.0
  %2390 = vmatprep.subr.mxu0 0.0
  %2391 = vmatpush1.msra.mxu0 0.0
  %2392 = vmatprep.subr.mxu0 0.0
  %2393 = vmatpush1.msra.mxu0 0.0
  %2394 = vmatprep.subr.mxu0 0.0
  %2395 = vmatpush1.msra.mxu0 0.0
  %2396 = vmatprep.subr.mxu0 0.0
  %2397 = vmatpush1.msra.mxu0 0.0
  %2398 = vmatprep.subr.mxu0 0.0
  %2399 = vmatpush1.msra.mxu0 0.0
  %2400 = vmatprep.subr.mxu0 0.0
  %2401 = vmatpush1.msra.mxu0 0.0
  %2402 = vmatprep.subr.mxu0 0.0
  %2403 = vmatpush1.msra.mxu0 0.0
  %2404 = vmatprep.subr.mxu0 0.0
  %2405 = vmatpush1.msra.mxu0 0.0
  %2406 = vmatprep.subr.mxu0 0.0
  %2407 = vmatpush1.msra.mxu0 0.0
  %2408 = vmatprep.subr.mxu0 0.0
  %2409 = vmatpush1.msra.mxu0 0.0
  %2410 = vmatprep.subr.mxu0 0.0
  %2411 = vmatpush1.msra.mxu0 0.0
  %2412 = vmatprep.subr.mxu0 0.0
  %2413 = vmatpush1.msra.mxu0 0.0
  %2414 = vmatprep.subr.mxu0 0.0
  %2415 = vmatpush1.msra.mxu0 0.0
  %2416 = vmatprep.subr.mxu0 0.0
  %2417 = vmatpush1.msra.mxu0 0.0
  %2418 = vmatprep.subr.mxu0 0.0
  %2419 = vmatpush1.msra.mxu0 0.0
  %2420 = vmatprep.subr.mxu0 0.0
  %2421 = vmatpush1.msra.mxu0 0.0
  %2422 = vmatprep.subr.mxu0 0.0
  %2423 = vmatpush1.msra.mxu0 0.0
  %2424 = vmatprep.subr.mxu0 0.0
  %2425 = vmatpush1.msra.mxu0 0.0
  %2426 = vmatprep.subr.mxu0 0.0
  %2427 = vmatpush1.msra.mxu0 0.0
  %2428 = vmatprep.subr.mxu0 0.0
  %2429 = vmatpush1.msra.mxu0 0.0
  %2430 = vmatprep.subr.mxu0 0.0
  %2431 = vmatpush1.msra.mxu0 0.0
  %2432 = vmatprep.subr.mxu0 0.0
  %2433 = vmatpush1.msra.mxu0 0.0
  %2434 = vmatprep.subr.mxu0 0.0
  %2435 = vmatpush1.msra.mxu0 0.0
  %2436 = vmatprep.subr.mxu0 0.0
  %2437 = vmatpush1.msra.mxu0 0.0
  %2438 = vmatprep.mubr.f32.mxu0 0.0
  %2439 = vmatmul.mubr.f32.gmra.mrb[0].mxu0 %v2354
  %v2440 = vpop.f32.mrb[0].mxu0
  %v2441 = vadd.f32 %v2351, %v2440
  %v2442 = vpop.f32.mrb[0].mxu0
  %2443 = vmatprep.mubr.f32.mxu0 0.0
  %2444 = vmatmul.mubr.f32.gmra.mrb[0].mxu0 %v2357
  %v2445 = vpop.f32.mrb[0].mxu0
  %v2446 = vadd.f32 %v2351, %v2445
  %v2447 = vpop.f32.mrb[0].mxu0
  %2448 = vmatprep.mubr.f32.mxu0 0.0
  %2449 = vmatmul.mubr.f32.gmra.mrb[0].mxu0 %v2360
  %v2450 = vpop.f32.mrb[0].mxu0
  %v2451 = vadd.f32 %v2351, %v2450
  %v2452 = vpop.f32.mrb[0].mxu0
  %2453 = vmatprep.mubr.f32.mxu0 0.0
  %2454 = vmatmul.mubr.f32.gmra.mrb[0].mxu0 %v2363
  %v2455 = vpop.f32.mrb[0].mxu0
  %v2456 = vadd.f32 %v2351, %v2455
  %v2457 = vpop.f32.mrb[0].mxu0
  %2458 = vmatprep.mubr.f32.mxu0 0.0
  %2459 = vmatmul.mubr.f32.gmra.mrb[0].mxu0 %v2366
  %v2460 = vpop.f32.mrb[0].mxu0
  %v2461 = vadd.f32 %v2351, %v2460
  %v2462 = vpop.f32.mrb[0].mxu0
  %2463 = vmatprep.mubr.f32.mxu0 0.0
  %2464 = vmatmul.mubr.f32.gmra.mrb[0].mxu0 %v2369
  %v2465 = vpop.f32.mrb[0].mxu0
  %v2466 = vadd.f32 %v2351, %v2465
  %v2467 = vpop.f32.mrb[0].mxu0
  %2468 = vmatprep.mubr.f32.mxu0 0.0
  %2469 = vmatmul.mubr.f32.gmra.mrb[0].mxu0 %v2372
  %v2470 = vpop.f32.mrb[0].mxu0
  %v2471 = vadd.f32 %v2351, %v2470
  %v2472 = vpop.f32.mrb[0].mxu0
  %2473 = vdwg.mxu0
  %v2474 = vmul.f32 %v2441, 0.5
  %v2475 = vmul.f32 %v2446, 0.5
  %v2476 = vmul.f32 %v2451, 0.5
  %v2477 = vmul.f32 %v2456, 0.5
  %v2478 = vmul.f32 %v2461, 0.5
  %v2479 = vmul.f32 %v2466, 0.5
  %v2480 = vmul.f32 %v2471, 0.5
  %v2481 = vmul.f32 %v2441, 0.70710677
  %v2482 = vmul.f32 %v2446, 0.70710677
  %v2483 = vmul.f32 %v2451, 0.70710677
  %v2484 = vmul.f32 %v2456, 0.70710677
  %v2485 = vmul.f32 %v2461, 0.70710677
  %v2486 = vmul.f32 %v2466, 0.70710677
  %v2487 = vmul.f32 %v2471, 0.70710677
  %v2488 = verf.f32.pop %v2481
  %v2489 = verf.f32.pop %v2482
  %v2490 = verf.f32.pop %v2483
  %v2491 = verf.f32.pop %v2484
  %v2492 = verf.f32.pop %v2485
  %v2493 = verf.f32.pop %v2486
  %v2494 = verf.f32.pop %v2487
  %v2495 = vadd.f32 %v2488, 1.0
  %v2496 = vadd.f32 %v2489, 1.0
  %v2497 = vadd.f32 %v2490, 1.0
  %v2498 = vadd.f32 %v2491, 1.0
  %v2499 = vadd.f32 %v2492, 1.0
  %v2500 = vadd.f32 %v2493, 1.0
  %v2501 = vadd.f32 %v2494, 1.0
  %v2502 = vmul.f32 %v2474, %v2495
  %v2503 = vmul.f32 %v2475, %v2496
  %v2504 = vmul.f32 %v2476, %v2497
  %v2505 = vmul.f32 %v2477, %v2498
  %v2506 = vmul.f32 %v2478, %v2499
  %v2507 = vmul.f32 %v2479, %v2500
  %v2508 = vmul.f32 %v2480, %v2501
  %v2509 = vld [vmem:[%s11] sm:$0xff]
  %v2510 = vld [vmem:[%s11 + $0x8] sm:$0xff]
  %v2511 = vld [vmem:[%s11 + $0x10] sm:$0xff]
  %v2512 = vld [vmem:[%s11 + $0x18] sm:$0xff]
  %v2513 = vld [vmem:[%s11 + $0x20] sm:$0xff]
  %v2514 = vld [vmem:[%s11 + $0x28] sm:$0xff]
  %v2515 = vld [vmem:[%s11 + $0x30] sm:$0xff]
  %v2516 = vld [vmem:[%s11 + $0x38] sm:$0xff]
  %v2518 = vsel %vm72, %v2502, 0
  %v2521 = vsel %vm72, %v2503, 0
  %v2524 = vsel %vm72, %v2504, 0
  %v2527 = vsel %vm72, %v2505, 0
  %v2530 = vsel %vm72, %v2506, 0
  %v2533 = vsel %vm72, %v2507, 0
  %v2536 = vsel %vm72, %v2508, 0
  %2538 = vmatprep.subr.mxu0 0.0
  %2539 = vmatpush1.msra.mxu0 %v2509
  %2540 = vmatprep.subr.mxu0 0.0
  %2541 = vmatpush1.msra.mxu0 %v2510
  %2542 = vmatprep.subr.mxu0 0.0
  %2543 = vmatpush1.msra.mxu0 %v2511
  %2544 = vmatprep.subr.mxu0 0.0
  %2545 = vmatpush1.msra.mxu0 %v2512
  %2546 = vmatprep.subr.mxu0 0.0
  %2547 = vmatpush1.msra.mxu0 %v2513
  %2548 = vmatprep.subr.mxu0 0.0
  %2549 = vmatpush1.msra.mxu0 %v2514
  %2550 = vmatprep.subr.mxu0 0.0
  %2551 = vmatpush1.msra.mxu0 %v2515
  %2552 = vmatprep.subr.mxu0 0.0
  %2553 = vmatpush1.msra.mxu0 %v2516
  %2554 = vmatprep.subr.mxu0 0.0
  %2555 = vmatpush1.msra.mxu0 0.0
  %2556 = vmatprep.subr.mxu0 0.0
  %2557 = vmatpush1.msra.mxu0 0.0
  %2558 = vmatprep.subr.mxu0 0.0
  %2559 = vmatpush1.msra.mxu0 0.0
  %2560 = vmatprep.subr.mxu0 0.0
  %2561 = vmatpush1.msra.mxu0 0.0
  %2562 = vmatprep.subr.mxu0 0.0
  %2563 = vmatpush1.msra.mxu0 0.0
  %2564 = vmatprep.subr.mxu0 0.0
  %2565 = vmatpush1.msra.mxu0 0.0
  %2566 = vmatprep.subr.mxu0 0.0
  %2567 = vmatpush1.msra.mxu0 0.0
  %2568 = vmatprep.subr.mxu0 0.0
  %2569 = vmatpush1.msra.mxu0 0.0
  %2570 = vmatprep.subr.mxu0 0.0
  %2571 = vmatpush1.msra.mxu0 0.0
  %2572 = vmatprep.subr.mxu0 0.0
  %2573 = vmatpush1.msra.mxu0 0.0
  %2574 = vmatprep.subr.mxu0 0.0
  %2575 = vmatpush1.msra.mxu0 0.0
  %2576 = vmatprep.subr.mxu0 0.0
  %2577 = vmatpush1.msra.mxu0 0.0
  %2578 = vmatprep.subr.mxu0 0.0
  %2579 = vmatpush1.msra.mxu0 0.0
  %2580 = vmatprep.subr.mxu0 0.0
  %2581 = vmatpush1.msra.mxu0 0.0
  %2582 = vmatprep.subr.mxu0 0.0
  %2583 = vmatpush1.msra.mxu0 0.0
  %2584 = vmatprep.subr.mxu0 0.0
  %2585 = vmatpush1.msra.mxu0 0.0
  %2586 = vmatprep.subr.mxu0 0.0
  %2587 = vmatpush1.msra.mxu0 0.0
  %2588 = vmatprep.subr.mxu0 0.0
  %2589 = vmatpush1.msra.mxu0 0.0
  %2590 = vmatprep.subr.mxu0 0.0
  %2591 = vmatpush1.msra.mxu0 0.0
  %2592 = vmatprep.subr.mxu0 0.0
  %2593 = vmatpush1.msra.mxu0 0.0
  %2594 = vmatprep.subr.mxu0 0.0
  %2595 = vmatpush1.msra.mxu0 0.0
  %2596 = vmatprep.subr.mxu0 0.0
  %2597 = vmatpush1.msra.mxu0 0.0
  %2598 = vmatprep.subr.mxu0 0.0
  %2599 = vmatpush1.msra.mxu0 0.0
  %2600 = vmatprep.subr.mxu0 0.0
  %2601 = vmatpush1.msra.mxu0 0.0
  %2602 = vmatprep.mubr.f32.mxu0 0.0
  %2603 = vmatmul.mubr.f32.gmra.mrb[0].mxu0 %v2518
  %v2604 = vpop.f32.mrb[0].mxu0
  %v2605 = vadd.f32 0.0, %v2604
  %v2606 = vpop.f32.mrb[0].mxu0
  %2607 = vmatprep.mubr.f32.mxu0 0.0
  %2608 = vmatmul.mubr.f32.gmra.mrb[0].mxu0 %v2521
  %v2609 = vpop.f32.mrb[0].mxu0
  %v2610 = vadd.f32 0.0, %v2609
  %v2611 = vpop.f32.mrb[0].mxu0
  %2612 = vmatprep.mubr.f32.mxu0 0.0
  %2613 = vmatmul.mubr.f32.gmra.mrb[0].mxu0 %v2524
  %v2614 = vpop.f32.mrb[0].mxu0
  %v2615 = vadd.f32 0.0, %v2614
  %v2616 = vpop.f32.mrb[0].mxu0
  %2617 = vmatprep.mubr.f32.mxu0 0.0
  %2618 = vmatmul.mubr.f32.gmra.mrb[0].mxu0 %v2527
  %v2619 = vpop.f32.mrb[0].mxu0
  %v2620 = vadd.f32 0.0, %v2619
  %v2621 = vpop.f32.mrb[0].mxu0
  %2622 = vmatprep.mubr.f32.mxu0 0.0
  %2623 = vmatmul.mubr.f32.gmra.mrb[0].mxu0 %v2530
  %v2624 = vpop.f32.mrb[0].mxu0
  %v2625 = vadd.f32 0.0, %v2624
  %v2626 = vpop.f32.mrb[0].mxu0
  %2627 = vmatprep.mubr.f32.mxu0 0.0
  %2628 = vmatmul.mubr.f32.gmra.mrb[0].mxu0 %v2533
  %v2629 = vpop.f32.mrb[0].mxu0
  %v2630 = vadd.f32 0.0, %v2629
  %v2631 = vpop.f32.mrb[0].mxu0
  %2632 = vmatprep.mubr.f32.mxu0 0.0
  %2633 = vmatmul.mubr.f32.gmra.mrb[0].mxu0 %v2536
  %v2634 = vpop.f32.mrb[0].mxu0
  %v2635 = vadd.f32 0.0, %v2634
  %v2636 = vpop.f32.mrb[0].mxu0
  %2637 = vdwg.mxu0
  %v2638 = vadd.f32 %v2244, %v2605
  %v2639 = vadd.f32 %v2245, %v2610
  %v2640 = vadd.f32 %v2246, %v2615
  %v2641 = vadd.f32 %v2247, %v2620
  %v2642 = vadd.f32 %v2248, %v2625
  %v2643 = vadd.f32 %v2249, %v2630
  %v2644 = vadd.f32 %v2250, %v2635
  %v2645 = vld [vmem:[%s12] sm:$0x1]
  %v2647 = vlaneseq
  %v2648 = vshrl.u32 %v2647, 7
  %v2649 = vsub.s32 0, %v2648
  %v2650 = vrot.slane %v2645, %v2649
  %v2652 = vadd.f32 %v2638, %v2650
  %v2653 = vadd.f32 %v2639, %v2650
  %v2654 = vadd.f32 %v2640, %v2650
  %v2655 = vadd.f32 %v2641, %v2650
  %v2656 = vadd.f32 %v2642, %v2650
  %v2657 = vadd.f32 %v2643, %v2650
  %v2658 = vadd.f32 %v2644, %v2650
  %v2659 = vadd.f32 %v2652, %v208
  %v2660 = vadd.f32 %v2653, %v209
  %v2661 = vadd.f32 %v2654, %v210
  %v2662 = vadd.f32 %v2655, %v211
  %v2663 = vadd.f32 %v2656, %v212
  %v2664 = vadd.f32 %v2657, %v213
  %v2665 = vadd.f32 %v2658, %v214
  %v2666 = vsel %vm215, %v2659, 0.0
  %2667 = vadd.xlane.f32.xlu0 %v2666
  %v2668 = vpop.xlane.xlu0 %2667
  %v2669 = vsel %vm215, %v2660, 0.0
  %2670 = vadd.xlane.f32.xlu0 %v2669
  %v2671 = vpop.xlane.xlu0 %2670
  %v2672 = vsel %vm215, %v2661, 0.0
  %2673 = vadd.xlane.f32.xlu0 %v2672
  %v2674 = vpop.xlane.xlu0 %2673
  %v2675 = vsel %vm215, %v2662, 0.0
  %2676 = vadd.xlane.f32.xlu0 %v2675
  %v2677 = vpop.xlane.xlu0 %2676
  %v2678 = vsel %vm215, %v2663, 0.0
  %2679 = vadd.xlane.f32.xlu0 %v2678
  %v2680 = vpop.xlane.xlu0 %2679
  %v2681 = vsel %vm215, %v2664, 0.0
  %2682 = vadd.xlane.f32.xlu0 %v2681
  %v2683 = vpop.xlane.xlu0 %2682
  %v2684 = vsel %vm234, %v2665, 0.0
  %2685 = vadd.xlane.f32.xlu0 %v2684
  %v2686 = vpop.xlane.xlu0 %2685
  %v2687 = vmul.f32 %v2668, %v238
  %v2688 = vmul.f32 %v2671, %v238
  %v2689 = vmul.f32 %v2674, %v238
  %v2690 = vmul.f32 %v2677, %v238
  %v2691 = vmul.f32 %v2680, %v238
  %v2692 = vmul.f32 %v2683, %v238
  %v2693 = vmul.f32 %v2686, %v238
  %v2694 = vsub.f32 %v2659, %v2687
  %v2695 = vsub.f32 %v2660, %v2688
  %v2696 = vsub.f32 %v2661, %v2689
  %v2697 = vsub.f32 %v2662, %v2690
  %v2698 = vsub.f32 %v2663, %v2691
  %v2699 = vsub.f32 %v2664, %v2692
  %v2700 = vsub.f32 %v2665, %v2693
  %v2701 = vmul.f32 %v2694, %v2694
  %v2702 = vmul.f32 %v2695, %v2695
  %v2703 = vmul.f32 %v2696, %v2696
  %v2704 = vmul.f32 %v2697, %v2697
  %v2705 = vmul.f32 %v2698, %v2698
  %v2706 = vmul.f32 %v2699, %v2699
  %v2707 = vmul.f32 %v2700, %v2700
  %v2708 = vsel %vm215, %v2701, 0.0
  %2709 = vadd.xlane.f32.xlu0 %v2708
  %v2710 = vpop.xlane.xlu0 %2709
  %v2711 = vsel %vm215, %v2702, 0.0
  %2712 = vadd.xlane.f32.xlu0 %v2711
  %v2713 = vpop.xlane.xlu0 %2712
  %v2714 = vsel %vm215, %v2703, 0.0
  %2715 = vadd.xlane.f32.xlu0 %v2714
  %v2716 = vpop.xlane.xlu0 %2715
  %v2717 = vsel %vm215, %v2704, 0.0
  %2718 = vadd.xlane.f32.xlu0 %v2717
  %v2719 = vpop.xlane.xlu0 %2718
  %v2720 = vsel %vm215, %v2705, 0.0
  %2721 = vadd.xlane.f32.xlu0 %v2720
  %v2722 = vpop.xlane.xlu0 %2721
  %v2723 = vsel %vm215, %v2706, 0.0
  %2724 = vadd.xlane.f32.xlu0 %v2723
  %v2725 = vpop.xlane.xlu0 %2724
  %v2726 = vsel %vm234, %v2707, 0.0
  %2727 = vadd.xlane.f32.xlu0 %v2726
  %v2728 = vpop.xlane.xlu0 %2727
  %v2729 = vmul.f32 %v2710, %v238
  %v2730 = vmul.f32 %v2713, %v238
  %v2731 = vmul.f32 %v2716, %v238
  %v2732 = vmul.f32 %v2719, %v238
  %v2733 = vmul.f32 %v2722, %v238
  %v2734 = vmul.f32 %v2725, %v238
  %v2735 = vmul.f32 %v2728, %v238
  %v2736 = vadd.f32 %v2729, 1e-05
  %v2737 = vadd.f32 %v2730, 1e-05
  %v2738 = vadd.f32 %v2731, 1e-05
  %v2739 = vadd.f32 %v2732, 1e-05
  %v2740 = vadd.f32 %v2733, 1e-05
  %v2741 = vadd.f32 %v2734, 1e-05
  %v2742 = vadd.f32 %v2735, 1e-05
  %v2743 = vrsqrt.pop %v2736
  %v2744 = vrsqrt.pop %v2737
  %v2745 = vrsqrt.pop %v2738
  %v2746 = vrsqrt.pop %v2739
  %v2747 = vrsqrt.pop %v2740
  %v2748 = vrsqrt.pop %v2741
  %v2749 = vrsqrt.pop %v2742
  %v2750 = vmul.f32 %v2694, %v2743
  %v2751 = vmul.f32 %v2695, %v2744
  %v2752 = vmul.f32 %v2696, %v2745
  %v2753 = vmul.f32 %v2697, %v2746
  %v2754 = vmul.f32 %v2698, %v2747
  %v2755 = vmul.f32 %v2699, %v2748
  %v2756 = vmul.f32 %v2700, %v2749
  %s2757 = scalar_lea.vmem %s5, 32
  %v2758 = vld [vmem:[%s2757] sm:$0xff]
  %v2759 = vld [vmem:[%s2757 + $0x8] sm:$0xff]
  %v2760 = vld [vmem:[%s2757 + $0x10] sm:$0xff]
  %v2761 = vld [vmem:[%s2757 + $0x18] sm:$0xff]
  %s2762 = scalar_lea.vmem %s6, 1
  %v2763 = vld [vmem:[%s2762] sm:$0x1]
  %v2765 = vlaneseq
  %v2766 = vshrl.u32 %v2765, 7
  %v2767 = vsub.s32 0, %v2766
  %v2768 = vrot.slane %v2763, %v2767
  %v2771 = vsel %vm215, %v2750, 0
  %v2774 = vsel %vm215, %v2751, 0
  %v2777 = vsel %vm215, %v2752, 0
  %v2780 = vsel %vm215, %v2753, 0
  %v2783 = vsel %vm215, %v2754, 0
  %v2786 = vsel %vm215, %v2755, 0
  %v2789 = vsel %vm215, %v2756, 0
  %2791 = vmatprep.subr.mxu0 0.0
  %2792 = vmatpush1.msra.mxu0 %v2758
  %2793 = vmatprep.subr.mxu0 0.0
  %2794 = vmatpush1.msra.mxu0 %v2759
  %2795 = vmatprep.subr.mxu0 0.0
  %2796 = vmatpush1.msra.mxu0 %v2760
  %2797 = vmatprep.subr.mxu0 0.0
  %2798 = vmatpush1.msra.mxu0 %v2761
  %2799 = vmatprep.subr.mxu0 0.0
  %2800 = vmatpush1.msra.mxu0 0.0
  %2801 = vmatprep.subr.mxu0 0.0
  %2802 = vmatpush1.msra.mxu0 0.0
  %2803 = vmatprep.subr.mxu0 0.0
  %2804 = vmatpush1.msra.mxu0 0.0
  %2805 = vmatprep.subr.mxu0 0.0
  %2806 = vmatpush1.msra.mxu0 0.0
  %2807 = vmatprep.subr.mxu0 0.0
  %2808 = vmatpush1.msra.mxu0 0.0
  %2809 = vmatprep.subr.mxu0 0.0
  %2810 = vmatpush1.msra.mxu0 0.0
  %2811 = vmatprep.subr.mxu0 0.0
  %2812 = vmatpush1.msra.mxu0 0.0
  %2813 = vmatprep.subr.mxu0 0.0
  %2814 = vmatpush1.msra.mxu0 0.0
  %2815 = vmatprep.subr.mxu0 0.0
  %2816 = vmatpush1.msra.mxu0 0.0
  %2817 = vmatprep.subr.mxu0 0.0
  %2818 = vmatpush1.msra.mxu0 0.0
  %2819 = vmatprep.subr.mxu0 0.0
  %2820 = vmatpush1.msra.mxu0 0.0
  %2821 = vmatprep.subr.mxu0 0.0
  %2822 = vmatpush1.msra.mxu0 0.0
  %2823 = vmatprep.subr.mxu0 0.0
  %2824 = vmatpush1.msra.mxu0 0.0
  %2825 = vmatprep.subr.mxu0 0.0
  %2826 = vmatpush1.msra.mxu0 0.0
  %2827 = vmatprep.subr.mxu0 0.0
  %2828 = vmatpush1.msra.mxu0 0.0
  %2829 = vmatprep.subr.mxu0 0.0
  %2830 = vmatpush1.msra.mxu0 0.0
  %2831 = vmatprep.subr.mxu0 0.0
  %2832 = vmatpush1.msra.mxu0 0.0
  %2833 = vmatprep.subr.mxu0 0.0
  %2834 = vmatpush1.msra.mxu0 0.0
  %2835 = vmatprep.subr.mxu0 0.0
  %2836 = vmatpush1.msra.mxu0 0.0
  %2837 = vmatprep.subr.mxu0 0.0
  %2838 = vmatpush1.msra.mxu0 0.0
  %2839 = vmatprep.subr.mxu0 0.0
  %2840 = vmatpush1.msra.mxu0 0.0
  %2841 = vmatprep.subr.mxu0 0.0
  %2842 = vmatpush1.msra.mxu0 0.0
  %2843 = vmatprep.subr.mxu0 0.0
  %2844 = vmatpush1.msra.mxu0 0.0
  %2845 = vmatprep.subr.mxu0 0.0
  %2846 = vmatpush1.msra.mxu0 0.0
  %2847 = vmatprep.subr.mxu0 0.0
  %2848 = vmatpush1.msra.mxu0 0.0
  %2849 = vmatprep.subr.mxu0 0.0
  %2850 = vmatpush1.msra.mxu0 0.0
  %2851 = vmatprep.subr.mxu0 0.0
  %2852 = vmatpush1.msra.mxu0 0.0
  %2853 = vmatprep.subr.mxu0 0.0
  %2854 = vmatpush1.msra.mxu0 0.0
  %2855 = vmatprep.mubr.f32.mxu0 0.0
  %2856 = vmatmul.mubr.f32.gmra.mrb[0].mxu0 %v2771
  %v2857 = vpop.f32.mrb[0].mxu0
  %v2858 = vadd.f32 %v2768, %v2857
  %v2859 = vpop.f32.mrb[0].mxu0
  %2860 = vmatprep.mubr.f32.mxu0 0.0
  %2861 = vmatmul.mubr.f32.gmra.mrb[0].mxu0 %v2774
  %v2862 = vpop.f32.mrb[0].mxu0
  %v2863 = vadd.f32 %v2768, %v2862
  %v2864 = vpop.f32.mrb[0].mxu0
  %2865 = vmatprep.mubr.f32.mxu0 0.0
  %2866 = vmatmul.mubr.f32.gmra.mrb[0].mxu0 %v2777
  %v2867 = vpop.f32.mrb[0].mxu0
  %v2868 = vadd.f32 %v2768, %v2867
  %v2869 = vpop.f32.mrb[0].mxu0
  %2870 = vmatprep.mubr.f32.mxu0 0.0
  %2871 = vmatmul.mubr.f32.gmra.mrb[0].mxu0 %v2780
  %v2872 = vpop.f32.mrb[0].mxu0
  %v2873 = vadd.f32 %v2768, %v2872
  %v2874 = vpop.f32.mrb[0].mxu0
  %2875 = vmatprep.mubr.f32.mxu0 0.0
  %2876 = vmatmul.mubr.f32.gmra.mrb[0].mxu0 %v2783
  %v2877 = vpop.f32.mrb[0].mxu0
  %v2878 = vadd.f32 %v2768, %v2877
  %v2879 = vpop.f32.mrb[0].mxu0
  %2880 = vmatprep.mubr.f32.mxu0 0.0
  %2881 = vmatmul.mubr.f32.gmra.mrb[0].mxu0 %v2786
  %v2882 = vpop.f32.mrb[0].mxu0
  %v2883 = vadd.f32 %v2768, %v2882
  %v2884 = vpop.f32.mrb[0].mxu0
  %2885 = vmatprep.mubr.f32.mxu0 0.0
  %2886 = vmatmul.mubr.f32.gmra.mrb[0].mxu0 %v2789
  %v2887 = vpop.f32.mrb[0].mxu0
  %v2888 = vadd.f32 %v2768, %v2887
  %v2889 = vpop.f32.mrb[0].mxu0
  %2890 = vdwg.mxu0
  %2898 = vrot.lane.b32.xlu0 %v2858, 96
  %v2899 = vpop.permute.xlu0 %2898
  %2900 = vrot.lane.b32.xlu0 %v2863, 96
  %v2901 = vpop.permute.xlu0 %2900
  %2902 = vrot.lane.b32.xlu0 %v2868, 96
  %v2903 = vpop.permute.xlu0 %2902
  %2904 = vrot.lane.b32.xlu0 %v2873, 96
  %v2905 = vpop.permute.xlu0 %2904
  %2906 = vrot.lane.b32.xlu0 %v2878, 96
  %v2907 = vpop.permute.xlu0 %2906
  %2908 = vrot.lane.b32.xlu0 %v2883, 96
  %v2909 = vpop.permute.xlu0 %2908
  %2910 = vrot.lane.b32.xlu0 %v2888, 96
  %v2911 = vpop.permute.xlu0 %2910
  %v2912 = vsel %vm462, %v2858, 0
  %v2914 = vsel %vm462, %v2863, 0
  %v2916 = vsel %vm462, %v2868, 0
  %v2918 = vsel %vm462, %v2873, 0
  %v2920 = vsel %vm462, %v2878, 0
  %v2922 = vsel %vm462, %v2883, 0
  %v2924 = vsel %vm462, %v2888, 0
  %v2926 = vsel %vm462, %v2899, 0
  %v2928 = vsel %vm462, %v2901, 0
  %v2930 = vsel %vm462, %v2903, 0
  %v2932 = vsel %vm462, %v2905, 0
  %v2934 = vsel %vm462, %v2907, 0
  %v2936 = vsel %vm462, %v2909, 0
  %v2938 = vsel %vm462, %v2911, 0
  %2940 = vmatprep.subr.mxu0 0.0
  %2941 = vmatpush1.xpose.msra.mxu0 %v2926
  %2942 = vmatprep.subr.mxu0 0.0
  %2943 = vmatpush1.xpose.msra.mxu0 %v2928
  %2944 = vmatprep.subr.mxu0 0.0
  %2945 = vmatpush1.xpose.msra.mxu0 %v2930
  %2946 = vmatprep.subr.mxu0 0.0
  %2947 = vmatpush1.xpose.msra.mxu0 %v2932
  %2948 = vmatprep.subr.mxu0 0.0
  %2949 = vmatpush1.xpose.msra.mxu0 %v2934
  %2950 = vmatprep.subr.mxu0 0.0
  %2951 = vmatpush1.xpose.msra.mxu0 %v2936
  %2952 = vmatprep.subr.mxu0 0.0
  %2953 = vmatpush1.xpose.msra.mxu0 %v2938
  %2954 = vmatprep.subr.mxu0 0.0
  %2955 = vmatpush1.xpose.msra.mxu0 0.0
  %2956 = vmatprep.subr.mxu0 0.0
  %2957 = vmatpush1.xpose.msra.mxu0 0.0
  %2958 = vmatprep.subr.mxu0 0.0
  %2959 = vmatpush1.xpose.msra.mxu0 0.0
  %2960 = vmatprep.subr.mxu0 0.0
  %2961 = vmatpush1.xpose.msra.mxu0 0.0
  %2962 = vmatprep.subr.mxu0 0.0
  %2963 = vmatpush1.xpose.msra.mxu0 0.0
  %2964 = vmatprep.subr.mxu0 0.0
  %2965 = vmatpush1.xpose.msra.mxu0 0.0
  %2966 = vmatprep.subr.mxu0 0.0
  %2967 = vmatpush1.xpose.msra.mxu0 0.0
  %2968 = vmatprep.subr.mxu0 0.0
  %2969 = vmatpush1.xpose.msra.mxu0 0.0
  %2970 = vmatprep.subr.mxu0 0.0
  %2971 = vmatpush1.xpose.msra.mxu0 0.0
  %2972 = vmatprep.subr.mxu0 0.0
  %2973 = vmatpush1.xpose.msra.mxu0 0.0
  %2974 = vmatprep.subr.mxu0 0.0
  %2975 = vmatpush1.xpose.msra.mxu0 0.0
  %2976 = vmatprep.subr.mxu0 0.0
  %2977 = vmatpush1.xpose.msra.mxu0 0.0
  %2978 = vmatprep.subr.mxu0 0.0
  %2979 = vmatpush1.xpose.msra.mxu0 0.0
  %2980 = vmatprep.subr.mxu0 0.0
  %2981 = vmatpush1.xpose.msra.mxu0 0.0
  %2982 = vmatprep.subr.mxu0 0.0
  %2983 = vmatpush1.xpose.msra.mxu0 0.0
  %2984 = vmatprep.subr.mxu0 0.0
  %2985 = vmatpush1.xpose.msra.mxu0 0.0
  %2986 = vmatprep.subr.mxu0 0.0
  %2987 = vmatpush1.xpose.msra.mxu0 0.0
  %2988 = vmatprep.subr.mxu0 0.0
  %2989 = vmatpush1.xpose.msra.mxu0 0.0
  %2990 = vmatprep.subr.mxu0 0.0
  %2991 = vmatpush1.xpose.msra.mxu0 0.0
  %2992 = vmatprep.subr.mxu0 0.0
  %2993 = vmatpush1.xpose.msra.mxu0 0.0
  %2994 = vmatprep.subr.mxu0 0.0
  %2995 = vmatpush1.xpose.msra.mxu0 0.0
  %2996 = vmatprep.subr.mxu0 0.0
  %2997 = vmatpush1.xpose.msra.mxu0 0.0
  %2998 = vmatprep.subr.mxu0 0.0
  %2999 = vmatpush1.xpose.msra.mxu0 0.0
  %3000 = vmatprep.subr.mxu0 0.0
  %3001 = vmatpush1.xpose.msra.mxu0 0.0
  %3002 = vmatprep.subr.mxu0 0.0
  %3003 = vmatpush1.xpose.msra.mxu0 0.0
  %3004 = vmatprep.mubr.f32.mxu0 0.0
  %3005 = vmatmul.mubr.f32.gmra.mrb[0].mxu0 %v2912
  %v3006 = vpop.f32.mrb[0].mxu0
  %v3007 = vadd.f32 0.0, %v3006
  %v3008 = vpop.f32.mrb[0].mxu0
  %3009 = vmatprep.mubr.f32.mxu0 0.0
  %3010 = vmatmul.mubr.f32.gmra.mrb[0].mxu0 %v2914
  %v3011 = vpop.f32.mrb[0].mxu0
  %v3012 = vadd.f32 0.0, %v3011
  %v3013 = vpop.f32.mrb[0].mxu0
  %3014 = vmatprep.mubr.f32.mxu0 0.0
  %3015 = vmatmul.mubr.f32.gmra.mrb[0].mxu0 %v2916
  %v3016 = vpop.f32.mrb[0].mxu0
  %v3017 = vadd.f32 0.0, %v3016
  %v3018 = vpop.f32.mrb[0].mxu0
  %3019 = vmatprep.mubr.f32.mxu0 0.0
  %3020 = vmatmul.mubr.f32.gmra.mrb[0].mxu0 %v2918
  %v3021 = vpop.f32.mrb[0].mxu0
  %v3022 = vadd.f32 0.0, %v3021
  %v3023 = vpop.f32.mrb[0].mxu0
  %3024 = vmatprep.mubr.f32.mxu0 0.0
  %3025 = vmatmul.mubr.f32.gmra.mrb[0].mxu0 %v2920
  %v3026 = vpop.f32.mrb[0].mxu0
  %v3027 = vadd.f32 0.0, %v3026
  %v3028 = vpop.f32.mrb[0].mxu0
  %3029 = vmatprep.mubr.f32.mxu0 0.0
  %3030 = vmatmul.mubr.f32.gmra.mrb[0].mxu0 %v2922
  %v3031 = vpop.f32.mrb[0].mxu0
  %v3032 = vadd.f32 0.0, %v3031
  %v3033 = vpop.f32.mrb[0].mxu0
  %3034 = vmatprep.mubr.f32.mxu0 0.0
  %3035 = vmatmul.mubr.f32.gmra.mrb[0].mxu0 %v2924
  %v3036 = vpop.f32.mrb[0].mxu0
  %v3037 = vadd.f32 0.0, %v3036
  %v3038 = vpop.f32.mrb[0].mxu0
  %3039 = vdwg.mxu0
  %v3040 = vmul.f32 %v3007, 0.35355338
  %v3041 = vmul.f32 %v3012, 0.35355338
  %v3042 = vmul.f32 %v3017, 0.35355338
  %v3043 = vmul.f32 %v3022, 0.35355338
  %v3044 = vmul.f32 %v3027, 0.35355338
  %v3045 = vmul.f32 %v3032, 0.35355338
  %v3046 = vmul.f32 %v3037, 0.35355338
  %v3047 = vadd.f32 %v3040, %v201
  %v3048 = vadd.f32 %v3041, %v202
  %v3049 = vadd.f32 %v3042, %v203
  %v3050 = vadd.f32 %v3043, %v204
  %v3051 = vadd.f32 %v3044, %v205
  %v3052 = vadd.f32 %v3045, %v206
  %v3053 = vadd.f32 %v3046, %v207
  %v3054 = vsel %vm605, %v3047, -inf
  %3055 = vmax.xlane.f32.xlu0 %v3054
  %v3056 = vpop.xlane.xlu0 %3055
  %v3057 = vsel %vm605, %v3048, -inf
  %3058 = vmax.xlane.f32.xlu0 %v3057
  %v3059 = vpop.xlane.xlu0 %3058
  %v3060 = vsel %vm605, %v3049, -inf
  %3061 = vmax.xlane.f32.xlu0 %v3060
  %v3062 = vpop.xlane.xlu0 %3061
  %v3063 = vsel %vm605, %v3050, -inf
  %3064 = vmax.xlane.f32.xlu0 %v3063
  %v3065 = vpop.xlane.xlu0 %3064
  %v3066 = vsel %vm605, %v3051, -inf
  %3067 = vmax.xlane.f32.xlu0 %v3066
  %v3068 = vpop.xlane.xlu0 %3067
  %v3069 = vsel %vm605, %v3052, -inf
  %3070 = vmax.xlane.f32.xlu0 %v3069
  %v3071 = vpop.xlane.xlu0 %3070
  %v3072 = vsel %vm624, %v3053, -inf
  %3073 = vmax.xlane.f32.xlu0 %v3072
  %v3074 = vpop.xlane.xlu0 %3073
  %v3075 = vsub.f32 %v3047, %v3056
  %v3076 = vsub.f32 %v3048, %v3059
  %v3077 = vsub.f32 %v3049, %v3062
  %v3078 = vsub.f32 %v3050, %v3065
  %v3079 = vsub.f32 %v3051, %v3068
  %v3080 = vsub.f32 %v3052, %v3071
  %v3081 = vsub.f32 %v3053, %v3074
  %v3082 = vmul.f32 %v3075, 1.442695
  %v3083 = vpow.pop %v3082
  %v3084 = vmul.f32 %v3076, 1.442695
  %v3085 = vpow.pop %v3084
  %v3086 = vmul.f32 %v3077, 1.442695
  %v3087 = vpow.pop %v3086
  %v3088 = vmul.f32 %v3078, 1.442695
  %v3089 = vpow.pop %v3088
  %v3090 = vmul.f32 %v3079, 1.442695
  %v3091 = vpow.pop %v3090
  %v3092 = vmul.f32 %v3080, 1.442695
  %v3093 = vpow.pop %v3092
  %v3094 = vmul.f32 %v3081, 1.442695
  %v3095 = vpow.pop %v3094
  %v3096 = vsel %vm605, %v3083, 0.0
  %3097 = vadd.xlane.f32.xlu0 %v3096
  %v3098 = vpop.xlane.xlu0 %3097
  %v3099 = vsel %vm605, %v3085, 0.0
  %3100 = vadd.xlane.f32.xlu0 %v3099
  %v3101 = vpop.xlane.xlu0 %3100
  %v3102 = vsel %vm605, %v3087, 0.0
  %3103 = vadd.xlane.f32.xlu0 %v3102
  %v3104 = vpop.xlane.xlu0 %3103
  %v3105 = vsel %vm605, %v3089, 0.0
  %3106 = vadd.xlane.f32.xlu0 %v3105
  %v3107 = vpop.xlane.xlu0 %3106
  %v3108 = vsel %vm605, %v3091, 0.0
  %3109 = vadd.xlane.f32.xlu0 %v3108
  %v3110 = vpop.xlane.xlu0 %3109
  %v3111 = vsel %vm605, %v3093, 0.0
  %3112 = vadd.xlane.f32.xlu0 %v3111
  %v3113 = vpop.xlane.xlu0 %3112
  %v3114 = vsel %vm624, %v3095, 0.0
  %3115 = vadd.xlane.f32.xlu0 %v3114
  %v3116 = vpop.xlane.xlu0 %3115
  %v3117 = vrcp.pop %v3098
  %v3118 = vrcp.pop %v3101
  %v3119 = vrcp.pop %v3104
  %v3120 = vrcp.pop %v3107
  %v3121 = vrcp.pop %v3110
  %v3122 = vrcp.pop %v3113
  %v3123 = vrcp.pop %v3116
  %v3124 = vmul.f32 %v3083, %v3117
  %v3125 = vmul.f32 %v3085, %v3118
  %v3126 = vmul.f32 %v3087, %v3119
  %v3127 = vmul.f32 %v3089, %v3120
  %v3128 = vmul.f32 %v3091, %v3121
  %v3129 = vmul.f32 %v3093, %v3122
  %v3130 = vmul.f32 %v3095, %v3123
  %3131 = vrot.lane.b32.xlu0 %v2858, 64
  %v3132 = vpop.permute.xlu0 %3131
  %3133 = vrot.lane.b32.xlu0 %v2863, 64
  %v3134 = vpop.permute.xlu0 %3133
  %3135 = vrot.lane.b32.xlu0 %v2868, 64
  %v3136 = vpop.permute.xlu0 %3135
  %3137 = vrot.lane.b32.xlu0 %v2873, 64
  %v3138 = vpop.permute.xlu0 %3137
  %3139 = vrot.lane.b32.xlu0 %v2878, 64
  %v3140 = vpop.permute.xlu0 %3139
  %3141 = vrot.lane.b32.xlu0 %v2883, 64
  %v3142 = vpop.permute.xlu0 %3141
  %3143 = vrot.lane.b32.xlu0 %v2888, 64
  %v3144 = vpop.permute.xlu0 %3143
  %v3152 = vsel %vm605, %v3124, 0
  %v3155 = vsel %vm605, %v3125, 0
  %v3158 = vsel %vm605, %v3126, 0
  %v3161 = vsel %vm605, %v3127, 0
  %v3164 = vsel %vm605, %v3128, 0
  %v3167 = vsel %vm605, %v3129, 0
  %v3170 = vsel %vm605, %v3130, 0
  %v3172 = vsel %vm725, %v3144, 0
  %3174 = vmatprep.subr.mxu0 0.0
  %3175 = vmatpush1.msra.mxu0 %v3132
  %3176 = vmatprep.subr.mxu0 0.0
  %3177 = vmatpush1.msra.mxu0 %v3134
  %3178 = vmatprep.subr.mxu0 0.0
  %3179 = vmatpush1.msra.mxu0 %v3136
  %3180 = vmatprep.subr.mxu0 0.0
  %3181 = vmatpush1.msra.mxu0 %v3138
  %3182 = vmatprep.subr.mxu0 0.0
  %3183 = vmatpush1.msra.mxu0 %v3140
  %3184 = vmatprep.subr.mxu0 0.0
  %3185 = vmatpush1.msra.mxu0 %v3142
  %3186 = vmatprep.subr.mxu0 0.0
  %3187 = vmatpush1.msra.mxu0 %v3172
  %3188 = vmatprep.subr.mxu0 0.0
  %3189 = vmatpush1.msra.mxu0 0.0
  %3190 = vmatprep.subr.mxu0 0.0
  %3191 = vmatpush1.msra.mxu0 0.0
  %3192 = vmatprep.subr.mxu0 0.0
  %3193 = vmatpush1.msra.mxu0 0.0
  %3194 = vmatprep.subr.mxu0 0.0
  %3195 = vmatpush1.msra.mxu0 0.0
  %3196 = vmatprep.subr.mxu0 0.0
  %3197 = vmatpush1.msra.mxu0 0.0
  %3198 = vmatprep.subr.mxu0 0.0
  %3199 = vmatpush1.msra.mxu0 0.0
  %3200 = vmatprep.subr.mxu0 0.0
  %3201 = vmatpush1.msra.mxu0 0.0
  %3202 = vmatprep.subr.mxu0 0.0
  %3203 = vmatpush1.msra.mxu0 0.0
  %3204 = vmatprep.subr.mxu0 0.0
  %3205 = vmatpush1.msra.mxu0 0.0
  %3206 = vmatprep.subr.mxu0 0.0
  %3207 = vmatpush1.msra.mxu0 0.0
  %3208 = vmatprep.subr.mxu0 0.0
  %3209 = vmatpush1.msra.mxu0 0.0
  %3210 = vmatprep.subr.mxu0 0.0
  %3211 = vmatpush1.msra.mxu0 0.0
  %3212 = vmatprep.subr.mxu0 0.0
  %3213 = vmatpush1.msra.mxu0 0.0
  %3214 = vmatprep.subr.mxu0 0.0
  %3215 = vmatpush1.msra.mxu0 0.0
  %3216 = vmatprep.subr.mxu0 0.0
  %3217 = vmatpush1.msra.mxu0 0.0
  %3218 = vmatprep.subr.mxu0 0.0
  %3219 = vmatpush1.msra.mxu0 0.0
  %3220 = vmatprep.subr.mxu0 0.0
  %3221 = vmatpush1.msra.mxu0 0.0
  %3222 = vmatprep.subr.mxu0 0.0
  %3223 = vmatpush1.msra.mxu0 0.0
  %3224 = vmatprep.subr.mxu0 0.0
  %3225 = vmatpush1.msra.mxu0 0.0
  %3226 = vmatprep.subr.mxu0 0.0
  %3227 = vmatpush1.msra.mxu0 0.0
  %3228 = vmatprep.subr.mxu0 0.0
  %3229 = vmatpush1.msra.mxu0 0.0
  %3230 = vmatprep.subr.mxu0 0.0
  %3231 = vmatpush1.msra.mxu0 0.0
  %3232 = vmatprep.subr.mxu0 0.0
  %3233 = vmatpush1.msra.mxu0 0.0
  %3234 = vmatprep.subr.mxu0 0.0
  %3235 = vmatpush1.msra.mxu0 0.0
  %3236 = vmatprep.subr.mxu0 0.0
  %3237 = vmatpush1.msra.mxu0 0.0
  %3238 = vmatprep.mubr.f32.mxu0 0.0
  %3239 = vmatmul.mubr.f32.gmra.mrb[0].mxu0 %v3152
  %v3240 = vpop.f32.mrb[0].mxu0
  %v3241 = vadd.f32 0.0, %v3240
  %v3242 = vpop.f32.mrb[0].mxu0
  %3243 = vmatprep.mubr.f32.mxu0 0.0
  %3244 = vmatmul.mubr.f32.gmra.mrb[0].mxu0 %v3155
  %v3245 = vpop.f32.mrb[0].mxu0
  %v3246 = vadd.f32 0.0, %v3245
  %v3247 = vpop.f32.mrb[0].mxu0
  %3248 = vmatprep.mubr.f32.mxu0 0.0
  %3249 = vmatmul.mubr.f32.gmra.mrb[0].mxu0 %v3158
  %v3250 = vpop.f32.mrb[0].mxu0
  %v3251 = vadd.f32 0.0, %v3250
  %v3252 = vpop.f32.mrb[0].mxu0
  %3253 = vmatprep.mubr.f32.mxu0 0.0
  %3254 = vmatmul.mubr.f32.gmra.mrb[0].mxu0 %v3161
  %v3255 = vpop.f32.mrb[0].mxu0
  %v3256 = vadd.f32 0.0, %v3255
  %v3257 = vpop.f32.mrb[0].mxu0
  %3258 = vmatprep.mubr.f32.mxu0 0.0
  %3259 = vmatmul.mubr.f32.gmra.mrb[0].mxu0 %v3164
  %v3260 = vpop.f32.mrb[0].mxu0
  %v3261 = vadd.f32 0.0, %v3260
  %v3262 = vpop.f32.mrb[0].mxu0
  %3263 = vmatprep.mubr.f32.mxu0 0.0
  %3264 = vmatmul.mubr.f32.gmra.mrb[0].mxu0 %v3167
  %v3265 = vpop.f32.mrb[0].mxu0
  %v3266 = vadd.f32 0.0, %v3265
  %v3267 = vpop.f32.mrb[0].mxu0
  %3268 = vmatprep.mubr.f32.mxu0 0.0
  %3269 = vmatmul.mubr.f32.gmra.mrb[0].mxu0 %v3170
  %v3270 = vpop.f32.mrb[0].mxu0
  %v3271 = vadd.f32 0.0, %v3270
  %v3272 = vpop.f32.mrb[0].mxu0
  %3273 = vdwg.mxu0
  %3274 = vrot.lane.b32.xlu0 %v2858, 120
  %v3275 = vpop.permute.xlu0 %3274
  %3276 = vrot.lane.b32.xlu0 %v2863, 120
  %v3277 = vpop.permute.xlu0 %3276
  %3278 = vrot.lane.b32.xlu0 %v2868, 120
  %v3279 = vpop.permute.xlu0 %3278
  %3280 = vrot.lane.b32.xlu0 %v2873, 120
  %v3281 = vpop.permute.xlu0 %3280
  %3282 = vrot.lane.b32.xlu0 %v2878, 120
  %v3283 = vpop.permute.xlu0 %3282
  %3284 = vrot.lane.b32.xlu0 %v2883, 120
  %v3285 = vpop.permute.xlu0 %3284
  %3286 = vrot.lane.b32.xlu0 %v2888, 120
  %v3287 = vpop.permute.xlu0 %3286
  %3288 = vrot.lane.b32.xlu0 %v2858, 88
  %v3289 = vpop.permute.xlu0 %3288
  %3290 = vrot.lane.b32.xlu0 %v2863, 88
  %v3291 = vpop.permute.xlu0 %3290
  %3292 = vrot.lane.b32.xlu0 %v2868, 88
  %v3293 = vpop.permute.xlu0 %3292
  %3294 = vrot.lane.b32.xlu0 %v2873, 88
  %v3295 = vpop.permute.xlu0 %3294
  %3296 = vrot.lane.b32.xlu0 %v2878, 88
  %v3297 = vpop.permute.xlu0 %3296
  %3298 = vrot.lane.b32.xlu0 %v2883, 88
  %v3299 = vpop.permute.xlu0 %3298
  %3300 = vrot.lane.b32.xlu0 %v2888, 88
  %v3301 = vpop.permute.xlu0 %3300
  %v3302 = vsel %vm462, %v3275, 0
  %v3304 = vsel %vm462, %v3277, 0
  %v3306 = vsel %vm462, %v3279, 0
  %v3308 = vsel %vm462, %v3281, 0
  %v3310 = vsel %vm462, %v3283, 0
  %v3312 = vsel %vm462, %v3285, 0
  %v3314 = vsel %vm462, %v3287, 0
  %v3316 = vsel %vm462, %v3289, 0
  %v3318 = vsel %vm462, %v3291, 0
  %v3320 = vsel %vm462, %v3293, 0
  %v3322 = vsel %vm462, %v3295, 0
  %v3324 = vsel %vm462, %v3297, 0
  %v3326 = vsel %vm462, %v3299, 0
  %v3328 = vsel %vm462, %v3301, 0
  %3330 = vmatprep.subr.mxu0 0.0
  %3331 = vmatpush1.xpose.msra.mxu0 %v3316
  %3332 = vmatprep.subr.mxu0 0.0
  %3333 = vmatpush1.xpose.msra.mxu0 %v3318
  %3334 = vmatprep.subr.mxu0 0.0
  %3335 = vmatpush1.xpose.msra.mxu0 %v3320
  %3336 = vmatprep.subr.mxu0 0.0
  %3337 = vmatpush1.xpose.msra.mxu0 %v3322
  %3338 = vmatprep.subr.mxu0 0.0
  %3339 = vmatpush1.xpose.msra.mxu0 %v3324
  %3340 = vmatprep.subr.mxu0 0.0
  %3341 = vmatpush1.xpose.msra.mxu0 %v3326
  %3342 = vmatprep.subr.mxu0 0.0
  %3343 = vmatpush1.xpose.msra.mxu0 %v3328
  %3344 = vmatprep.subr.mxu0 0.0
  %3345 = vmatpush1.xpose.msra.mxu0 0.0
  %3346 = vmatprep.subr.mxu0 0.0
  %3347 = vmatpush1.xpose.msra.mxu0 0.0
  %3348 = vmatprep.subr.mxu0 0.0
  %3349 = vmatpush1.xpose.msra.mxu0 0.0
  %3350 = vmatprep.subr.mxu0 0.0
  %3351 = vmatpush1.xpose.msra.mxu0 0.0
  %3352 = vmatprep.subr.mxu0 0.0
  %3353 = vmatpush1.xpose.msra.mxu0 0.0
  %3354 = vmatprep.subr.mxu0 0.0
  %3355 = vmatpush1.xpose.msra.mxu0 0.0
  %3356 = vmatprep.subr.mxu0 0.0
  %3357 = vmatpush1.xpose.msra.mxu0 0.0
  %3358 = vmatprep.subr.mxu0 0.0
  %3359 = vmatpush1.xpose.msra.mxu0 0.0
  %3360 = vmatprep.subr.mxu0 0.0
  %3361 = vmatpush1.xpose.msra.mxu0 0.0
  %3362 = vmatprep.subr.mxu0 0.0
  %3363 = vmatpush1.xpose.msra.mxu0 0.0
  %3364 = vmatprep.subr.mxu0 0.0
  %3365 = vmatpush1.xpose.msra.mxu0 0.0
  %3366 = vmatprep.subr.mxu0 0.0
  %3367 = vmatpush1.xpose.msra.mxu0 0.0
  %3368 = vmatprep.subr.mxu0 0.0
  %3369 = vmatpush1.xpose.msra.mxu0 0.0
  %3370 = vmatprep.subr.mxu0 0.0
  %3371 = vmatpush1.xpose.msra.mxu0 0.0
  %3372 = vmatprep.subr.mxu0 0.0
  %3373 = vmatpush1.xpose.msra.mxu0 0.0
  %3374 = vmatprep.subr.mxu0 0.0
  %3375 = vmatpush1.xpose.msra.mxu0 0.0
  %3376 = vmatprep.subr.mxu0 0.0
  %3377 = vmatpush1.xpose.msra.mxu0 0.0
  %3378 = vmatprep.subr.mxu0 0.0
  %3379 = vmatpush1.xpose.msra.mxu0 0.0
  %3380 = vmatprep.subr.mxu0 0.0
  %3381 = vmatpush1.xpose.msra.mxu0 0.0
  %3382 = vmatprep.subr.mxu0 0.0
  %3383 = vmatpush1.xpose.msra.mxu0 0.0
  %3384 = vmatprep.subr.mxu0 0.0
  %3385 = vmatpush1.xpose.msra.mxu0 0.0
  %3386 = vmatprep.subr.mxu0 0.0
  %3387 = vmatpush1.xpose.msra.mxu0 0.0
  %3388 = vmatprep.subr.mxu0 0.0
  %3389 = vmatpush1.xpose.msra.mxu0 0.0
  %3390 = vmatprep.subr.mxu0 0.0
  %3391 = vmatpush1.xpose.msra.mxu0 0.0
  %3392 = vmatprep.subr.mxu0 0.0
  %3393 = vmatpush1.xpose.msra.mxu0 0.0
  %3394 = vmatprep.mubr.f32.mxu0 0.0
  %3395 = vmatmul.mubr.f32.gmra.mrb[0].mxu0 %v3302
  %v3396 = vpop.f32.mrb[0].mxu0
  %v3397 = vadd.f32 0.0, %v3396
  %v3398 = vpop.f32.mrb[0].mxu0
  %3399 = vmatprep.mubr.f32.mxu0 0.0
  %3400 = vmatmul.mubr.f32.gmra.mrb[0].mxu0 %v3304
  %v3401 = vpop.f32.mrb[0].mxu0
  %v3402 = vadd.f32 0.0, %v3401
  %v3403 = vpop.f32.mrb[0].mxu0
  %3404 = vmatprep.mubr.f32.mxu0 0.0
  %3405 = vmatmul.mubr.f32.gmra.mrb[0].mxu0 %v3306
  %v3406 = vpop.f32.mrb[0].mxu0
  %v3407 = vadd.f32 0.0, %v3406
  %v3408 = vpop.f32.mrb[0].mxu0
  %3409 = vmatprep.mubr.f32.mxu0 0.0
  %3410 = vmatmul.mubr.f32.gmra.mrb[0].mxu0 %v3308
  %v3411 = vpop.f32.mrb[0].mxu0
  %v3412 = vadd.f32 0.0, %v3411
  %v3413 = vpop.f32.mrb[0].mxu0
  %3414 = vmatprep.mubr.f32.mxu0 0.0
  %3415 = vmatmul.mubr.f32.gmra.mrb[0].mxu0 %v3310
  %v3416 = vpop.f32.mrb[0].mxu0
  %v3417 = vadd.f32 0.0, %v3416
  %v3418 = vpop.f32.mrb[0].mxu0
  %3419 = vmatprep.mubr.f32.mxu0 0.0
  %3420 = vmatmul.mubr.f32.gmra.mrb[0].mxu0 %v3312
  %v3421 = vpop.f32.mrb[0].mxu0
  %v3422 = vadd.f32 0.0, %v3421
  %v3423 = vpop.f32.mrb[0].mxu0
  %3424 = vmatprep.mubr.f32.mxu0 0.0
  %3425 = vmatmul.mubr.f32.gmra.mrb[0].mxu0 %v3314
  %v3426 = vpop.f32.mrb[0].mxu0
  %v3427 = vadd.f32 0.0, %v3426
  %v3428 = vpop.f32.mrb[0].mxu0
  %3429 = vdwg.mxu0
  %v3430 = vmul.f32 %v3397, 0.35355338
  %v3431 = vmul.f32 %v3402, 0.35355338
  %v3432 = vmul.f32 %v3407, 0.35355338
  %v3433 = vmul.f32 %v3412, 0.35355338
  %v3434 = vmul.f32 %v3417, 0.35355338
  %v3435 = vmul.f32 %v3422, 0.35355338
  %v3436 = vmul.f32 %v3427, 0.35355338
  %v3437 = vadd.f32 %v3430, %v201
  %v3438 = vadd.f32 %v3431, %v202
  %v3439 = vadd.f32 %v3432, %v203
  %v3440 = vadd.f32 %v3433, %v204
  %v3441 = vadd.f32 %v3434, %v205
  %v3442 = vadd.f32 %v3435, %v206
  %v3443 = vadd.f32 %v3436, %v207
  %v3444 = vsel %vm605, %v3437, -inf
  %3445 = vmax.xlane.f32.xlu0 %v3444
  %v3446 = vpop.xlane.xlu0 %3445
  %v3447 = vsel %vm605, %v3438, -inf
  %3448 = vmax.xlane.f32.xlu0 %v3447
  %v3449 = vpop.xlane.xlu0 %3448
  %v3450 = vsel %vm605, %v3439, -inf
  %3451 = vmax.xlane.f32.xlu0 %v3450
  %v3452 = vpop.xlane.xlu0 %3451
  %v3453 = vsel %vm605, %v3440, -inf
  %3454 = vmax.xlane.f32.xlu0 %v3453
  %v3455 = vpop.xlane.xlu0 %3454
  %v3456 = vsel %vm605, %v3441, -inf
  %3457 = vmax.xlane.f32.xlu0 %v3456
  %v3458 = vpop.xlane.xlu0 %3457
  %v3459 = vsel %vm605, %v3442, -inf
  %3460 = vmax.xlane.f32.xlu0 %v3459
  %v3461 = vpop.xlane.xlu0 %3460
  %v3462 = vsel %vm624, %v3443, -inf
  %3463 = vmax.xlane.f32.xlu0 %v3462
  %v3464 = vpop.xlane.xlu0 %3463
  %v3465 = vsub.f32 %v3437, %v3446
  %v3466 = vsub.f32 %v3438, %v3449
  %v3467 = vsub.f32 %v3439, %v3452
  %v3468 = vsub.f32 %v3440, %v3455
  %v3469 = vsub.f32 %v3441, %v3458
  %v3470 = vsub.f32 %v3442, %v3461
  %v3471 = vsub.f32 %v3443, %v3464
  %v3472 = vmul.f32 %v3465, 1.442695
  %v3473 = vpow.pop %v3472
  %v3474 = vmul.f32 %v3466, 1.442695
  %v3475 = vpow.pop %v3474
  %v3476 = vmul.f32 %v3467, 1.442695
  %v3477 = vpow.pop %v3476
  %v3478 = vmul.f32 %v3468, 1.442695
  %v3479 = vpow.pop %v3478
  %v3480 = vmul.f32 %v3469, 1.442695
  %v3481 = vpow.pop %v3480
  %v3482 = vmul.f32 %v3470, 1.442695
  %v3483 = vpow.pop %v3482
  %v3484 = vmul.f32 %v3471, 1.442695
  %v3485 = vpow.pop %v3484
  %v3486 = vsel %vm605, %v3473, 0.0
  %3487 = vadd.xlane.f32.xlu0 %v3486
  %v3488 = vpop.xlane.xlu0 %3487
  %v3489 = vsel %vm605, %v3475, 0.0
  %3490 = vadd.xlane.f32.xlu0 %v3489
  %v3491 = vpop.xlane.xlu0 %3490
  %v3492 = vsel %vm605, %v3477, 0.0
  %3493 = vadd.xlane.f32.xlu0 %v3492
  %v3494 = vpop.xlane.xlu0 %3493
  %v3495 = vsel %vm605, %v3479, 0.0
  %3496 = vadd.xlane.f32.xlu0 %v3495
  %v3497 = vpop.xlane.xlu0 %3496
  %v3498 = vsel %vm605, %v3481, 0.0
  %3499 = vadd.xlane.f32.xlu0 %v3498
  %v3500 = vpop.xlane.xlu0 %3499
  %v3501 = vsel %vm605, %v3483, 0.0
  %3502 = vadd.xlane.f32.xlu0 %v3501
  %v3503 = vpop.xlane.xlu0 %3502
  %v3504 = vsel %vm624, %v3485, 0.0
  %3505 = vadd.xlane.f32.xlu0 %v3504
  %v3506 = vpop.xlane.xlu0 %3505
  %v3507 = vrcp.pop %v3488
  %v3508 = vrcp.pop %v3491
  %v3509 = vrcp.pop %v3494
  %v3510 = vrcp.pop %v3497
  %v3511 = vrcp.pop %v3500
  %v3512 = vrcp.pop %v3503
  %v3513 = vrcp.pop %v3506
  %v3514 = vmul.f32 %v3473, %v3507
  %v3515 = vmul.f32 %v3475, %v3508
  %v3516 = vmul.f32 %v3477, %v3509
  %v3517 = vmul.f32 %v3479, %v3510
  %v3518 = vmul.f32 %v3481, %v3511
  %v3519 = vmul.f32 %v3483, %v3512
  %v3520 = vmul.f32 %v3485, %v3513
  %3521 = vrot.lane.b32.xlu0 %v2858, 56
  %v3522 = vpop.permute.xlu0 %3521
  %3523 = vrot.lane.b32.xlu0 %v2863, 56
  %v3524 = vpop.permute.xlu0 %3523
  %3525 = vrot.lane.b32.xlu0 %v2868, 56
  %v3526 = vpop.permute.xlu0 %3525
  %3527 = vrot.lane.b32.xlu0 %v2873, 56
  %v3528 = vpop.permute.xlu0 %3527
  %3529 = vrot.lane.b32.xlu0 %v2878, 56
  %v3530 = vpop.permute.xlu0 %3529
  %3531 = vrot.lane.b32.xlu0 %v2883, 56
  %v3532 = vpop.permute.xlu0 %3531
  %3533 = vrot.lane.b32.xlu0 %v2888, 56
  %v3534 = vpop.permute.xlu0 %3533
  %v3542 = vsel %vm605, %v3514, 0
  %v3545 = vsel %vm605, %v3515, 0
  %v3548 = vsel %vm605, %v3516, 0
  %v3551 = vsel %vm605, %v3517, 0
  %v3554 = vsel %vm605, %v3518, 0
  %v3557 = vsel %vm605, %v3519, 0
  %v3560 = vsel %vm605, %v3520, 0
  %v3562 = vsel %vm725, %v3534, 0
  %3564 = vmatprep.subr.mxu0 0.0
  %3565 = vmatpush1.msra.mxu0 %v3522
  %3566 = vmatprep.subr.mxu0 0.0
  %3567 = vmatpush1.msra.mxu0 %v3524
  %3568 = vmatprep.subr.mxu0 0.0
  %3569 = vmatpush1.msra.mxu0 %v3526
  %3570 = vmatprep.subr.mxu0 0.0
  %3571 = vmatpush1.msra.mxu0 %v3528
  %3572 = vmatprep.subr.mxu0 0.0
  %3573 = vmatpush1.msra.mxu0 %v3530
  %3574 = vmatprep.subr.mxu0 0.0
  %3575 = vmatpush1.msra.mxu0 %v3532
  %3576 = vmatprep.subr.mxu0 0.0
  %3577 = vmatpush1.msra.mxu0 %v3562
  %3578 = vmatprep.subr.mxu0 0.0
  %3579 = vmatpush1.msra.mxu0 0.0
  %3580 = vmatprep.subr.mxu0 0.0
  %3581 = vmatpush1.msra.mxu0 0.0
  %3582 = vmatprep.subr.mxu0 0.0
  %3583 = vmatpush1.msra.mxu0 0.0
  %3584 = vmatprep.subr.mxu0 0.0
  %3585 = vmatpush1.msra.mxu0 0.0
  %3586 = vmatprep.subr.mxu0 0.0
  %3587 = vmatpush1.msra.mxu0 0.0
  %3588 = vmatprep.subr.mxu0 0.0
  %3589 = vmatpush1.msra.mxu0 0.0
  %3590 = vmatprep.subr.mxu0 0.0
  %3591 = vmatpush1.msra.mxu0 0.0
  %3592 = vmatprep.subr.mxu0 0.0
  %3593 = vmatpush1.msra.mxu0 0.0
  %3594 = vmatprep.subr.mxu0 0.0
  %3595 = vmatpush1.msra.mxu0 0.0
  %3596 = vmatprep.subr.mxu0 0.0
  %3597 = vmatpush1.msra.mxu0 0.0
  %3598 = vmatprep.subr.mxu0 0.0
  %3599 = vmatpush1.msra.mxu0 0.0
  %3600 = vmatprep.subr.mxu0 0.0
  %3601 = vmatpush1.msra.mxu0 0.0
  %3602 = vmatprep.subr.mxu0 0.0
  %3603 = vmatpush1.msra.mxu0 0.0
  %3604 = vmatprep.subr.mxu0 0.0
  %3605 = vmatpush1.msra.mxu0 0.0
  %3606 = vmatprep.subr.mxu0 0.0
  %3607 = vmatpush1.msra.mxu0 0.0
  %3608 = vmatprep.subr.mxu0 0.0
  %3609 = vmatpush1.msra.mxu0 0.0
  %3610 = vmatprep.subr.mxu0 0.0
  %3611 = vmatpush1.msra.mxu0 0.0
  %3612 = vmatprep.subr.mxu0 0.0
  %3613 = vmatpush1.msra.mxu0 0.0
  %3614 = vmatprep.subr.mxu0 0.0
  %3615 = vmatpush1.msra.mxu0 0.0
  %3616 = vmatprep.subr.mxu0 0.0
  %3617 = vmatpush1.msra.mxu0 0.0
  %3618 = vmatprep.subr.mxu0 0.0
  %3619 = vmatpush1.msra.mxu0 0.0
  %3620 = vmatprep.subr.mxu0 0.0
  %3621 = vmatpush1.msra.mxu0 0.0
  %3622 = vmatprep.subr.mxu0 0.0
  %3623 = vmatpush1.msra.mxu0 0.0
  %3624 = vmatprep.subr.mxu0 0.0
  %3625 = vmatpush1.msra.mxu0 0.0
  %3626 = vmatprep.subr.mxu0 0.0
  %3627 = vmatpush1.msra.mxu0 0.0
  %3628 = vmatprep.mubr.f32.mxu0 0.0
  %3629 = vmatmul.mubr.f32.gmra.mrb[0].mxu0 %v3542
  %v3630 = vpop.f32.mrb[0].mxu0
  %v3631 = vadd.f32 0.0, %v3630
  %v3632 = vpop.f32.mrb[0].mxu0
  %3633 = vmatprep.mubr.f32.mxu0 0.0
  %3634 = vmatmul.mubr.f32.gmra.mrb[0].mxu0 %v3545
  %v3635 = vpop.f32.mrb[0].mxu0
  %v3636 = vadd.f32 0.0, %v3635
  %v3637 = vpop.f32.mrb[0].mxu0
  %3638 = vmatprep.mubr.f32.mxu0 0.0
  %3639 = vmatmul.mubr.f32.gmra.mrb[0].mxu0 %v3548
  %v3640 = vpop.f32.mrb[0].mxu0
  %v3641 = vadd.f32 0.0, %v3640
  %v3642 = vpop.f32.mrb[0].mxu0
  %3643 = vmatprep.mubr.f32.mxu0 0.0
  %3644 = vmatmul.mubr.f32.gmra.mrb[0].mxu0 %v3551
  %v3645 = vpop.f32.mrb[0].mxu0
  %v3646 = vadd.f32 0.0, %v3645
  %v3647 = vpop.f32.mrb[0].mxu0
  %3648 = vmatprep.mubr.f32.mxu0 0.0
  %3649 = vmatmul.mubr.f32.gmra.mrb[0].mxu0 %v3554
  %v3650 = vpop.f32.mrb[0].mxu0
  %v3651 = vadd.f32 0.0, %v3650
  %v3652 = vpop.f32.mrb[0].mxu0
  %3653 = vmatprep.mubr.f32.mxu0 0.0
  %3654 = vmatmul.mubr.f32.gmra.mrb[0].mxu0 %v3557
  %v3655 = vpop.f32.mrb[0].mxu0
  %v3656 = vadd.f32 0.0, %v3655
  %v3657 = vpop.f32.mrb[0].mxu0
  %3658 = vmatprep.mubr.f32.mxu0 0.0
  %3659 = vmatmul.mubr.f32.gmra.mrb[0].mxu0 %v3560
  %v3660 = vpop.f32.mrb[0].mxu0
  %v3661 = vadd.f32 0.0, %v3660
  %v3662 = vpop.f32.mrb[0].mxu0
  %3663 = vdwg.mxu0
  %3664 = vrot.lane.b32.xlu0 %v2858, 112
  %v3665 = vpop.permute.xlu0 %3664
  %3666 = vrot.lane.b32.xlu0 %v2863, 112
  %v3667 = vpop.permute.xlu0 %3666
  %3668 = vrot.lane.b32.xlu0 %v2868, 112
  %v3669 = vpop.permute.xlu0 %3668
  %3670 = vrot.lane.b32.xlu0 %v2873, 112
  %v3671 = vpop.permute.xlu0 %3670
  %3672 = vrot.lane.b32.xlu0 %v2878, 112
  %v3673 = vpop.permute.xlu0 %3672
  %3674 = vrot.lane.b32.xlu0 %v2883, 112
  %v3675 = vpop.permute.xlu0 %3674
  %3676 = vrot.lane.b32.xlu0 %v2888, 112
  %v3677 = vpop.permute.xlu0 %3676
  %3678 = vrot.lane.b32.xlu0 %v2858, 80
  %v3679 = vpop.permute.xlu0 %3678
  %3680 = vrot.lane.b32.xlu0 %v2863, 80
  %v3681 = vpop.permute.xlu0 %3680
  %3682 = vrot.lane.b32.xlu0 %v2868, 80
  %v3683 = vpop.permute.xlu0 %3682
  %3684 = vrot.lane.b32.xlu0 %v2873, 80
  %v3685 = vpop.permute.xlu0 %3684
  %3686 = vrot.lane.b32.xlu0 %v2878, 80
  %v3687 = vpop.permute.xlu0 %3686
  %3688 = vrot.lane.b32.xlu0 %v2883, 80
  %v3689 = vpop.permute.xlu0 %3688
  %3690 = vrot.lane.b32.xlu0 %v2888, 80
  %v3691 = vpop.permute.xlu0 %3690
  %v3692 = vsel %vm462, %v3665, 0
  %v3694 = vsel %vm462, %v3667, 0
  %v3696 = vsel %vm462, %v3669, 0
  %v3698 = vsel %vm462, %v3671, 0
  %v3700 = vsel %vm462, %v3673, 0
  %v3702 = vsel %vm462, %v3675, 0
  %v3704 = vsel %vm462, %v3677, 0
  %v3706 = vsel %vm462, %v3679, 0
  %v3708 = vsel %vm462, %v3681, 0
  %v3710 = vsel %vm462, %v3683, 0
  %v3712 = vsel %vm462, %v3685, 0
  %v3714 = vsel %vm462, %v3687, 0
  %v3716 = vsel %vm462, %v3689, 0
  %v3718 = vsel %vm462, %v3691, 0
  %3720 = vmatprep.subr.mxu0 0.0
  %3721 = vmatpush1.xpose.msra.mxu0 %v3706
  %3722 = vmatprep.subr.mxu0 0.0
  %3723 = vmatpush1.xpose.msra.mxu0 %v3708
  %3724 = vmatprep.subr.mxu0 0.0
  %3725 = vmatpush1.xpose.msra.mxu0 %v3710
  %3726 = vmatprep.subr.mxu0 0.0
  %3727 = vmatpush1.xpose.msra.mxu0 %v3712
  %3728 = vmatprep.subr.mxu0 0.0
  %3729 = vmatpush1.xpose.msra.mxu0 %v3714
  %3730 = vmatprep.subr.mxu0 0.0
  %3731 = vmatpush1.xpose.msra.mxu0 %v3716
  %3732 = vmatprep.subr.mxu0 0.0
  %3733 = vmatpush1.xpose.msra.mxu0 %v3718
  %3734 = vmatprep.subr.mxu0 0.0
  %3735 = vmatpush1.xpose.msra.mxu0 0.0
  %3736 = vmatprep.subr.mxu0 0.0
  %3737 = vmatpush1.xpose.msra.mxu0 0.0
  %3738 = vmatprep.subr.mxu0 0.0
  %3739 = vmatpush1.xpose.msra.mxu0 0.0
  %3740 = vmatprep.subr.mxu0 0.0
  %3741 = vmatpush1.xpose.msra.mxu0 0.0
  %3742 = vmatprep.subr.mxu0 0.0
  %3743 = vmatpush1.xpose.msra.mxu0 0.0
  %3744 = vmatprep.subr.mxu0 0.0
  %3745 = vmatpush1.xpose.msra.mxu0 0.0
  %3746 = vmatprep.subr.mxu0 0.0
  %3747 = vmatpush1.xpose.msra.mxu0 0.0
  %3748 = vmatprep.subr.mxu0 0.0
  %3749 = vmatpush1.xpose.msra.mxu0 0.0
  %3750 = vmatprep.subr.mxu0 0.0
  %3751 = vmatpush1.xpose.msra.mxu0 0.0
  %3752 = vmatprep.subr.mxu0 0.0
  %3753 = vmatpush1.xpose.msra.mxu0 0.0
  %3754 = vmatprep.subr.mxu0 0.0
  %3755 = vmatpush1.xpose.msra.mxu0 0.0
  %3756 = vmatprep.subr.mxu0 0.0
  %3757 = vmatpush1.xpose.msra.mxu0 0.0
  %3758 = vmatprep.subr.mxu0 0.0
  %3759 = vmatpush1.xpose.msra.mxu0 0.0
  %3760 = vmatprep.subr.mxu0 0.0
  %3761 = vmatpush1.xpose.msra.mxu0 0.0
  %3762 = vmatprep.subr.mxu0 0.0
  %3763 = vmatpush1.xpose.msra.mxu0 0.0
  %3764 = vmatprep.subr.mxu0 0.0
  %3765 = vmatpush1.xpose.msra.mxu0 0.0
  %3766 = vmatprep.subr.mxu0 0.0
  %3767 = vmatpush1.xpose.msra.mxu0 0.0
  %3768 = vmatprep.subr.mxu0 0.0
  %3769 = vmatpush1.xpose.msra.mxu0 0.0
  %3770 = vmatprep.subr.mxu0 0.0
  %3771 = vmatpush1.xpose.msra.mxu0 0.0
  %3772 = vmatprep.subr.mxu0 0.0
  %3773 = vmatpush1.xpose.msra.mxu0 0.0
  %3774 = vmatprep.subr.mxu0 0.0
  %3775 = vmatpush1.xpose.msra.mxu0 0.0
  %3776 = vmatprep.subr.mxu0 0.0
  %3777 = vmatpush1.xpose.msra.mxu0 0.0
  %3778 = vmatprep.subr.mxu0 0.0
  %3779 = vmatpush1.xpose.msra.mxu0 0.0
  %3780 = vmatprep.subr.mxu0 0.0
  %3781 = vmatpush1.xpose.msra.mxu0 0.0
  %3782 = vmatprep.subr.mxu0 0.0
  %3783 = vmatpush1.xpose.msra.mxu0 0.0
  %3784 = vmatprep.mubr.f32.mxu0 0.0
  %3785 = vmatmul.mubr.f32.gmra.mrb[0].mxu0 %v3692
  %v3786 = vpop.f32.mrb[0].mxu0
  %v3787 = vadd.f32 0.0, %v3786
  %v3788 = vpop.f32.mrb[0].mxu0
  %3789 = vmatprep.mubr.f32.mxu0 0.0
  %3790 = vmatmul.mubr.f32.gmra.mrb[0].mxu0 %v3694
  %v3791 = vpop.f32.mrb[0].mxu0
  %v3792 = vadd.f32 0.0, %v3791
  %v3793 = vpop.f32.mrb[0].mxu0
  %3794 = vmatprep.mubr.f32.mxu0 0.0
  %3795 = vmatmul.mubr.f32.gmra.mrb[0].mxu0 %v3696
  %v3796 = vpop.f32.mrb[0].mxu0
  %v3797 = vadd.f32 0.0, %v3796
  %v3798 = vpop.f32.mrb[0].mxu0
  %3799 = vmatprep.mubr.f32.mxu0 0.0
  %3800 = vmatmul.mubr.f32.gmra.mrb[0].mxu0 %v3698
  %v3801 = vpop.f32.mrb[0].mxu0
  %v3802 = vadd.f32 0.0, %v3801
  %v3803 = vpop.f32.mrb[0].mxu0
  %3804 = vmatprep.mubr.f32.mxu0 0.0
  %3805 = vmatmul.mubr.f32.gmra.mrb[0].mxu0 %v3700
  %v3806 = vpop.f32.mrb[0].mxu0
  %v3807 = vadd.f32 0.0, %v3806
  %v3808 = vpop.f32.mrb[0].mxu0
  %3809 = vmatprep.mubr.f32.mxu0 0.0
  %3810 = vmatmul.mubr.f32.gmra.mrb[0].mxu0 %v3702
  %v3811 = vpop.f32.mrb[0].mxu0
  %v3812 = vadd.f32 0.0, %v3811
  %v3813 = vpop.f32.mrb[0].mxu0
  %3814 = vmatprep.mubr.f32.mxu0 0.0
  %3815 = vmatmul.mubr.f32.gmra.mrb[0].mxu0 %v3704
  %v3816 = vpop.f32.mrb[0].mxu0
  %v3817 = vadd.f32 0.0, %v3816
  %v3818 = vpop.f32.mrb[0].mxu0
  %3819 = vdwg.mxu0
  %v3820 = vmul.f32 %v3787, 0.35355338
  %v3821 = vmul.f32 %v3792, 0.35355338
  %v3822 = vmul.f32 %v3797, 0.35355338
  %v3823 = vmul.f32 %v3802, 0.35355338
  %v3824 = vmul.f32 %v3807, 0.35355338
  %v3825 = vmul.f32 %v3812, 0.35355338
  %v3826 = vmul.f32 %v3817, 0.35355338
  %v3827 = vadd.f32 %v3820, %v201
  %v3828 = vadd.f32 %v3821, %v202
  %v3829 = vadd.f32 %v3822, %v203
  %v3830 = vadd.f32 %v3823, %v204
  %v3831 = vadd.f32 %v3824, %v205
  %v3832 = vadd.f32 %v3825, %v206
  %v3833 = vadd.f32 %v3826, %v207
  %v3834 = vsel %vm605, %v3827, -inf
  %3835 = vmax.xlane.f32.xlu0 %v3834
  %v3836 = vpop.xlane.xlu0 %3835
  %v3837 = vsel %vm605, %v3828, -inf
  %3838 = vmax.xlane.f32.xlu0 %v3837
  %v3839 = vpop.xlane.xlu0 %3838
  %v3840 = vsel %vm605, %v3829, -inf
  %3841 = vmax.xlane.f32.xlu0 %v3840
  %v3842 = vpop.xlane.xlu0 %3841
  %v3843 = vsel %vm605, %v3830, -inf
  %3844 = vmax.xlane.f32.xlu0 %v3843
  %v3845 = vpop.xlane.xlu0 %3844
  %v3846 = vsel %vm605, %v3831, -inf
  %3847 = vmax.xlane.f32.xlu0 %v3846
  %v3848 = vpop.xlane.xlu0 %3847
  %v3849 = vsel %vm605, %v3832, -inf
  %3850 = vmax.xlane.f32.xlu0 %v3849
  %v3851 = vpop.xlane.xlu0 %3850
  %v3852 = vsel %vm624, %v3833, -inf
  %3853 = vmax.xlane.f32.xlu0 %v3852
  %v3854 = vpop.xlane.xlu0 %3853
  %v3855 = vsub.f32 %v3827, %v3836
  %v3856 = vsub.f32 %v3828, %v3839
  %v3857 = vsub.f32 %v3829, %v3842
  %v3858 = vsub.f32 %v3830, %v3845
  %v3859 = vsub.f32 %v3831, %v3848
  %v3860 = vsub.f32 %v3832, %v3851
  %v3861 = vsub.f32 %v3833, %v3854
  %v3862 = vmul.f32 %v3855, 1.442695
  %v3863 = vpow.pop %v3862
  %v3864 = vmul.f32 %v3856, 1.442695
  %v3865 = vpow.pop %v3864
  %v3866 = vmul.f32 %v3857, 1.442695
  %v3867 = vpow.pop %v3866
  %v3868 = vmul.f32 %v3858, 1.442695
  %v3869 = vpow.pop %v3868
  %v3870 = vmul.f32 %v3859, 1.442695
  %v3871 = vpow.pop %v3870
  %v3872 = vmul.f32 %v3860, 1.442695
  %v3873 = vpow.pop %v3872
  %v3874 = vmul.f32 %v3861, 1.442695
  %v3875 = vpow.pop %v3874
  %v3876 = vsel %vm605, %v3863, 0.0
  %3877 = vadd.xlane.f32.xlu0 %v3876
  %v3878 = vpop.xlane.xlu0 %3877
  %v3879 = vsel %vm605, %v3865, 0.0
  %3880 = vadd.xlane.f32.xlu0 %v3879
  %v3881 = vpop.xlane.xlu0 %3880
  %v3882 = vsel %vm605, %v3867, 0.0
  %3883 = vadd.xlane.f32.xlu0 %v3882
  %v3884 = vpop.xlane.xlu0 %3883
  %v3885 = vsel %vm605, %v3869, 0.0
  %3886 = vadd.xlane.f32.xlu0 %v3885
  %v3887 = vpop.xlane.xlu0 %3886
  %v3888 = vsel %vm605, %v3871, 0.0
  %3889 = vadd.xlane.f32.xlu0 %v3888
  %v3890 = vpop.xlane.xlu0 %3889
  %v3891 = vsel %vm605, %v3873, 0.0
  %3892 = vadd.xlane.f32.xlu0 %v3891
  %v3893 = vpop.xlane.xlu0 %3892
  %v3894 = vsel %vm624, %v3875, 0.0
  %3895 = vadd.xlane.f32.xlu0 %v3894
  %v3896 = vpop.xlane.xlu0 %3895
  %v3897 = vrcp.pop %v3878
  %v3898 = vrcp.pop %v3881
  %v3899 = vrcp.pop %v3884
  %v3900 = vrcp.pop %v3887
  %v3901 = vrcp.pop %v3890
  %v3902 = vrcp.pop %v3893
  %v3903 = vrcp.pop %v3896
  %v3904 = vmul.f32 %v3863, %v3897
  %v3905 = vmul.f32 %v3865, %v3898
  %v3906 = vmul.f32 %v3867, %v3899
  %v3907 = vmul.f32 %v3869, %v3900
  %v3908 = vmul.f32 %v3871, %v3901
  %v3909 = vmul.f32 %v3873, %v3902
  %v3910 = vmul.f32 %v3875, %v3903
  %3911 = vrot.lane.b32.xlu0 %v2858, 48
  %v3912 = vpop.permute.xlu0 %3911
  %3913 = vrot.lane.b32.xlu0 %v2863, 48
  %v3914 = vpop.permute.xlu0 %3913
  %3915 = vrot.lane.b32.xlu0 %v2868, 48
  %v3916 = vpop.permute.xlu0 %3915
  %3917 = vrot.lane.b32.xlu0 %v2873, 48
  %v3918 = vpop.permute.xlu0 %3917
  %3919 = vrot.lane.b32.xlu0 %v2878, 48
  %v3920 = vpop.permute.xlu0 %3919
  %3921 = vrot.lane.b32.xlu0 %v2883, 48
  %v3922 = vpop.permute.xlu0 %3921
  %3923 = vrot.lane.b32.xlu0 %v2888, 48
  %v3924 = vpop.permute.xlu0 %3923
  %v3932 = vsel %vm605, %v3904, 0
  %v3935 = vsel %vm605, %v3905, 0
  %v3938 = vsel %vm605, %v3906, 0
  %v3941 = vsel %vm605, %v3907, 0
  %v3944 = vsel %vm605, %v3908, 0
  %v3947 = vsel %vm605, %v3909, 0
  %v3950 = vsel %vm605, %v3910, 0
  %v3952 = vsel %vm725, %v3924, 0
  %3954 = vmatprep.subr.mxu0 0.0
  %3955 = vmatpush1.msra.mxu0 %v3912
  %3956 = vmatprep.subr.mxu0 0.0
  %3957 = vmatpush1.msra.mxu0 %v3914
  %3958 = vmatprep.subr.mxu0 0.0
  %3959 = vmatpush1.msra.mxu0 %v3916
  %3960 = vmatprep.subr.mxu0 0.0
  %3961 = vmatpush1.msra.mxu0 %v3918
  %3962 = vmatprep.subr.mxu0 0.0
  %3963 = vmatpush1.msra.mxu0 %v3920
  %3964 = vmatprep.subr.mxu0 0.0
  %3965 = vmatpush1.msra.mxu0 %v3922
  %3966 = vmatprep.subr.mxu0 0.0
  %3967 = vmatpush1.msra.mxu0 %v3952
  %3968 = vmatprep.subr.mxu0 0.0
  %3969 = vmatpush1.msra.mxu0 0.0
  %3970 = vmatprep.subr.mxu0 0.0
  %3971 = vmatpush1.msra.mxu0 0.0
  %3972 = vmatprep.subr.mxu0 0.0
  %3973 = vmatpush1.msra.mxu0 0.0
  %3974 = vmatprep.subr.mxu0 0.0
  %3975 = vmatpush1.msra.mxu0 0.0
  %3976 = vmatprep.subr.mxu0 0.0
  %3977 = vmatpush1.msra.mxu0 0.0
  %3978 = vmatprep.subr.mxu0 0.0
  %3979 = vmatpush1.msra.mxu0 0.0
  %3980 = vmatprep.subr.mxu0 0.0
  %3981 = vmatpush1.msra.mxu0 0.0
  %3982 = vmatprep.subr.mxu0 0.0
  %3983 = vmatpush1.msra.mxu0 0.0
  %3984 = vmatprep.subr.mxu0 0.0
  %3985 = vmatpush1.msra.mxu0 0.0
  %3986 = vmatprep.subr.mxu0 0.0
  %3987 = vmatpush1.msra.mxu0 0.0
  %3988 = vmatprep.subr.mxu0 0.0
  %3989 = vmatpush1.msra.mxu0 0.0
  %3990 = vmatprep.subr.mxu0 0.0
  %3991 = vmatpush1.msra.mxu0 0.0
  %3992 = vmatprep.subr.mxu0 0.0
  %3993 = vmatpush1.msra.mxu0 0.0
  %3994 = vmatprep.subr.mxu0 0.0
  %3995 = vmatpush1.msra.mxu0 0.0
  %3996 = vmatprep.subr.mxu0 0.0
  %3997 = vmatpush1.msra.mxu0 0.0
  %3998 = vmatprep.subr.mxu0 0.0
  %3999 = vmatpush1.msra.mxu0 0.0
  %4000 = vmatprep.subr.mxu0 0.0
  %4001 = vmatpush1.msra.mxu0 0.0
  %4002 = vmatprep.subr.mxu0 0.0
  %4003 = vmatpush1.msra.mxu0 0.0
  %4004 = vmatprep.subr.mxu0 0.0
  %4005 = vmatpush1.msra.mxu0 0.0
  %4006 = vmatprep.subr.mxu0 0.0
  %4007 = vmatpush1.msra.mxu0 0.0
  %4008 = vmatprep.subr.mxu0 0.0
  %4009 = vmatpush1.msra.mxu0 0.0
  %4010 = vmatprep.subr.mxu0 0.0
  %4011 = vmatpush1.msra.mxu0 0.0
  %4012 = vmatprep.subr.mxu0 0.0
  %4013 = vmatpush1.msra.mxu0 0.0
  %4014 = vmatprep.subr.mxu0 0.0
  %4015 = vmatpush1.msra.mxu0 0.0
  %4016 = vmatprep.subr.mxu0 0.0
  %4017 = vmatpush1.msra.mxu0 0.0
  %4018 = vmatprep.mubr.f32.mxu0 0.0
  %4019 = vmatmul.mubr.f32.gmra.mrb[0].mxu0 %v3932
  %v4020 = vpop.f32.mrb[0].mxu0
  %v4021 = vadd.f32 0.0, %v4020
  %v4022 = vpop.f32.mrb[0].mxu0
  %4023 = vmatprep.mubr.f32.mxu0 0.0
  %4024 = vmatmul.mubr.f32.gmra.mrb[0].mxu0 %v3935
  %v4025 = vpop.f32.mrb[0].mxu0
  %v4026 = vadd.f32 0.0, %v4025
  %v4027 = vpop.f32.mrb[0].mxu0
  %4028 = vmatprep.mubr.f32.mxu0 0.0
  %4029 = vmatmul.mubr.f32.gmra.mrb[0].mxu0 %v3938
  %v4030 = vpop.f32.mrb[0].mxu0
  %v4031 = vadd.f32 0.0, %v4030
  %v4032 = vpop.f32.mrb[0].mxu0
  %4033 = vmatprep.mubr.f32.mxu0 0.0
  %4034 = vmatmul.mubr.f32.gmra.mrb[0].mxu0 %v3941
  %v4035 = vpop.f32.mrb[0].mxu0
  %v4036 = vadd.f32 0.0, %v4035
  %v4037 = vpop.f32.mrb[0].mxu0
  %4038 = vmatprep.mubr.f32.mxu0 0.0
  %4039 = vmatmul.mubr.f32.gmra.mrb[0].mxu0 %v3944
  %v4040 = vpop.f32.mrb[0].mxu0
  %v4041 = vadd.f32 0.0, %v4040
  %v4042 = vpop.f32.mrb[0].mxu0
  %4043 = vmatprep.mubr.f32.mxu0 0.0
  %4044 = vmatmul.mubr.f32.gmra.mrb[0].mxu0 %v3947
  %v4045 = vpop.f32.mrb[0].mxu0
  %v4046 = vadd.f32 0.0, %v4045
  %v4047 = vpop.f32.mrb[0].mxu0
  %4048 = vmatprep.mubr.f32.mxu0 0.0
  %4049 = vmatmul.mubr.f32.gmra.mrb[0].mxu0 %v3950
  %v4050 = vpop.f32.mrb[0].mxu0
  %v4051 = vadd.f32 0.0, %v4050
  %v4052 = vpop.f32.mrb[0].mxu0
  %4053 = vdwg.mxu0
  %4054 = vrot.lane.b32.xlu0 %v2858, 104
  %v4055 = vpop.permute.xlu0 %4054
  %4056 = vrot.lane.b32.xlu0 %v2863, 104
  %v4057 = vpop.permute.xlu0 %4056
  %4058 = vrot.lane.b32.xlu0 %v2868, 104
  %v4059 = vpop.permute.xlu0 %4058
  %4060 = vrot.lane.b32.xlu0 %v2873, 104
  %v4061 = vpop.permute.xlu0 %4060
  %4062 = vrot.lane.b32.xlu0 %v2878, 104
  %v4063 = vpop.permute.xlu0 %4062
  %4064 = vrot.lane.b32.xlu0 %v2883, 104
  %v4065 = vpop.permute.xlu0 %4064
  %4066 = vrot.lane.b32.xlu0 %v2888, 104
  %v4067 = vpop.permute.xlu0 %4066
  %4068 = vrot.lane.b32.xlu0 %v2858, 72
  %v4069 = vpop.permute.xlu0 %4068
  %4070 = vrot.lane.b32.xlu0 %v2863, 72
  %v4071 = vpop.permute.xlu0 %4070
  %4072 = vrot.lane.b32.xlu0 %v2868, 72
  %v4073 = vpop.permute.xlu0 %4072
  %4074 = vrot.lane.b32.xlu0 %v2873, 72
  %v4075 = vpop.permute.xlu0 %4074
  %4076 = vrot.lane.b32.xlu0 %v2878, 72
  %v4077 = vpop.permute.xlu0 %4076
  %4078 = vrot.lane.b32.xlu0 %v2883, 72
  %v4079 = vpop.permute.xlu0 %4078
  %4080 = vrot.lane.b32.xlu0 %v2888, 72
  %v4081 = vpop.permute.xlu0 %4080
  %v4082 = vsel %vm462, %v4055, 0
  %v4084 = vsel %vm462, %v4057, 0
  %v4086 = vsel %vm462, %v4059, 0
  %v4088 = vsel %vm462, %v4061, 0
  %v4090 = vsel %vm462, %v4063, 0
  %v4092 = vsel %vm462, %v4065, 0
  %v4094 = vsel %vm462, %v4067, 0
  %v4096 = vsel %vm462, %v4069, 0
  %v4098 = vsel %vm462, %v4071, 0
  %v4100 = vsel %vm462, %v4073, 0
  %v4102 = vsel %vm462, %v4075, 0
  %v4104 = vsel %vm462, %v4077, 0
  %v4106 = vsel %vm462, %v4079, 0
  %v4108 = vsel %vm462, %v4081, 0
  %4110 = vmatprep.subr.mxu0 0.0
  %4111 = vmatpush1.xpose.msra.mxu0 %v4096
  %4112 = vmatprep.subr.mxu0 0.0
  %4113 = vmatpush1.xpose.msra.mxu0 %v4098
  %4114 = vmatprep.subr.mxu0 0.0
  %4115 = vmatpush1.xpose.msra.mxu0 %v4100
  %4116 = vmatprep.subr.mxu0 0.0
  %4117 = vmatpush1.xpose.msra.mxu0 %v4102
  %4118 = vmatprep.subr.mxu0 0.0
  %4119 = vmatpush1.xpose.msra.mxu0 %v4104
  %4120 = vmatprep.subr.mxu0 0.0
  %4121 = vmatpush1.xpose.msra.mxu0 %v4106
  %4122 = vmatprep.subr.mxu0 0.0
  %4123 = vmatpush1.xpose.msra.mxu0 %v4108
  %4124 = vmatprep.subr.mxu0 0.0
  %4125 = vmatpush1.xpose.msra.mxu0 0.0
  %4126 = vmatprep.subr.mxu0 0.0
  %4127 = vmatpush1.xpose.msra.mxu0 0.0
  %4128 = vmatprep.subr.mxu0 0.0
  %4129 = vmatpush1.xpose.msra.mxu0 0.0
  %4130 = vmatprep.subr.mxu0 0.0
  %4131 = vmatpush1.xpose.msra.mxu0 0.0
  %4132 = vmatprep.subr.mxu0 0.0
  %4133 = vmatpush1.xpose.msra.mxu0 0.0
  %4134 = vmatprep.subr.mxu0 0.0
  %4135 = vmatpush1.xpose.msra.mxu0 0.0
  %4136 = vmatprep.subr.mxu0 0.0
  %4137 = vmatpush1.xpose.msra.mxu0 0.0
  %4138 = vmatprep.subr.mxu0 0.0
  %4139 = vmatpush1.xpose.msra.mxu0 0.0
  %4140 = vmatprep.subr.mxu0 0.0
  %4141 = vmatpush1.xpose.msra.mxu0 0.0
  %4142 = vmatprep.subr.mxu0 0.0
  %4143 = vmatpush1.xpose.msra.mxu0 0.0
  %4144 = vmatprep.subr.mxu0 0.0
  %4145 = vmatpush1.xpose.msra.mxu0 0.0
  %4146 = vmatprep.subr.mxu0 0.0
  %4147 = vmatpush1.xpose.msra.mxu0 0.0
  %4148 = vmatprep.subr.mxu0 0.0
  %4149 = vmatpush1.xpose.msra.mxu0 0.0
  %4150 = vmatprep.subr.mxu0 0.0
  %4151 = vmatpush1.xpose.msra.mxu0 0.0
  %4152 = vmatprep.subr.mxu0 0.0
  %4153 = vmatpush1.xpose.msra.mxu0 0.0
  %4154 = vmatprep.subr.mxu0 0.0
  %4155 = vmatpush1.xpose.msra.mxu0 0.0
  %4156 = vmatprep.subr.mxu0 0.0
  %4157 = vmatpush1.xpose.msra.mxu0 0.0
  %4158 = vmatprep.subr.mxu0 0.0
  %4159 = vmatpush1.xpose.msra.mxu0 0.0
  %4160 = vmatprep.subr.mxu0 0.0
  %4161 = vmatpush1.xpose.msra.mxu0 0.0
  %4162 = vmatprep.subr.mxu0 0.0
  %4163 = vmatpush1.xpose.msra.mxu0 0.0
  %4164 = vmatprep.subr.mxu0 0.0
  %4165 = vmatpush1.xpose.msra.mxu0 0.0
  %4166 = vmatprep.subr.mxu0 0.0
  %4167 = vmatpush1.xpose.msra.mxu0 0.0
  %4168 = vmatprep.subr.mxu0 0.0
  %4169 = vmatpush1.xpose.msra.mxu0 0.0
  %4170 = vmatprep.subr.mxu0 0.0
  %4171 = vmatpush1.xpose.msra.mxu0 0.0
  %4172 = vmatprep.subr.mxu0 0.0
  %4173 = vmatpush1.xpose.msra.mxu0 0.0
  %4174 = vmatprep.mubr.f32.mxu0 0.0
  %4175 = vmatmul.mubr.f32.gmra.mrb[0].mxu0 %v4082
  %v4176 = vpop.f32.mrb[0].mxu0
  %v4177 = vadd.f32 0.0, %v4176
  %v4178 = vpop.f32.mrb[0].mxu0
  %4179 = vmatprep.mubr.f32.mxu0 0.0
  %4180 = vmatmul.mubr.f32.gmra.mrb[0].mxu0 %v4084
  %v4181 = vpop.f32.mrb[0].mxu0
  %v4182 = vadd.f32 0.0, %v4181
  %v4183 = vpop.f32.mrb[0].mxu0
  %4184 = vmatprep.mubr.f32.mxu0 0.0
  %4185 = vmatmul.mubr.f32.gmra.mrb[0].mxu0 %v4086
  %v4186 = vpop.f32.mrb[0].mxu0
  %v4187 = vadd.f32 0.0, %v4186
  %v4188 = vpop.f32.mrb[0].mxu0
  %4189 = vmatprep.mubr.f32.mxu0 0.0
  %4190 = vmatmul.mubr.f32.gmra.mrb[0].mxu0 %v4088
  %v4191 = vpop.f32.mrb[0].mxu0
  %v4192 = vadd.f32 0.0, %v4191
  %v4193 = vpop.f32.mrb[0].mxu0
  %4194 = vmatprep.mubr.f32.mxu0 0.0
  %4195 = vmatmul.mubr.f32.gmra.mrb[0].mxu0 %v4090
  %v4196 = vpop.f32.mrb[0].mxu0
  %v4197 = vadd.f32 0.0, %v4196
  %v4198 = vpop.f32.mrb[0].mxu0
  %4199 = vmatprep.mubr.f32.mxu0 0.0
  %4200 = vmatmul.mubr.f32.gmra.mrb[0].mxu0 %v4092
  %v4201 = vpop.f32.mrb[0].mxu0
  %v4202 = vadd.f32 0.0, %v4201
  %v4203 = vpop.f32.mrb[0].mxu0
  %4204 = vmatprep.mubr.f32.mxu0 0.0
  %4205 = vmatmul.mubr.f32.gmra.mrb[0].mxu0 %v4094
  %v4206 = vpop.f32.mrb[0].mxu0
  %v4207 = vadd.f32 0.0, %v4206
  %v4208 = vpop.f32.mrb[0].mxu0
  %4209 = vdwg.mxu0
  %v4210 = vmul.f32 %v4177, 0.35355338
  %v4211 = vmul.f32 %v4182, 0.35355338
  %v4212 = vmul.f32 %v4187, 0.35355338
  %v4213 = vmul.f32 %v4192, 0.35355338
  %v4214 = vmul.f32 %v4197, 0.35355338
  %v4215 = vmul.f32 %v4202, 0.35355338
  %v4216 = vmul.f32 %v4207, 0.35355338
  %v4217 = vadd.f32 %v4210, %v201
  %v4218 = vadd.f32 %v4211, %v202
  %v4219 = vadd.f32 %v4212, %v203
  %v4220 = vadd.f32 %v4213, %v204
  %v4221 = vadd.f32 %v4214, %v205
  %v4222 = vadd.f32 %v4215, %v206
  %v4223 = vadd.f32 %v4216, %v207
  %v4224 = vsel %vm605, %v4217, -inf
  %4225 = vmax.xlane.f32.xlu0 %v4224
  %v4226 = vpop.xlane.xlu0 %4225
  %v4227 = vsel %vm605, %v4218, -inf
  %4228 = vmax.xlane.f32.xlu0 %v4227
  %v4229 = vpop.xlane.xlu0 %4228
  %v4230 = vsel %vm605, %v4219, -inf
  %4231 = vmax.xlane.f32.xlu0 %v4230
  %v4232 = vpop.xlane.xlu0 %4231
  %v4233 = vsel %vm605, %v4220, -inf
  %4234 = vmax.xlane.f32.xlu0 %v4233
  %v4235 = vpop.xlane.xlu0 %4234
  %v4236 = vsel %vm605, %v4221, -inf
  %4237 = vmax.xlane.f32.xlu0 %v4236
  %v4238 = vpop.xlane.xlu0 %4237
  %v4239 = vsel %vm605, %v4222, -inf
  %4240 = vmax.xlane.f32.xlu0 %v4239
  %v4241 = vpop.xlane.xlu0 %4240
  %v4242 = vsel %vm624, %v4223, -inf
  %4243 = vmax.xlane.f32.xlu0 %v4242
  %v4244 = vpop.xlane.xlu0 %4243
  %v4245 = vsub.f32 %v4217, %v4226
  %v4246 = vsub.f32 %v4218, %v4229
  %v4247 = vsub.f32 %v4219, %v4232
  %v4248 = vsub.f32 %v4220, %v4235
  %v4249 = vsub.f32 %v4221, %v4238
  %v4250 = vsub.f32 %v4222, %v4241
  %v4251 = vsub.f32 %v4223, %v4244
  %v4252 = vmul.f32 %v4245, 1.442695
  %v4253 = vpow.pop %v4252
  %v4254 = vmul.f32 %v4246, 1.442695
  %v4255 = vpow.pop %v4254
  %v4256 = vmul.f32 %v4247, 1.442695
  %v4257 = vpow.pop %v4256
  %v4258 = vmul.f32 %v4248, 1.442695
  %v4259 = vpow.pop %v4258
  %v4260 = vmul.f32 %v4249, 1.442695
  %v4261 = vpow.pop %v4260
  %v4262 = vmul.f32 %v4250, 1.442695
  %v4263 = vpow.pop %v4262
  %v4264 = vmul.f32 %v4251, 1.442695
  %v4265 = vpow.pop %v4264
  %v4266 = vsel %vm605, %v4253, 0.0
  %4267 = vadd.xlane.f32.xlu0 %v4266
  %v4268 = vpop.xlane.xlu0 %4267
  %v4269 = vsel %vm605, %v4255, 0.0
  %4270 = vadd.xlane.f32.xlu0 %v4269
  %v4271 = vpop.xlane.xlu0 %4270
  %v4272 = vsel %vm605, %v4257, 0.0
  %4273 = vadd.xlane.f32.xlu0 %v4272
  %v4274 = vpop.xlane.xlu0 %4273
  %v4275 = vsel %vm605, %v4259, 0.0
  %4276 = vadd.xlane.f32.xlu0 %v4275
  %v4277 = vpop.xlane.xlu0 %4276
  %v4278 = vsel %vm605, %v4261, 0.0
  %4279 = vadd.xlane.f32.xlu0 %v4278
  %v4280 = vpop.xlane.xlu0 %4279
  %v4281 = vsel %vm605, %v4263, 0.0
  %4282 = vadd.xlane.f32.xlu0 %v4281
  %v4283 = vpop.xlane.xlu0 %4282
  %v4284 = vsel %vm624, %v4265, 0.0
  %4285 = vadd.xlane.f32.xlu0 %v4284
  %v4286 = vpop.xlane.xlu0 %4285
  %v4287 = vrcp.pop %v4268
  %v4288 = vrcp.pop %v4271
  %v4289 = vrcp.pop %v4274
  %v4290 = vrcp.pop %v4277
  %v4291 = vrcp.pop %v4280
  %v4292 = vrcp.pop %v4283
  %v4293 = vrcp.pop %v4286
  %v4294 = vmul.f32 %v4253, %v4287
  %v4295 = vmul.f32 %v4255, %v4288
  %v4296 = vmul.f32 %v4257, %v4289
  %v4297 = vmul.f32 %v4259, %v4290
  %v4298 = vmul.f32 %v4261, %v4291
  %v4299 = vmul.f32 %v4263, %v4292
  %v4300 = vmul.f32 %v4265, %v4293
  %4301 = vrot.lane.b32.xlu0 %v2858, 40
  %v4302 = vpop.permute.xlu0 %4301
  %4303 = vrot.lane.b32.xlu0 %v2863, 40
  %v4304 = vpop.permute.xlu0 %4303
  %4305 = vrot.lane.b32.xlu0 %v2868, 40
  %v4306 = vpop.permute.xlu0 %4305
  %4307 = vrot.lane.b32.xlu0 %v2873, 40
  %v4308 = vpop.permute.xlu0 %4307
  %4309 = vrot.lane.b32.xlu0 %v2878, 40
  %v4310 = vpop.permute.xlu0 %4309
  %4311 = vrot.lane.b32.xlu0 %v2883, 40
  %v4312 = vpop.permute.xlu0 %4311
  %4313 = vrot.lane.b32.xlu0 %v2888, 40
  %v4314 = vpop.permute.xlu0 %4313
  %v4322 = vsel %vm605, %v4294, 0
  %v4325 = vsel %vm605, %v4295, 0
  %v4328 = vsel %vm605, %v4296, 0
  %v4331 = vsel %vm605, %v4297, 0
  %v4334 = vsel %vm605, %v4298, 0
  %v4337 = vsel %vm605, %v4299, 0
  %v4340 = vsel %vm605, %v4300, 0
  %v4342 = vsel %vm725, %v4314, 0
  %4344 = vmatprep.subr.mxu0 0.0
  %4345 = vmatpush1.msra.mxu0 %v4302
  %4346 = vmatprep.subr.mxu0 0.0
  %4347 = vmatpush1.msra.mxu0 %v4304
  %4348 = vmatprep.subr.mxu0 0.0
  %4349 = vmatpush1.msra.mxu0 %v4306
  %4350 = vmatprep.subr.mxu0 0.0
  %4351 = vmatpush1.msra.mxu0 %v4308
  %4352 = vmatprep.subr.mxu0 0.0
  %4353 = vmatpush1.msra.mxu0 %v4310
  %4354 = vmatprep.subr.mxu0 0.0
  %4355 = vmatpush1.msra.mxu0 %v4312
  %4356 = vmatprep.subr.mxu0 0.0
  %4357 = vmatpush1.msra.mxu0 %v4342
  %4358 = vmatprep.subr.mxu0 0.0
  %4359 = vmatpush1.msra.mxu0 0.0
  %4360 = vmatprep.subr.mxu0 0.0
  %4361 = vmatpush1.msra.mxu0 0.0
  %4362 = vmatprep.subr.mxu0 0.0
  %4363 = vmatpush1.msra.mxu0 0.0
  %4364 = vmatprep.subr.mxu0 0.0
  %4365 = vmatpush1.msra.mxu0 0.0
  %4366 = vmatprep.subr.mxu0 0.0
  %4367 = vmatpush1.msra.mxu0 0.0
  %4368 = vmatprep.subr.mxu0 0.0
  %4369 = vmatpush1.msra.mxu0 0.0
  %4370 = vmatprep.subr.mxu0 0.0
  %4371 = vmatpush1.msra.mxu0 0.0
  %4372 = vmatprep.subr.mxu0 0.0
  %4373 = vmatpush1.msra.mxu0 0.0
  %4374 = vmatprep.subr.mxu0 0.0
  %4375 = vmatpush1.msra.mxu0 0.0
  %4376 = vmatprep.subr.mxu0 0.0
  %4377 = vmatpush1.msra.mxu0 0.0
  %4378 = vmatprep.subr.mxu0 0.0
  %4379 = vmatpush1.msra.mxu0 0.0
  %4380 = vmatprep.subr.mxu0 0.0
  %4381 = vmatpush1.msra.mxu0 0.0
  %4382 = vmatprep.subr.mxu0 0.0
  %4383 = vmatpush1.msra.mxu0 0.0
  %4384 = vmatprep.subr.mxu0 0.0
  %4385 = vmatpush1.msra.mxu0 0.0
  %4386 = vmatprep.subr.mxu0 0.0
  %4387 = vmatpush1.msra.mxu0 0.0
  %4388 = vmatprep.subr.mxu0 0.0
  %4389 = vmatpush1.msra.mxu0 0.0
  %4390 = vmatprep.subr.mxu0 0.0
  %4391 = vmatpush1.msra.mxu0 0.0
  %4392 = vmatprep.subr.mxu0 0.0
  %4393 = vmatpush1.msra.mxu0 0.0
  %4394 = vmatprep.subr.mxu0 0.0
  %4395 = vmatpush1.msra.mxu0 0.0
  %4396 = vmatprep.subr.mxu0 0.0
  %4397 = vmatpush1.msra.mxu0 0.0
  %4398 = vmatprep.subr.mxu0 0.0
  %4399 = vmatpush1.msra.mxu0 0.0
  %4400 = vmatprep.subr.mxu0 0.0
  %4401 = vmatpush1.msra.mxu0 0.0
  %4402 = vmatprep.subr.mxu0 0.0
  %4403 = vmatpush1.msra.mxu0 0.0
  %4404 = vmatprep.subr.mxu0 0.0
  %4405 = vmatpush1.msra.mxu0 0.0
  %4406 = vmatprep.subr.mxu0 0.0
  %4407 = vmatpush1.msra.mxu0 0.0
  %4408 = vmatprep.mubr.f32.mxu0 0.0
  %4409 = vmatmul.mubr.f32.gmra.mrb[0].mxu0 %v4322
  %v4410 = vpop.f32.mrb[0].mxu0
  %v4411 = vadd.f32 0.0, %v4410
  %v4412 = vpop.f32.mrb[0].mxu0
  %4413 = vmatprep.mubr.f32.mxu0 0.0
  %4414 = vmatmul.mubr.f32.gmra.mrb[0].mxu0 %v4325
  %v4415 = vpop.f32.mrb[0].mxu0
  %v4416 = vadd.f32 0.0, %v4415
  %v4417 = vpop.f32.mrb[0].mxu0
  %4418 = vmatprep.mubr.f32.mxu0 0.0
  %4419 = vmatmul.mubr.f32.gmra.mrb[0].mxu0 %v4328
  %v4420 = vpop.f32.mrb[0].mxu0
  %v4421 = vadd.f32 0.0, %v4420
  %v4422 = vpop.f32.mrb[0].mxu0
  %4423 = vmatprep.mubr.f32.mxu0 0.0
  %4424 = vmatmul.mubr.f32.gmra.mrb[0].mxu0 %v4331
  %v4425 = vpop.f32.mrb[0].mxu0
  %v4426 = vadd.f32 0.0, %v4425
  %v4427 = vpop.f32.mrb[0].mxu0
  %4428 = vmatprep.mubr.f32.mxu0 0.0
  %4429 = vmatmul.mubr.f32.gmra.mrb[0].mxu0 %v4334
  %v4430 = vpop.f32.mrb[0].mxu0
  %v4431 = vadd.f32 0.0, %v4430
  %v4432 = vpop.f32.mrb[0].mxu0
  %4433 = vmatprep.mubr.f32.mxu0 0.0
  %4434 = vmatmul.mubr.f32.gmra.mrb[0].mxu0 %v4337
  %v4435 = vpop.f32.mrb[0].mxu0
  %v4436 = vadd.f32 0.0, %v4435
  %v4437 = vpop.f32.mrb[0].mxu0
  %4438 = vmatprep.mubr.f32.mxu0 0.0
  %4439 = vmatmul.mubr.f32.gmra.mrb[0].mxu0 %v4340
  %v4440 = vpop.f32.mrb[0].mxu0
  %v4441 = vadd.f32 0.0, %v4440
  %v4442 = vpop.f32.mrb[0].mxu0
  %4443 = vdwg.mxu0
  %4451 = vrot.lane.b32.xlu0 %v3631, 8
  %v4452 = vpop.permute.xlu0 %4451
  %4453 = vrot.lane.b32.xlu0 %v3636, 8
  %v4454 = vpop.permute.xlu0 %4453
  %4455 = vrot.lane.b32.xlu0 %v3641, 8
  %v4456 = vpop.permute.xlu0 %4455
  %4457 = vrot.lane.b32.xlu0 %v3646, 8
  %v4458 = vpop.permute.xlu0 %4457
  %4459 = vrot.lane.b32.xlu0 %v3651, 8
  %v4460 = vpop.permute.xlu0 %4459
  %4461 = vrot.lane.b32.xlu0 %v3656, 8
  %v4462 = vpop.permute.xlu0 %4461
  %4463 = vrot.lane.b32.xlu0 %v3661, 8
  %v4464 = vpop.permute.xlu0 %4463
  %4479 = vrot.lane.b32.xlu0 %v4021, 16
  %v4480 = vpop.permute.xlu0 %4479
  %4481 = vrot.lane.b32.xlu0 %v4026, 16
  %v4482 = vpop.permute.xlu0 %4481
  %4483 = vrot.lane.b32.xlu0 %v4031, 16
  %v4484 = vpop.permute.xlu0 %4483
  %4485 = vrot.lane.b32.xlu0 %v4036, 16
  %v4486 = vpop.permute.xlu0 %4485
  %4487 = vrot.lane.b32.xlu0 %v4041, 16
  %v4488 = vpop.permute.xlu0 %4487
  %4489 = vrot.lane.b32.xlu0 %v4046, 16
  %v4490 = vpop.permute.xlu0 %4489
  %4491 = vrot.lane.b32.xlu0 %v4051, 16
  %v4492 = vpop.permute.xlu0 %4491
  %4507 = vrot.lane.b32.xlu0 %v4411, 24
  %v4508 = vpop.permute.xlu0 %4507
  %4509 = vrot.lane.b32.xlu0 %v4416, 24
  %v4510 = vpop.permute.xlu0 %4509
  %4511 = vrot.lane.b32.xlu0 %v4421, 24
  %v4512 = vpop.permute.xlu0 %4511
  %4513 = vrot.lane.b32.xlu0 %v4426, 24
  %v4514 = vpop.permute.xlu0 %4513
  %4515 = vrot.lane.b32.xlu0 %v4431, 24
  %v4516 = vpop.permute.xlu0 %4515
  %4517 = vrot.lane.b32.xlu0 %v4436, 24
  %v4518 = vpop.permute.xlu0 %4517
  %4519 = vrot.lane.b32.xlu0 %v4441, 24
  %v4520 = vpop.permute.xlu0 %4519
  %v4528 = vsel %vm462, %v3241, %v4452
  %v4529 = vsel %vm462, %v3246, %v4454
  %v4530 = vsel %vm462, %v3251, %v4456
  %v4531 = vsel %vm462, %v3256, %v4458
  %v4532 = vsel %vm462, %v3261, %v4460
  %v4533 = vsel %vm462, %v3266, %v4462
  %v4534 = vsel %vm462, %v3271, %v4464
  %v4535 = vsel %vm2089, %v4528, %v4480
  %v4536 = vsel %vm2089, %v4529, %v4482
  %v4537 = vsel %vm2089, %v4530, %v4484
  %v4538 = vsel %vm2089, %v4531, %v4486
  %v4539 = vsel %vm2089, %v4532, %v4488
  %v4540 = vsel %vm2089, %v4533, %v4490
  %v4541 = vsel %vm2089, %v4534, %v4492
  %v4542 = vsel %vm2097, %v4535, %v4508
  %v4543 = vsel %vm2097, %v4536, %v4510
  %v4544 = vsel %vm2097, %v4537, %v4512
  %v4545 = vsel %vm2097, %v4538, %v4514
  %v4546 = vsel %vm2097, %v4539, %v4516
  %v4547 = vsel %vm2097, %v4540, %v4518
  %v4548 = vsel %vm2097, %v4541, %v4520
  %s4549 = scalar_lea.vmem %s7, 32
  %v4550 = vld [vmem:[%s4549] sm:$0xff]
  %v4551 = vld [vmem:[%s4549 + $0x8] sm:$0xff]
  %v4552 = vld [vmem:[%s4549 + $0x10] sm:$0xff]
  %v4553 = vld [vmem:[%s4549 + $0x18] sm:$0xff]
  %v4555 = vsel %vm215, %v4542, 0
  %v4558 = vsel %vm215, %v4543, 0
  %v4561 = vsel %vm215, %v4544, 0
  %v4564 = vsel %vm215, %v4545, 0
  %v4567 = vsel %vm215, %v4546, 0
  %v4570 = vsel %vm215, %v4547, 0
  %v4573 = vsel %vm215, %v4548, 0
  %4575 = vmatprep.subr.mxu0 0.0
  %4576 = vmatpush1.msra.mxu0 %v4550
  %4577 = vmatprep.subr.mxu0 0.0
  %4578 = vmatpush1.msra.mxu0 %v4551
  %4579 = vmatprep.subr.mxu0 0.0
  %4580 = vmatpush1.msra.mxu0 %v4552
  %4581 = vmatprep.subr.mxu0 0.0
  %4582 = vmatpush1.msra.mxu0 %v4553
  %4583 = vmatprep.subr.mxu0 0.0
  %4584 = vmatpush1.msra.mxu0 0.0
  %4585 = vmatprep.subr.mxu0 0.0
  %4586 = vmatpush1.msra.mxu0 0.0
  %4587 = vmatprep.subr.mxu0 0.0
  %4588 = vmatpush1.msra.mxu0 0.0
  %4589 = vmatprep.subr.mxu0 0.0
  %4590 = vmatpush1.msra.mxu0 0.0
  %4591 = vmatprep.subr.mxu0 0.0
  %4592 = vmatpush1.msra.mxu0 0.0
  %4593 = vmatprep.subr.mxu0 0.0
  %4594 = vmatpush1.msra.mxu0 0.0
  %4595 = vmatprep.subr.mxu0 0.0
  %4596 = vmatpush1.msra.mxu0 0.0
  %4597 = vmatprep.subr.mxu0 0.0
  %4598 = vmatpush1.msra.mxu0 0.0
  %4599 = vmatprep.subr.mxu0 0.0
  %4600 = vmatpush1.msra.mxu0 0.0
  %4601 = vmatprep.subr.mxu0 0.0
  %4602 = vmatpush1.msra.mxu0 0.0
  %4603 = vmatprep.subr.mxu0 0.0
  %4604 = vmatpush1.msra.mxu0 0.0
  %4605 = vmatprep.subr.mxu0 0.0
  %4606 = vmatpush1.msra.mxu0 0.0
  %4607 = vmatprep.subr.mxu0 0.0
  %4608 = vmatpush1.msra.mxu0 0.0
  %4609 = vmatprep.subr.mxu0 0.0
  %4610 = vmatpush1.msra.mxu0 0.0
  %4611 = vmatprep.subr.mxu0 0.0
  %4612 = vmatpush1.msra.mxu0 0.0
  %4613 = vmatprep.subr.mxu0 0.0
  %4614 = vmatpush1.msra.mxu0 0.0
  %4615 = vmatprep.subr.mxu0 0.0
  %4616 = vmatpush1.msra.mxu0 0.0
  %4617 = vmatprep.subr.mxu0 0.0
  %4618 = vmatpush1.msra.mxu0 0.0
  %4619 = vmatprep.subr.mxu0 0.0
  %4620 = vmatpush1.msra.mxu0 0.0
  %4621 = vmatprep.subr.mxu0 0.0
  %4622 = vmatpush1.msra.mxu0 0.0
  %4623 = vmatprep.subr.mxu0 0.0
  %4624 = vmatpush1.msra.mxu0 0.0
  %4625 = vmatprep.subr.mxu0 0.0
  %4626 = vmatpush1.msra.mxu0 0.0
  %4627 = vmatprep.subr.mxu0 0.0
  %4628 = vmatpush1.msra.mxu0 0.0
  %4629 = vmatprep.subr.mxu0 0.0
  %4630 = vmatpush1.msra.mxu0 0.0
  %4631 = vmatprep.subr.mxu0 0.0
  %4632 = vmatpush1.msra.mxu0 0.0
  %4633 = vmatprep.subr.mxu0 0.0
  %4634 = vmatpush1.msra.mxu0 0.0
  %4635 = vmatprep.subr.mxu0 0.0
  %4636 = vmatpush1.msra.mxu0 0.0
  %4637 = vmatprep.subr.mxu0 0.0
  %4638 = vmatpush1.msra.mxu0 0.0
  %4639 = vmatprep.mubr.f32.mxu0 0.0
  %4640 = vmatmul.mubr.f32.gmra.mrb[0].mxu0 %v4555
  %v4641 = vpop.f32.mrb[0].mxu0
  %v4642 = vadd.f32 0.0, %v4641
  %v4643 = vpop.f32.mrb[0].mxu0
  %4644 = vmatprep.mubr.f32.mxu0 0.0
  %4645 = vmatmul.mubr.f32.gmra.mrb[0].mxu0 %v4558
  %v4646 = vpop.f32.mrb[0].mxu0
  %v4647 = vadd.f32 0.0, %v4646
  %v4648 = vpop.f32.mrb[0].mxu0
  %4649 = vmatprep.mubr.f32.mxu0 0.0
  %4650 = vmatmul.mubr.f32.gmra.mrb[0].mxu0 %v4561
  %v4651 = vpop.f32.mrb[0].mxu0
  %v4652 = vadd.f32 0.0, %v4651
  %v4653 = vpop.f32.mrb[0].mxu0
  %4654 = vmatprep.mubr.f32.mxu0 0.0
  %4655 = vmatmul.mubr.f32.gmra.mrb[0].mxu0 %v4564
  %v4656 = vpop.f32.mrb[0].mxu0
  %v4657 = vadd.f32 0.0, %v4656
  %v4658 = vpop.f32.mrb[0].mxu0
  %4659 = vmatprep.mubr.f32.mxu0 0.0
  %4660 = vmatmul.mubr.f32.gmra.mrb[0].mxu0 %v4567
  %v4661 = vpop.f32.mrb[0].mxu0
  %v4662 = vadd.f32 0.0, %v4661
  %v4663 = vpop.f32.mrb[0].mxu0
  %4664 = vmatprep.mubr.f32.mxu0 0.0
  %4665 = vmatmul.mubr.f32.gmra.mrb[0].mxu0 %v4570
  %v4666 = vpop.f32.mrb[0].mxu0
  %v4667 = vadd.f32 0.0, %v4666
  %v4668 = vpop.f32.mrb[0].mxu0
  %4669 = vmatprep.mubr.f32.mxu0 0.0
  %4670 = vmatmul.mubr.f32.gmra.mrb[0].mxu0 %v4573
  %v4671 = vpop.f32.mrb[0].mxu0
  %v4672 = vadd.f32 0.0, %v4671
  %v4673 = vpop.f32.mrb[0].mxu0
  %4674 = vdwg.mxu0
  %v4675 = vadd.f32 %v2659, %v4642
  %v4676 = vadd.f32 %v2660, %v4647
  %v4677 = vadd.f32 %v2661, %v4652
  %v4678 = vadd.f32 %v2662, %v4657
  %v4679 = vadd.f32 %v2663, %v4662
  %v4680 = vadd.f32 %v2664, %v4667
  %v4681 = vadd.f32 %v2665, %v4672
  %s4682 = scalar_lea.vmem %s8, 1
  %v4683 = vld [vmem:[%s4682] sm:$0x1]
  %v4685 = vlaneseq
  %v4686 = vshrl.u32 %v4685, 7
  %v4687 = vsub.s32 0, %v4686
  %v4688 = vrot.slane %v4683, %v4687
  %v4690 = vadd.f32 %v4675, %v4688
  %v4691 = vadd.f32 %v4676, %v4688
  %v4692 = vadd.f32 %v4677, %v4688
  %v4693 = vadd.f32 %v4678, %v4688
  %v4694 = vadd.f32 %v4679, %v4688
  %v4695 = vadd.f32 %v4680, %v4688
  %v4696 = vadd.f32 %v4681, %v4688
  %v4697 = vsel %vm215, %v4690, 0.0
  %4698 = vadd.xlane.f32.xlu0 %v4697
  %v4699 = vpop.xlane.xlu0 %4698
  %v4700 = vsel %vm215, %v4691, 0.0
  %4701 = vadd.xlane.f32.xlu0 %v4700
  %v4702 = vpop.xlane.xlu0 %4701
  %v4703 = vsel %vm215, %v4692, 0.0
  %4704 = vadd.xlane.f32.xlu0 %v4703
  %v4705 = vpop.xlane.xlu0 %4704
  %v4706 = vsel %vm215, %v4693, 0.0
  %4707 = vadd.xlane.f32.xlu0 %v4706
  %v4708 = vpop.xlane.xlu0 %4707
  %v4709 = vsel %vm215, %v4694, 0.0
  %4710 = vadd.xlane.f32.xlu0 %v4709
  %v4711 = vpop.xlane.xlu0 %4710
  %v4712 = vsel %vm215, %v4695, 0.0
  %4713 = vadd.xlane.f32.xlu0 %v4712
  %v4714 = vpop.xlane.xlu0 %4713
  %v4715 = vsel %vm234, %v4696, 0.0
  %4716 = vadd.xlane.f32.xlu0 %v4715
  %v4717 = vpop.xlane.xlu0 %4716
  %v4718 = vmul.f32 %v4699, %v238
  %v4719 = vmul.f32 %v4702, %v238
  %v4720 = vmul.f32 %v4705, %v238
  %v4721 = vmul.f32 %v4708, %v238
  %v4722 = vmul.f32 %v4711, %v238
  %v4723 = vmul.f32 %v4714, %v238
  %v4724 = vmul.f32 %v4717, %v238
  %v4725 = vsub.f32 %v4690, %v4718
  %v4726 = vsub.f32 %v4691, %v4719
  %v4727 = vsub.f32 %v4692, %v4720
  %v4728 = vsub.f32 %v4693, %v4721
  %v4729 = vsub.f32 %v4694, %v4722
  %v4730 = vsub.f32 %v4695, %v4723
  %v4731 = vsub.f32 %v4696, %v4724
  %v4732 = vmul.f32 %v4725, %v4725
  %v4733 = vmul.f32 %v4726, %v4726
  %v4734 = vmul.f32 %v4727, %v4727
  %v4735 = vmul.f32 %v4728, %v4728
  %v4736 = vmul.f32 %v4729, %v4729
  %v4737 = vmul.f32 %v4730, %v4730
  %v4738 = vmul.f32 %v4731, %v4731
  %v4739 = vsel %vm215, %v4732, 0.0
  %4740 = vadd.xlane.f32.xlu0 %v4739
  %v4741 = vpop.xlane.xlu0 %4740
  %v4742 = vsel %vm215, %v4733, 0.0
  %4743 = vadd.xlane.f32.xlu0 %v4742
  %v4744 = vpop.xlane.xlu0 %4743
  %v4745 = vsel %vm215, %v4734, 0.0
  %4746 = vadd.xlane.f32.xlu0 %v4745
  %v4747 = vpop.xlane.xlu0 %4746
  %v4748 = vsel %vm215, %v4735, 0.0
  %4749 = vadd.xlane.f32.xlu0 %v4748
  %v4750 = vpop.xlane.xlu0 %4749
  %v4751 = vsel %vm215, %v4736, 0.0
  %4752 = vadd.xlane.f32.xlu0 %v4751
  %v4753 = vpop.xlane.xlu0 %4752
  %v4754 = vsel %vm215, %v4737, 0.0
  %4755 = vadd.xlane.f32.xlu0 %v4754
  %v4756 = vpop.xlane.xlu0 %4755
  %v4757 = vsel %vm234, %v4738, 0.0
  %4758 = vadd.xlane.f32.xlu0 %v4757
  %v4759 = vpop.xlane.xlu0 %4758
  %v4760 = vmul.f32 %v4741, %v238
  %v4761 = vmul.f32 %v4744, %v238
  %v4762 = vmul.f32 %v4747, %v238
  %v4763 = vmul.f32 %v4750, %v238
  %v4764 = vmul.f32 %v4753, %v238
  %v4765 = vmul.f32 %v4756, %v238
  %v4766 = vmul.f32 %v4759, %v238
  %v4767 = vadd.f32 %v4760, 1e-05
  %v4768 = vadd.f32 %v4761, 1e-05
  %v4769 = vadd.f32 %v4762, 1e-05
  %v4770 = vadd.f32 %v4763, 1e-05
  %v4771 = vadd.f32 %v4764, 1e-05
  %v4772 = vadd.f32 %v4765, 1e-05
  %v4773 = vadd.f32 %v4766, 1e-05
  %v4774 = vrsqrt.pop %v4767
  %v4775 = vrsqrt.pop %v4768
  %v4776 = vrsqrt.pop %v4769
  %v4777 = vrsqrt.pop %v4770
  %v4778 = vrsqrt.pop %v4771
  %v4779 = vrsqrt.pop %v4772
  %v4780 = vrsqrt.pop %v4773
  %v4781 = vmul.f32 %v4725, %v4774
  %v4782 = vmul.f32 %v4726, %v4775
  %v4783 = vmul.f32 %v4727, %v4776
  %v4784 = vmul.f32 %v4728, %v4777
  %v4785 = vmul.f32 %v4729, %v4778
  %v4786 = vmul.f32 %v4730, %v4779
  %v4787 = vmul.f32 %v4731, %v4780
  %s4788 = scalar_lea.vmem %s9, 32
  %v4789 = vld [vmem:[%s4788] sm:$0xff]
  %v4790 = vld [vmem:[%s4788 + $0x8] sm:$0xff]
  %v4791 = vld [vmem:[%s4788 + $0x10] sm:$0xff]
  %v4792 = vld [vmem:[%s4788 + $0x18] sm:$0xff]
  %s4793 = scalar_lea.vmem %s10, 1
  %v4794 = vld [vmem:[%s4793] sm:$0x1]
  %v4796 = vlaneseq
  %v4797 = vshrl.u32 %v4796, 7
  %v4798 = vsub.s32 0, %v4797
  %v4799 = vrot.slane %v4794, %v4798
  %v4802 = vsel %vm215, %v4781, 0
  %v4805 = vsel %vm215, %v4782, 0
  %v4808 = vsel %vm215, %v4783, 0
  %v4811 = vsel %vm215, %v4784, 0
  %v4814 = vsel %vm215, %v4785, 0
  %v4817 = vsel %vm215, %v4786, 0
  %v4820 = vsel %vm215, %v4787, 0
  %4822 = vmatprep.subr.mxu0 0.0
  %4823 = vmatpush1.msra.mxu0 %v4789
  %4824 = vmatprep.subr.mxu0 0.0
  %4825 = vmatpush1.msra.mxu0 %v4790
  %4826 = vmatprep.subr.mxu0 0.0
  %4827 = vmatpush1.msra.mxu0 %v4791
  %4828 = vmatprep.subr.mxu0 0.0
  %4829 = vmatpush1.msra.mxu0 %v4792
  %4830 = vmatprep.subr.mxu0 0.0
  %4831 = vmatpush1.msra.mxu0 0.0
  %4832 = vmatprep.subr.mxu0 0.0
  %4833 = vmatpush1.msra.mxu0 0.0
  %4834 = vmatprep.subr.mxu0 0.0
  %4835 = vmatpush1.msra.mxu0 0.0
  %4836 = vmatprep.subr.mxu0 0.0
  %4837 = vmatpush1.msra.mxu0 0.0
  %4838 = vmatprep.subr.mxu0 0.0
  %4839 = vmatpush1.msra.mxu0 0.0
  %4840 = vmatprep.subr.mxu0 0.0
  %4841 = vmatpush1.msra.mxu0 0.0
  %4842 = vmatprep.subr.mxu0 0.0
  %4843 = vmatpush1.msra.mxu0 0.0
  %4844 = vmatprep.subr.mxu0 0.0
  %4845 = vmatpush1.msra.mxu0 0.0
  %4846 = vmatprep.subr.mxu0 0.0
  %4847 = vmatpush1.msra.mxu0 0.0
  %4848 = vmatprep.subr.mxu0 0.0
  %4849 = vmatpush1.msra.mxu0 0.0
  %4850 = vmatprep.subr.mxu0 0.0
  %4851 = vmatpush1.msra.mxu0 0.0
  %4852 = vmatprep.subr.mxu0 0.0
  %4853 = vmatpush1.msra.mxu0 0.0
  %4854 = vmatprep.subr.mxu0 0.0
  %4855 = vmatpush1.msra.mxu0 0.0
  %4856 = vmatprep.subr.mxu0 0.0
  %4857 = vmatpush1.msra.mxu0 0.0
  %4858 = vmatprep.subr.mxu0 0.0
  %4859 = vmatpush1.msra.mxu0 0.0
  %4860 = vmatprep.subr.mxu0 0.0
  %4861 = vmatpush1.msra.mxu0 0.0
  %4862 = vmatprep.subr.mxu0 0.0
  %4863 = vmatpush1.msra.mxu0 0.0
  %4864 = vmatprep.subr.mxu0 0.0
  %4865 = vmatpush1.msra.mxu0 0.0
  %4866 = vmatprep.subr.mxu0 0.0
  %4867 = vmatpush1.msra.mxu0 0.0
  %4868 = vmatprep.subr.mxu0 0.0
  %4869 = vmatpush1.msra.mxu0 0.0
  %4870 = vmatprep.subr.mxu0 0.0
  %4871 = vmatpush1.msra.mxu0 0.0
  %4872 = vmatprep.subr.mxu0 0.0
  %4873 = vmatpush1.msra.mxu0 0.0
  %4874 = vmatprep.subr.mxu0 0.0
  %4875 = vmatpush1.msra.mxu0 0.0
  %4876 = vmatprep.subr.mxu0 0.0
  %4877 = vmatpush1.msra.mxu0 0.0
  %4878 = vmatprep.subr.mxu0 0.0
  %4879 = vmatpush1.msra.mxu0 0.0
  %4880 = vmatprep.subr.mxu0 0.0
  %4881 = vmatpush1.msra.mxu0 0.0
  %4882 = vmatprep.subr.mxu0 0.0
  %4883 = vmatpush1.msra.mxu0 0.0
  %4884 = vmatprep.subr.mxu0 0.0
  %4885 = vmatpush1.msra.mxu0 0.0
  %4886 = vmatprep.mubr.f32.mxu0 0.0
  %4887 = vmatmul.mubr.f32.gmra.mrb[0].mxu0 %v4802
  %v4888 = vpop.f32.mrb[0].mxu0
  %v4889 = vadd.f32 %v4799, %v4888
  %v4890 = vpop.f32.mrb[0].mxu0
  %4891 = vmatprep.mubr.f32.mxu0 0.0
  %4892 = vmatmul.mubr.f32.gmra.mrb[0].mxu0 %v4805
  %v4893 = vpop.f32.mrb[0].mxu0
  %v4894 = vadd.f32 %v4799, %v4893
  %v4895 = vpop.f32.mrb[0].mxu0
  %4896 = vmatprep.mubr.f32.mxu0 0.0
  %4897 = vmatmul.mubr.f32.gmra.mrb[0].mxu0 %v4808
  %v4898 = vpop.f32.mrb[0].mxu0
  %v4899 = vadd.f32 %v4799, %v4898
  %v4900 = vpop.f32.mrb[0].mxu0
  %4901 = vmatprep.mubr.f32.mxu0 0.0
  %4902 = vmatmul.mubr.f32.gmra.mrb[0].mxu0 %v4811
  %v4903 = vpop.f32.mrb[0].mxu0
  %v4904 = vadd.f32 %v4799, %v4903
  %v4905 = vpop.f32.mrb[0].mxu0
  %4906 = vmatprep.mubr.f32.mxu0 0.0
  %4907 = vmatmul.mubr.f32.gmra.mrb[0].mxu0 %v4814
  %v4908 = vpop.f32.mrb[0].mxu0
  %v4909 = vadd.f32 %v4799, %v4908
  %v4910 = vpop.f32.mrb[0].mxu0
  %4911 = vmatprep.mubr.f32.mxu0 0.0
  %4912 = vmatmul.mubr.f32.gmra.mrb[0].mxu0 %v4817
  %v4913 = vpop.f32.mrb[0].mxu0
  %v4914 = vadd.f32 %v4799, %v4913
  %v4915 = vpop.f32.mrb[0].mxu0
  %4916 = vmatprep.mubr.f32.mxu0 0.0
  %4917 = vmatmul.mubr.f32.gmra.mrb[0].mxu0 %v4820
  %v4918 = vpop.f32.mrb[0].mxu0
  %v4919 = vadd.f32 %v4799, %v4918
  %v4920 = vpop.f32.mrb[0].mxu0
  %4921 = vdwg.mxu0
  %v4922 = vmul.f32 %v4889, 0.5
  %v4923 = vmul.f32 %v4894, 0.5
  %v4924 = vmul.f32 %v4899, 0.5
  %v4925 = vmul.f32 %v4904, 0.5
  %v4926 = vmul.f32 %v4909, 0.5
  %v4927 = vmul.f32 %v4914, 0.5
  %v4928 = vmul.f32 %v4919, 0.5
  %v4929 = vmul.f32 %v4889, 0.70710677
  %v4930 = vmul.f32 %v4894, 0.70710677
  %v4931 = vmul.f32 %v4899, 0.70710677
  %v4932 = vmul.f32 %v4904, 0.70710677
  %v4933 = vmul.f32 %v4909, 0.70710677
  %v4934 = vmul.f32 %v4914, 0.70710677
  %v4935 = vmul.f32 %v4919, 0.70710677
  %v4936 = verf.f32.pop %v4929
  %v4937 = verf.f32.pop %v4930
  %v4938 = verf.f32.pop %v4931
  %v4939 = verf.f32.pop %v4932
  %v4940 = verf.f32.pop %v4933
  %v4941 = verf.f32.pop %v4934
  %v4942 = verf.f32.pop %v4935
  %v4943 = vadd.f32 %v4936, 1.0
  %v4944 = vadd.f32 %v4937, 1.0
  %v4945 = vadd.f32 %v4938, 1.0
  %v4946 = vadd.f32 %v4939, 1.0
  %v4947 = vadd.f32 %v4940, 1.0
  %v4948 = vadd.f32 %v4941, 1.0
  %v4949 = vadd.f32 %v4942, 1.0
  %v4950 = vmul.f32 %v4922, %v4943
  %v4951 = vmul.f32 %v4923, %v4944
  %v4952 = vmul.f32 %v4924, %v4945
  %v4953 = vmul.f32 %v4925, %v4946
  %v4954 = vmul.f32 %v4926, %v4947
  %v4955 = vmul.f32 %v4927, %v4948
  %v4956 = vmul.f32 %v4928, %v4949
  %s4957 = scalar_lea.vmem %s11, 64
  %v4958 = vld [vmem:[%s4957] sm:$0xff]
  %v4959 = vld [vmem:[%s4957 + $0x8] sm:$0xff]
  %v4960 = vld [vmem:[%s4957 + $0x10] sm:$0xff]
  %v4961 = vld [vmem:[%s4957 + $0x18] sm:$0xff]
  %v4962 = vld [vmem:[%s4957 + $0x20] sm:$0xff]
  %v4963 = vld [vmem:[%s4957 + $0x28] sm:$0xff]
  %v4964 = vld [vmem:[%s4957 + $0x30] sm:$0xff]
  %v4965 = vld [vmem:[%s4957 + $0x38] sm:$0xff]
  %v4967 = vsel %vm72, %v4950, 0
  %v4970 = vsel %vm72, %v4951, 0
  %v4973 = vsel %vm72, %v4952, 0
  %v4976 = vsel %vm72, %v4953, 0
  %v4979 = vsel %vm72, %v4954, 0
  %v4982 = vsel %vm72, %v4955, 0
  %v4985 = vsel %vm72, %v4956, 0
  %4987 = vmatprep.subr.mxu0 0.0
  %4988 = vmatpush1.msra.mxu0 %v4958
  %4989 = vmatprep.subr.mxu0 0.0
  %4990 = vmatpush1.msra.mxu0 %v4959
  %4991 = vmatprep.subr.mxu0 0.0
  %4992 = vmatpush1.msra.mxu0 %v4960
  %4993 = vmatprep.subr.mxu0 0.0
  %4994 = vmatpush1.msra.mxu0 %v4961
  %4995 = vmatprep.subr.mxu0 0.0
  %4996 = vmatpush1.msra.mxu0 %v4962
  %4997 = vmatprep.subr.mxu0 0.0
  %4998 = vmatpush1.msra.mxu0 %v4963
  %4999 = vmatprep.subr.mxu0 0.0
  %5000 = vmatpush1.msra.mxu0 %v4964
  %5001 = vmatprep.subr.mxu0 0.0
  %5002 = vmatpush1.msra.mxu0 %v4965
  %5003 = vmatprep.subr.mxu0 0.0
  %5004 = vmatpush1.msra.mxu0 0.0
  %5005 = vmatprep.subr.mxu0 0.0
  %5006 = vmatpush1.msra.mxu0 0.0
  %5007 = vmatprep.subr.mxu0 0.0
  %5008 = vmatpush1.msra.mxu0 0.0
  %5009 = vmatprep.subr.mxu0 0.0
  %5010 = vmatpush1.msra.mxu0 0.0
  %5011 = vmatprep.subr.mxu0 0.0
  %5012 = vmatpush1.msra.mxu0 0.0
  %5013 = vmatprep.subr.mxu0 0.0
  %5014 = vmatpush1.msra.mxu0 0.0
  %5015 = vmatprep.subr.mxu0 0.0
  %5016 = vmatpush1.msra.mxu0 0.0
  %5017 = vmatprep.subr.mxu0 0.0
  %5018 = vmatpush1.msra.mxu0 0.0
  %5019 = vmatprep.subr.mxu0 0.0
  %5020 = vmatpush1.msra.mxu0 0.0
  %5021 = vmatprep.subr.mxu0 0.0
  %5022 = vmatpush1.msra.mxu0 0.0
  %5023 = vmatprep.subr.mxu0 0.0
  %5024 = vmatpush1.msra.mxu0 0.0
  %5025 = vmatprep.subr.mxu0 0.0
  %5026 = vmatpush1.msra.mxu0 0.0
  %5027 = vmatprep.subr.mxu0 0.0
  %5028 = vmatpush1.msra.mxu0 0.0
  %5029 = vmatprep.subr.mxu0 0.0
  %5030 = vmatpush1.msra.mxu0 0.0
  %5031 = vmatprep.subr.mxu0 0.0
  %5032 = vmatpush1.msra.mxu0 0.0
  %5033 = vmatprep.subr.mxu0 0.0
  %5034 = vmatpush1.msra.mxu0 0.0
  %5035 = vmatprep.subr.mxu0 0.0
  %5036 = vmatpush1.msra.mxu0 0.0
  %5037 = vmatprep.subr.mxu0 0.0
  %5038 = vmatpush1.msra.mxu0 0.0
  %5039 = vmatprep.subr.mxu0 0.0
  %5040 = vmatpush1.msra.mxu0 0.0
  %5041 = vmatprep.subr.mxu0 0.0
  %5042 = vmatpush1.msra.mxu0 0.0
  %5043 = vmatprep.subr.mxu0 0.0
  %5044 = vmatpush1.msra.mxu0 0.0
  %5045 = vmatprep.subr.mxu0 0.0
  %5046 = vmatpush1.msra.mxu0 0.0
  %5047 = vmatprep.subr.mxu0 0.0
  %5048 = vmatpush1.msra.mxu0 0.0
  %5049 = vmatprep.subr.mxu0 0.0
  %5050 = vmatpush1.msra.mxu0 0.0
  %5051 = vmatprep.mubr.f32.mxu0 0.0
  %5052 = vmatmul.mubr.f32.gmra.mrb[0].mxu0 %v4967
  %v5053 = vpop.f32.mrb[0].mxu0
  %v5054 = vadd.f32 0.0, %v5053
  %v5055 = vpop.f32.mrb[0].mxu0
  %5056 = vmatprep.mubr.f32.mxu0 0.0
  %5057 = vmatmul.mubr.f32.gmra.mrb[0].mxu0 %v4970
  %v5058 = vpop.f32.mrb[0].mxu0
  %v5059 = vadd.f32 0.0, %v5058
  %v5060 = vpop.f32.mrb[0].mxu0
  %5061 = vmatprep.mubr.f32.mxu0 0.0
  %5062 = vmatmul.mubr.f32.gmra.mrb[0].mxu0 %v4973
  %v5063 = vpop.f32.mrb[0].mxu0
  %v5064 = vadd.f32 0.0, %v5063
  %v5065 = vpop.f32.mrb[0].mxu0
  %5066 = vmatprep.mubr.f32.mxu0 0.0
  %5067 = vmatmul.mubr.f32.gmra.mrb[0].mxu0 %v4976
  %v5068 = vpop.f32.mrb[0].mxu0
  %v5069 = vadd.f32 0.0, %v5068
  %v5070 = vpop.f32.mrb[0].mxu0
  %5071 = vmatprep.mubr.f32.mxu0 0.0
  %5072 = vmatmul.mubr.f32.gmra.mrb[0].mxu0 %v4979
  %v5073 = vpop.f32.mrb[0].mxu0
  %v5074 = vadd.f32 0.0, %v5073
  %v5075 = vpop.f32.mrb[0].mxu0
  %5076 = vmatprep.mubr.f32.mxu0 0.0
  %5077 = vmatmul.mubr.f32.gmra.mrb[0].mxu0 %v4982
  %v5078 = vpop.f32.mrb[0].mxu0
  %v5079 = vadd.f32 0.0, %v5078
  %v5080 = vpop.f32.mrb[0].mxu0
  %5081 = vmatprep.mubr.f32.mxu0 0.0
  %5082 = vmatmul.mubr.f32.gmra.mrb[0].mxu0 %v4985
  %v5083 = vpop.f32.mrb[0].mxu0
  %v5084 = vadd.f32 0.0, %v5083
  %v5085 = vpop.f32.mrb[0].mxu0
  %5086 = vdwg.mxu0
  %v5087 = vadd.f32 %v4690, %v5054
  %v5088 = vadd.f32 %v4691, %v5059
  %v5089 = vadd.f32 %v4692, %v5064
  %v5090 = vadd.f32 %v4693, %v5069
  %v5091 = vadd.f32 %v4694, %v5074
  %v5092 = vadd.f32 %v4695, %v5079
  %v5093 = vadd.f32 %v4696, %v5084
  %s5094 = scalar_lea.vmem %s12, 1
  %v5095 = vld [vmem:[%s5094] sm:$0x1]
  %v5097 = vlaneseq
  %v5098 = vshrl.u32 %v5097, 7
  %v5099 = vsub.s32 0, %v5098
  %v5100 = vrot.slane %v5095, %v5099
  %v5102 = vadd.f32 %v5087, %v5100
  %v5103 = vadd.f32 %v5088, %v5100
  %v5104 = vadd.f32 %v5089, %v5100
  %v5105 = vadd.f32 %v5090, %v5100
  %v5106 = vadd.f32 %v5091, %v5100
  %v5107 = vadd.f32 %v5092, %v5100
  %v5108 = vadd.f32 %v5093, %v5100
  %v5109 = vsel %vm215, %v5102, 0.0
  %5110 = vadd.xlane.f32.xlu0 %v5109
  %v5111 = vpop.xlane.xlu0 %5110
  %v5112 = vsel %vm215, %v5103, 0.0
  %5113 = vadd.xlane.f32.xlu0 %v5112
  %v5114 = vpop.xlane.xlu0 %5113
  %v5115 = vsel %vm215, %v5104, 0.0
  %5116 = vadd.xlane.f32.xlu0 %v5115
  %v5117 = vpop.xlane.xlu0 %5116
  %v5118 = vsel %vm215, %v5105, 0.0
  %5119 = vadd.xlane.f32.xlu0 %v5118
  %v5120 = vpop.xlane.xlu0 %5119
  %v5121 = vsel %vm215, %v5106, 0.0
  %5122 = vadd.xlane.f32.xlu0 %v5121
  %v5123 = vpop.xlane.xlu0 %5122
  %v5124 = vsel %vm215, %v5107, 0.0
  %5125 = vadd.xlane.f32.xlu0 %v5124
  %v5126 = vpop.xlane.xlu0 %5125
  %v5127 = vsel %vm234, %v5108, 0.0
  %5128 = vadd.xlane.f32.xlu0 %v5127
  %v5129 = vpop.xlane.xlu0 %5128
  %v5130 = vmul.f32 %v5111, %v238
  %v5131 = vmul.f32 %v5114, %v238
  %v5132 = vmul.f32 %v5117, %v238
  %v5133 = vmul.f32 %v5120, %v238
  %v5134 = vmul.f32 %v5123, %v238
  %v5135 = vmul.f32 %v5126, %v238
  %v5136 = vmul.f32 %v5129, %v238
  %v5137 = vsub.f32 %v5102, %v5130
  %v5138 = vsub.f32 %v5103, %v5131
  %v5139 = vsub.f32 %v5104, %v5132
  %v5140 = vsub.f32 %v5105, %v5133
  %v5141 = vsub.f32 %v5106, %v5134
  %v5142 = vsub.f32 %v5107, %v5135
  %v5143 = vsub.f32 %v5108, %v5136
  %v5144 = vmul.f32 %v5137, %v5137
  %v5145 = vmul.f32 %v5138, %v5138
  %v5146 = vmul.f32 %v5139, %v5139
  %v5147 = vmul.f32 %v5140, %v5140
  %v5148 = vmul.f32 %v5141, %v5141
  %v5149 = vmul.f32 %v5142, %v5142
  %v5150 = vmul.f32 %v5143, %v5143
  %v5151 = vsel %vm215, %v5144, 0.0
  %5152 = vadd.xlane.f32.xlu0 %v5151
  %v5153 = vpop.xlane.xlu0 %5152
  %v5154 = vsel %vm215, %v5145, 0.0
  %5155 = vadd.xlane.f32.xlu0 %v5154
  %v5156 = vpop.xlane.xlu0 %5155
  %v5157 = vsel %vm215, %v5146, 0.0
  %5158 = vadd.xlane.f32.xlu0 %v5157
  %v5159 = vpop.xlane.xlu0 %5158
  %v5160 = vsel %vm215, %v5147, 0.0
  %5161 = vadd.xlane.f32.xlu0 %v5160
  %v5162 = vpop.xlane.xlu0 %5161
  %v5163 = vsel %vm215, %v5148, 0.0
  %5164 = vadd.xlane.f32.xlu0 %v5163
  %v5165 = vpop.xlane.xlu0 %5164
  %v5166 = vsel %vm215, %v5149, 0.0
  %5167 = vadd.xlane.f32.xlu0 %v5166
  %v5168 = vpop.xlane.xlu0 %5167
  %v5169 = vsel %vm234, %v5150, 0.0
  %5170 = vadd.xlane.f32.xlu0 %v5169
  %v5171 = vpop.xlane.xlu0 %5170
  %v5172 = vmul.f32 %v5153, %v238
  %v5173 = vmul.f32 %v5156, %v238
  %v5174 = vmul.f32 %v5159, %v238
  %v5175 = vmul.f32 %v5162, %v238
  %v5176 = vmul.f32 %v5165, %v238
  %v5177 = vmul.f32 %v5168, %v238
  %v5178 = vmul.f32 %v5171, %v238
  %v5179 = vadd.f32 %v5172, 1e-05
  %v5180 = vadd.f32 %v5173, 1e-05
  %v5181 = vadd.f32 %v5174, 1e-05
  %v5182 = vadd.f32 %v5175, 1e-05
  %v5183 = vadd.f32 %v5176, 1e-05
  %v5184 = vadd.f32 %v5177, 1e-05
  %v5185 = vadd.f32 %v5178, 1e-05
  %v5186 = vrsqrt.pop %v5179
  %v5187 = vrsqrt.pop %v5180
  %v5188 = vrsqrt.pop %v5181
  %v5189 = vrsqrt.pop %v5182
  %v5190 = vrsqrt.pop %v5183
  %v5191 = vrsqrt.pop %v5184
  %v5192 = vrsqrt.pop %v5185
  %v5193 = vmul.f32 %v5137, %v5186
  %v5194 = vmul.f32 %v5138, %v5187
  %v5195 = vmul.f32 %v5139, %v5188
  %v5196 = vmul.f32 %v5140, %v5189
  %v5197 = vmul.f32 %v5141, %v5190
  %v5198 = vmul.f32 %v5142, %v5191
  %v5199 = vmul.f32 %v5143, %v5192
  %v5200 = vld [vmem:[%s13] sm:$0xff]
  %v5201 = vld [vmem:[%s13 + $0x8] sm:$0xff]
  %v5202 = vld [vmem:[%s13 + $0x10] sm:$0xff]
  %v5203 = vld [vmem:[%s13 + $0x18] sm:$0xff]
  %v5204 = vld [vmem:[%s14] sm:$0x1]
  %v5206 = vlaneseq
  %v5207 = vshrl.u32 %v5206, 7
  %v5208 = vsub.s32 0, %v5207
  %v5209 = vrot.slane %v5204, %v5208
  %v5212 = vsel %vm215, %v5193, 0
  %v5215 = vsel %vm215, %v5194, 0
  %v5218 = vsel %vm215, %v5195, 0
  %v5221 = vsel %vm215, %v5196, 0
  %v5224 = vsel %vm215, %v5197, 0
  %v5227 = vsel %vm215, %v5198, 0
  %v5230 = vsel %vm215, %v5199, 0
  %5232 = vmatprep.subr.mxu0 0.0
  %5233 = vmatpush1.msra.mxu0 %v5200
  %5234 = vmatprep.subr.mxu0 0.0
  %5235 = vmatpush1.msra.mxu0 %v5201
  %5236 = vmatprep.subr.mxu0 0.0
  %5237 = vmatpush1.msra.mxu0 %v5202
  %5238 = vmatprep.subr.mxu0 0.0
  %5239 = vmatpush1.msra.mxu0 %v5203
  %5240 = vmatprep.subr.mxu0 0.0
  %5241 = vmatpush1.msra.mxu0 0.0
  %5242 = vmatprep.subr.mxu0 0.0
  %5243 = vmatpush1.msra.mxu0 0.0
  %5244 = vmatprep.subr.mxu0 0.0
  %5245 = vmatpush1.msra.mxu0 0.0
  %5246 = vmatprep.subr.mxu0 0.0
  %5247 = vmatpush1.msra.mxu0 0.0
  %5248 = vmatprep.subr.mxu0 0.0
  %5249 = vmatpush1.msra.mxu0 0.0
  %5250 = vmatprep.subr.mxu0 0.0
  %5251 = vmatpush1.msra.mxu0 0.0
  %5252 = vmatprep.subr.mxu0 0.0
  %5253 = vmatpush1.msra.mxu0 0.0
  %5254 = vmatprep.subr.mxu0 0.0
  %5255 = vmatpush1.msra.mxu0 0.0
  %5256 = vmatprep.subr.mxu0 0.0
  %5257 = vmatpush1.msra.mxu0 0.0
  %5258 = vmatprep.subr.mxu0 0.0
  %5259 = vmatpush1.msra.mxu0 0.0
  %5260 = vmatprep.subr.mxu0 0.0
  %5261 = vmatpush1.msra.mxu0 0.0
  %5262 = vmatprep.subr.mxu0 0.0
  %5263 = vmatpush1.msra.mxu0 0.0
  %5264 = vmatprep.subr.mxu0 0.0
  %5265 = vmatpush1.msra.mxu0 0.0
  %5266 = vmatprep.subr.mxu0 0.0
  %5267 = vmatpush1.msra.mxu0 0.0
  %5268 = vmatprep.subr.mxu0 0.0
  %5269 = vmatpush1.msra.mxu0 0.0
  %5270 = vmatprep.subr.mxu0 0.0
  %5271 = vmatpush1.msra.mxu0 0.0
  %5272 = vmatprep.subr.mxu0 0.0
  %5273 = vmatpush1.msra.mxu0 0.0
  %5274 = vmatprep.subr.mxu0 0.0
  %5275 = vmatpush1.msra.mxu0 0.0
  %5276 = vmatprep.subr.mxu0 0.0
  %5277 = vmatpush1.msra.mxu0 0.0
  %5278 = vmatprep.subr.mxu0 0.0
  %5279 = vmatpush1.msra.mxu0 0.0
  %5280 = vmatprep.subr.mxu0 0.0
  %5281 = vmatpush1.msra.mxu0 0.0
  %5282 = vmatprep.subr.mxu0 0.0
  %5283 = vmatpush1.msra.mxu0 0.0
  %5284 = vmatprep.subr.mxu0 0.0
  %5285 = vmatpush1.msra.mxu0 0.0
  %5286 = vmatprep.subr.mxu0 0.0
  %5287 = vmatpush1.msra.mxu0 0.0
  %5288 = vmatprep.subr.mxu0 0.0
  %5289 = vmatpush1.msra.mxu0 0.0
  %5290 = vmatprep.subr.mxu0 0.0
  %5291 = vmatpush1.msra.mxu0 0.0
  %5292 = vmatprep.subr.mxu0 0.0
  %5293 = vmatpush1.msra.mxu0 0.0
  %5294 = vmatprep.subr.mxu0 0.0
  %5295 = vmatpush1.msra.mxu0 0.0
  %5296 = vmatprep.mubr.f32.mxu0 0.0
  %5297 = vmatmul.mubr.f32.gmra.mrb[0].mxu0 %v5212
  %v5298 = vpop.f32.mrb[0].mxu0
  %v5299 = vadd.f32 %v5209, %v5298
  %v5300 = vpop.f32.mrb[0].mxu0
  %5301 = vmatprep.mubr.f32.mxu0 0.0
  %5302 = vmatmul.mubr.f32.gmra.mrb[0].mxu0 %v5215
  %v5303 = vpop.f32.mrb[0].mxu0
  %v5304 = vadd.f32 %v5209, %v5303
  %v5305 = vpop.f32.mrb[0].mxu0
  %5306 = vmatprep.mubr.f32.mxu0 0.0
  %5307 = vmatmul.mubr.f32.gmra.mrb[0].mxu0 %v5218
  %v5308 = vpop.f32.mrb[0].mxu0
  %v5309 = vadd.f32 %v5209, %v5308
  %v5310 = vpop.f32.mrb[0].mxu0
  %5311 = vmatprep.mubr.f32.mxu0 0.0
  %5312 = vmatmul.mubr.f32.gmra.mrb[0].mxu0 %v5221
  %v5313 = vpop.f32.mrb[0].mxu0
  %v5314 = vadd.f32 %v5209, %v5313
  %v5315 = vpop.f32.mrb[0].mxu0
  %5316 = vmatprep.mubr.f32.mxu0 0.0
  %5317 = vmatmul.mubr.f32.gmra.mrb[0].mxu0 %v5224
  %v5318 = vpop.f32.mrb[0].mxu0
  %v5319 = vadd.f32 %v5209, %v5318
  %v5320 = vpop.f32.mrb[0].mxu0
  %5321 = vmatprep.mubr.f32.mxu0 0.0
  %5322 = vmatmul.mubr.f32.gmra.mrb[0].mxu0 %v5227
  %v5323 = vpop.f32.mrb[0].mxu0
  %v5324 = vadd.f32 %v5209, %v5323
  %v5325 = vpop.f32.mrb[0].mxu0
  %5326 = vmatprep.mubr.f32.mxu0 0.0
  %5327 = vmatmul.mubr.f32.gmra.mrb[0].mxu0 %v5230
  %v5328 = vpop.f32.mrb[0].mxu0
  %v5329 = vadd.f32 %v5209, %v5328
  %v5330 = vpop.f32.mrb[0].mxu0
  %5331 = vdwg.mxu0
  %v5332 = vlaneseq
  %v5333 = vand.u32 %v5332, 127
  %vm5334 = vcmp.lt.s32.totalorder %v5333, 2
  %v5335 = vxor.u32 %v5299, 2147483648
  %v5336 = vxor.u32 %v5304, 2147483648
  %v5337 = vxor.u32 %v5309, 2147483648
  %v5338 = vxor.u32 %v5314, 2147483648
  %v5339 = vxor.u32 %v5319, 2147483648
  %v5340 = vxor.u32 %v5324, 2147483648
  %v5341 = vxor.u32 %v5329, 2147483648
  %v5342 = vmul.f32 %v5335, 1.442695
  %v5343 = vpow.pop %v5342
  %v5344 = vmul.f32 %v5336, 1.442695
  %v5345 = vpow.pop %v5344
  %v5346 = vmul.f32 %v5337, 1.442695
  %v5347 = vpow.pop %v5346
  %v5348 = vmul.f32 %v5338, 1.442695
  %v5349 = vpow.pop %v5348
  %v5350 = vmul.f32 %v5339, 1.442695
  %v5351 = vpow.pop %v5350
  %v5352 = vmul.f32 %v5340, 1.442695
  %v5353 = vpow.pop %v5352
  %v5354 = vmul.f32 %v5341, 1.442695
  %v5355 = vpow.pop %v5354
  %v5356 = vadd.f32 %v5343, 1.0
  %v5357 = vadd.f32 %v5345, 1.0
  %v5358 = vadd.f32 %v5347, 1.0
  %v5359 = vadd.f32 %v5349, 1.0
  %v5360 = vadd.f32 %v5351, 1.0
  %v5361 = vadd.f32 %v5353, 1.0
  %v5362 = vadd.f32 %v5355, 1.0
  %v5363 = vrcp.pop %v5356
  %v5364 = vmul.f32 1.0, %v5363
  %v5365 = vrcp.pop %v5357
  %v5366 = vmul.f32 1.0, %v5365
  %v5367 = vrcp.pop %v5358
  %v5368 = vmul.f32 1.0, %v5367
  %v5369 = vrcp.pop %v5359
  %v5370 = vmul.f32 1.0, %v5369
  %v5371 = vrcp.pop %v5360
  %v5372 = vmul.f32 1.0, %v5371
  %v5373 = vrcp.pop %v5361
  %v5374 = vmul.f32 1.0, %v5373
  %v5375 = vrcp.pop %v5362
  %v5376 = vmul.f32 1.0, %v5375
  %v5377 = vmul.f32 %v5364, 2.0
  %v5378 = vmul.f32 %v5366, 2.0
  %v5379 = vmul.f32 %v5368, 2.0
  %v5380 = vmul.f32 %v5370, 2.0
  %v5381 = vmul.f32 %v5372, 2.0
  %v5382 = vmul.f32 %v5374, 2.0
  %v5383 = vmul.f32 %v5376, 2.0
  %v5384 = vsub.f32 %v5377, 1.0
  %v5385 = vsub.f32 %v5378, 1.0
  %v5386 = vsub.f32 %v5379, 1.0
  %v5387 = vsub.f32 %v5380, 1.0
  %v5388 = vsub.f32 %v5381, 1.0
  %v5389 = vsub.f32 %v5382, 1.0
  %v5390 = vsub.f32 %v5383, 1.0
  %v5391 = vsel %vm5334, %v5384, %v5299
  %v5392 = vsel %vm5334, %v5385, %v5304
  %v5393 = vsel %vm5334, %v5386, %v5309
  %v5394 = vsel %vm5334, %v5387, %v5314
  %v5395 = vsel %vm5334, %v5388, %v5319
  %v5396 = vsel %vm5334, %v5389, %v5324
  %v5397 = vsel %vm5334, %v5390, %v5329
  %5398 = vst.msk [vmem:[%s15] sm:$0xff] %vm462, %v5391
  %5399 = vst.msk [vmem:[%s15 + $0x8] sm:$0xff] %vm462, %v5392
  %5400 = vst.msk [vmem:[%s15 + $0x10] sm:$0xff] %vm462, %v5393
  %5401 = vst.msk [vmem:[%s15 + $0x18] sm:$0xff] %vm462, %v5394
  %5402 = vst.msk [vmem:[%s15 + $0x20] sm:$0xff] %vm462, %v5395
  %5403 = vst.msk [vmem:[%s15 + $0x28] sm:$0xff] %vm462, %v5396
  %vm5404 = vcmask 60416
  %5405 = vst.msk [vmem:[%s15 + $0x30] sm:$0xf] %vm5404, %v5397
  // Predicated region
  $region62: #{tokenpose_forward.1} parent=0 // pred_check
    _
  $region63: #{tokenpose_forward.1} parent=0 // pred_check_branch
    %5407 = sbr.rel (0) target = $region65
  $region64: #{tokenpose_forward.1} parent=0 // pred_region
    _
  $region65: #{tokenpose_forward.1} parent=0 // pred_fallthru
    _
  // Predicated region
  $region66: #{tokenpose_forward.1} parent=0 // pred_check
    _
  $region67: #{tokenpose_forward.1} parent=0 // pred_check_branch
    %5409 = sbr.rel (0) target = $region69
  $region68: #{tokenpose_forward.1} parent=0 // pred_region
    _
  $region69: #{tokenpose_forward.1} parent=0 // pred_fallthru
    _

</llo_original>
